<compile_context>
chip_gen: v6e
topology: v6e:2x2x1
jax: 0.10.0
libtpu: 0.0.40
codegen_flags: <defaults>
</compile_context>

<pallas_src>
import functools
import math

import numpy as np
import jax
import jax.numpy as jnp
from jax import lax
from jax.experimental import pallas as pl
from jax.experimental.pallas import tpu as pltpu


def _prelu(v, a):
    return jnp.where(v > 0, v, a * v)


# ----------------------------------------------------------------------------
# Kernel A (single grid step, batch merged into matmul M) — best on v5e/v6e.
# ----------------------------------------------------------------------------
def _bump_kernel_merged(scalars_ref,          # SMEM [4] = [alpha1, alpha2, alpha3, b_out]
                        coord_ref,            # VMEM [B, In]
                        w1in_ref,             # VMEM [In, D]   (w1 @ w_in)^T
                        b1c_ref,              # VMEM [1, D]    w1 @ b_in + b1
                        posw1_ref,            # VMEM [N, D]    pos_emb @ w1^T
                        w2_ref, b2_ref,       # VMEM [D, D], [1, D]
                        w3_ref, b3_ref,       # VMEM [D, D], [1, D]
                        wo_ref,               # VMEM [1, D]
                        out_ref):             # VMEM [1, B*N]  lane-dense pixel row
    B = coord_ref.shape[0]
    N, D = posw1_ref.shape

    # Folded input_proj + layer-1 ctx path: ctx1 = coord @ (w1 w_in)^T + (w1 b_in + b1)
    ctx1 = jnp.dot(coord_ref[...], w1in_ref[...],
                   preferred_element_type=jnp.float32) + b1c_ref[...]        # [B, D]

    # Layer 1: (ctx + pos) @ W1^T + b1 == pos@W1^T + ctx1 (re-associated).
    h = _prelu(posw1_ref[...][None, :, :] + ctx1[:, None, :], scalars_ref[0])  # [B, N, D]
    # Merge batch into the matmul M dimension (784 % 8 == 0 -> free relayout).
    h = h.reshape(B * N, D)

    h = _prelu(jnp.dot(h, w2_ref[...], preferred_element_type=jnp.float32)
               + b2_ref[...], scalars_ref[1])                                  # [B*N, D]
    h = _prelu(jnp.dot(h, w3_ref[...], preferred_element_type=jnp.float32)
               + b3_ref[...], scalars_ref[2])                                  # [B*N, D]

    # Output projection Linear(D, 1), emitted lane-dense as a [1, B*N] row.
    pix = lax.dot_general(wo_ref[...], h, (((1,), (1,)), ((), ())),
                          preferred_element_type=jnp.float32)                  # [1, B*N]
    out_ref[...] = pix + scalars_ref[3]


# ----------------------------------------------------------------------------
# Kernel B (grid=(B,) "parallel", one batch element per TensorCore) — v7x.
# All inputs use constant index_maps (resident); no per-step input DMA.
# ----------------------------------------------------------------------------
def _bump_kernel_per_batch(scalars_ref, coord_ref, w1in_ref, b1c_ref, posw1_ref,
                           w2_ref, b2_ref, w3_ref, b3_ref, wo_ref, out_ref):
    b = pl.program_id(0)

    ctx1 = jnp.dot(coord_ref[pl.ds(b, 1), :], w1in_ref[...],
                   preferred_element_type=jnp.float32) + b1c_ref[...]          # [1, D]

    h = _prelu(posw1_ref[...] + ctx1, scalars_ref[0])                          # [N, D]
    h = _prelu(jnp.dot(h, w2_ref[...], preferred_element_type=jnp.float32)
               + b2_ref[...], scalars_ref[1])
    h = _prelu(jnp.dot(h, w3_ref[...], preferred_element_type=jnp.float32)
               + b3_ref[...], scalars_ref[2])

    pix = lax.dot_general(wo_ref[...], h, (((1,), (1,)), ((), ())),
                          preferred_element_type=jnp.float32)                  # [1, N]
    out_ref[0] = pix + scalars_ref[3]


# ----------------------------------------------------------------------------
# One-time parameter preparation (hoisted out of the forward pass).
# ----------------------------------------------------------------------------
def prepare_params(params, *, embed_dim=128):
    D = embed_dim
    hi = lax.Precision.HIGHEST
    w1 = params["w1"].astype(jnp.float32)

    # Fold input_proj into layer 1's ctx path (exact: no nonlinearity between).
    w1_in_T = jnp.dot(params["w_in"].T, w1.T, precision=hi).astype(jnp.float32)      # [In, D]
    b1_ctx = (jnp.dot(w1, params["b_in"], precision=hi)
              + params["b1"]).reshape(1, D).astype(jnp.float32)                      # [1, D]
    # Batch-independent layer-1 positional term.
    pos_w1 = jnp.dot(params["pos_emb"][0], w1.T, precision=hi).astype(jnp.float32)   # [N, D]

    scalars = jnp.stack([params["alpha1"], params["alpha2"],
                         params["alpha3"], params["b_out"]]).astype(jnp.float32)

    return dict(
        scalars=scalars,
        w1_in_T=w1_in_T, b1_ctx=b1_ctx, pos_w1=pos_w1,
        w2t=params["w2"].T.astype(jnp.float32), b2=params["b2"].reshape(1, D).astype(jnp.float32),
        w3t=params["w3"].T.astype(jnp.float32), b3=params["b3"].reshape(1, D).astype(jnp.float32),
        wo=params["w_out"].reshape(1, D).astype(jnp.float32),
    )


def use_per_batch_grid(batch):
    """grid=(B,) 'parallel' only pays off on dual-TensorCore parts (v7x)."""
    if batch < 2:
        # TODO(synk): for B==1 on v7x, split N=784 into two 392-row tiles instead.
        return False
    try:
        kind = jax.devices()[0].device_kind.lower()
    except Exception:
        return False
    return ("v7" in kind) or ("7x" in kind)


# ----------------------------------------------------------------------------
# Jitted forward: glue is only the pallas_call + a reshape.
# ----------------------------------------------------------------------------
@functools.partial(jax.jit, static_argnames=("grid_size", "per_batch_grid"))
def bump_transformer_pallas(coord_input, prep, *, grid_size=28, per_batch_grid=False):
    B, In = coord_input.shape
    N, D = prep["pos_w1"].shape
    assert N == grid_size * grid_size

    const = lambda *_: (0, 0)
    in_specs = [
        pl.BlockSpec(memory_space=pltpu.SMEM),        # scalars
        pl.BlockSpec((B, In), const),                 # coord (resident)
        pl.BlockSpec((In, D), const),                 # folded w1_in^T
        pl.BlockSpec((1, D), const),                  # folded b1_ctx
        pl.BlockSpec((N, D), const),                  # pos_w1 (resident)
        pl.BlockSpec((D, D), const), pl.BlockSpec((1, D), const),   # layer 2
        pl.BlockSpec((D, D), const), pl.BlockSpec((1, D), const),   # layer 3
        pl.BlockSpec((1, D), const),                  # output proj weight row
    ]
    args = (prep["scalars"], coord_input.astype(jnp.float32),
            prep["w1_in_T"], prep["b1_ctx"], prep["pos_w1"],
            prep["w2t"], prep["b2"], prep["w3t"], prep["b3"], prep["wo"])

    if per_batch_grid:
        # v7x: one batch element per TensorCore.
        out = pl.pallas_call(
            _bump_kernel_per_batch,
            out_shape=jax.ShapeDtypeStruct((B, 1, N), jnp.float32),
            grid_spec=pltpu.PrefetchScalarGridSpec(
                num_scalar_prefetch=0,
                grid=(B,),
                in_specs=in_specs,
                out_specs=pl.BlockSpec((1, 1, N), lambda b: (b, 0, 0)),
            ),
            compiler_params=pltpu.CompilerParams(
                dimension_semantics=("parallel",)),
        )(*args)
    else:
        # v5e/v6e (single TC): one grid step, B merged into the matmul M dim.
        out = pl.pallas_call(
            _bump_kernel_merged,
            out_shape=jax.ShapeDtypeStruct((1, B * N), jnp.float32),
            grid_spec=pltpu.PrefetchScalarGridSpec(
                num_scalar_prefetch=0,
                grid=(1,),
                in_specs=in_specs,
                out_specs=pl.BlockSpec((1, B * N), const),
            ),
            compiler_params=pltpu.CompilerParams(
                dimension_semantics=("arbitrary",)),
        )(*args)

    return out.reshape(B, 1, grid_size, grid_size)


# ----------------------------------------------------------------------------
# Deterministic parameter init (mimics nn.Linear default init; PReLU a = 0.25)
# ----------------------------------------------------------------------------
def init_params(key, input_dim=56, embed_dim=128, grid_size=28):
    def linear_init(k, out_f, in_f):
        kw, kb = jax.random.split(k)
        bound = 1.0 / math.sqrt(in_f)
        w = jax.random.uniform(kw, (out_f, in_f), jnp.float32, -bound, bound)
        b = jax.random.uniform(kb, (out_f,), jnp.float32, -bound, bound)
        return w, b

    keys = jax.random.split(key, 5)
    w_in, b_in = linear_init(keys[0], embed_dim, input_dim)
    w1, b1 = linear_init(keys[1], embed_dim, embed_dim)
    w2, b2 = linear_init(keys[2], embed_dim, embed_dim)
    w3, b3 = linear_init(keys[3], embed_dim, embed_dim)
    w_out, b_out = linear_init(keys[4], 1, embed_dim)

    # 2D sinusoidal positional encoding (exact port of the torch loop).
    d = embed_dim
    g = grid_size
    div = np.exp(np.arange(0, d, 4, dtype=np.float64) * (-np.log(10000.0) / d))
    xs = np.arange(g, dtype=np.float64)
    sx = np.sin(xs[:, None] * div[None, :])      # [g, d//4]
    cx = np.cos(xs[:, None] * div[None, :])
    pe = np.zeros((g, g, d), dtype=np.float32)
    pe[:, :, 0::4] = sx[:, None, :]              # sin(x * div)
    pe[:, :, 1::4] = cx[:, None, :]              # cos(x * div)
    pe[:, :, 2::4] = sx[None, :, :]              # sin(y * div)
    pe[:, :, 3::4] = cx[None, :, :]              # cos(y * div)
    pos_emb = jnp.asarray(pe.reshape(1, g * g, d), dtype=jnp.float32)

    return dict(
        w_in=w_in, b_in=b_in,
        w1=w1, b1=b1, alpha1=jnp.float32(0.25),
        w2=w2, b2=b2, alpha2=jnp.float32(0.25),
        w3=w3, b3=b3, alpha3=jnp.float32(0.25),
        w_out=w_out[0], b_out=b_out[0],          # w_out: [D], b_out: scalar
        pos_emb=pos_emb,
    )


# ----------------------------------------------------------------------------
# Pure-JAX reference (same math as the torch module forward)
# ----------------------------------------------------------------------------
def bump_transformer_reference(coord_input, params, *, grid_size=28):
    B = coord_input.shape[0]
    ctx = coord_input @ params["w_in"].T + params["b_in"]
    h = ctx[:, None, :] + params["pos_emb"]
    for w, b, a in ((params["w1"], params["b1"], params["alpha1"]),
                    (params["w2"], params["b2"], params["alpha2"]),
                    (params["w3"], params["b3"], params["alpha3"])):
        h = h @ w.T + b
        h = jnp.where(h > 0, h, a * h)
    pix = jnp.einsum("bnd,d->bn", h, params["w_out"]) + params["b_out"]
    return pix.reshape(B, 1, grid_size, grid_size)


if __name__ == "__main__":
    INPUT_DIM, EMBED_DIM, GRID = 56, 128, 28
    B = 2

    key = jax.random.PRNGKey(0)
    k_params, k_input = jax.random.split(key)
    params = init_params(k_params, INPUT_DIM, EMBED_DIM, GRID)
    coord = jax.random.normal(k_input, (B, INPUT_DIM), dtype=jnp.float32)

    # One-time parameter preparation (hoisted out of the forward pass).
    prep = prepare_params(params, embed_dim=EMBED_DIM)

    per_batch = use_per_batch_grid(B)
    out = bump_transformer_pallas(coord, prep, grid_size=GRID, per_batch_grid=per_batch)
    out = jax.block_until_ready(out)

    ref = jax.block_until_ready(bump_transformer_reference(coord, params, grid_size=GRID))

    assert out.shape == (B, 1, GRID, GRID), out.shape
    np.testing.assert_allclose(np.asarray(out), np.asarray(ref), rtol=1e-4, atol=1e-4)
    print("KERNEL_OK")
</pallas_src>

<mosaic_0001>
module attributes {stable_mosaic.version = 11 : i64} {
  func.func @_bump_kernel_merged(%arg0: i32, %arg1: memref<4xf32, #tpu.memory_space<smem>>, %arg2: memref<2x56xf32, #tpu.memory_space<vmem>>, %arg3: memref<56x128xf32, #tpu.memory_space<vmem>>, %arg4: memref<1x128xf32, #tpu.memory_space<vmem>>, %arg5: memref<784x128xf32, #tpu.memory_space<vmem>>, %arg6: memref<128x128xf32, #tpu.memory_space<vmem>>, %arg7: memref<1x128xf32, #tpu.memory_space<vmem>>, %arg8: memref<128x128xf32, #tpu.memory_space<vmem>>, %arg9: memref<1x128xf32, #tpu.memory_space<vmem>>, %arg10: memref<1x128xf32, #tpu.memory_space<vmem>>, %arg11: memref<1x1568xf32, #tpu.memory_space<vmem>>) attributes {dimension_semantics = [#tpu.dimension_semantics<arbitrary>], iteration_bounds = array<i64: 1>, scalar_prefetch = 0 : i64, scratch_operands = 0 : i64, tpu.core_type = #tpu.core_type<tc>, window_params = [{transform_indices = @transform_0, window_bounds = array<i64: 4>}, {pipeline_mode = #tpu.pipeline_mode<synchronous>, transform_indices = @transform_1, window_bounds = array<i64: 2, 56>}, {pipeline_mode = #tpu.pipeline_mode<synchronous>, transform_indices = @transform_2, window_bounds = array<i64: 56, 128>}, {pipeline_mode = #tpu.pipeline_mode<synchronous>, transform_indices = @transform_3, window_bounds = array<i64: 1, 128>}, {pipeline_mode = #tpu.pipeline_mode<synchronous>, transform_indices = @transform_4, window_bounds = array<i64: 784, 128>}, {pipeline_mode = #tpu.pipeline_mode<synchronous>, transform_indices = @transform_5, window_bounds = array<i64: 128, 128>}, {pipeline_mode = #tpu.pipeline_mode<synchronous>, transform_indices = @transform_6, window_bounds = array<i64: 1, 128>}, {pipeline_mode = #tpu.pipeline_mode<synchronous>, transform_indices = @transform_7, window_bounds = array<i64: 128, 128>}, {pipeline_mode = #tpu.pipeline_mode<synchronous>, transform_indices = @transform_8, window_bounds = array<i64: 1, 128>}, {pipeline_mode = #tpu.pipeline_mode<synchronous>, transform_indices = @transform_9, window_bounds = array<i64: 1, 128>}, {pipeline_mode = #tpu.pipeline_mode<synchronous>, transform_indices = @transform_10, window_bounds = array<i64: 1, 1568>}]} {
    %c0 = arith.constant 0 : index
    %c0_0 = arith.constant 0 : index
    %0 = vector.load %arg2[%c0, %c0_0] : memref<2x56xf32, #tpu.memory_space<vmem>>, vector<2x56xf32>
    %c0_1 = arith.constant 0 : index
    %c0_2 = arith.constant 0 : index
    %1 = vector.load %arg3[%c0_1, %c0_2] : memref<56x128xf32, #tpu.memory_space<vmem>>, vector<56x128xf32>
    %cst = arith.constant dense<0.000000e+00> : vector<2x128xf32>
    %2 = tpu.matmul %0, %1, %cst {dimension_numbers = #tpu.dot_dimension_numbers<[1], [0], [0], [1], [0, 0, 1, 1], [], []>} : vector<2x56xf32>, vector<56x128xf32>, vector<2x128xf32> -> vector<2x128xf32>
    %c0_3 = arith.constant 0 : index
    %c0_4 = arith.constant 0 : index
    %3 = vector.load %arg4[%c0_3, %c0_4] : memref<1x128xf32, #tpu.memory_space<vmem>>, vector<1x128xf32>
    %4 = vector.broadcast %3 : vector<1x128xf32> to vector<2x128xf32>
    %5 = arith.addf %2, %4 : vector<2x128xf32>
    %c0_5 = arith.constant 0 : index
    %c0_6 = arith.constant 0 : index
    %6 = vector.load %arg5[%c0_5, %c0_6] : memref<784x128xf32, #tpu.memory_space<vmem>>, vector<784x128xf32>
    %7 = vector.shape_cast %6 : vector<784x128xf32> to vector<1x784x128xf32>
    %8 = vector.shape_cast %5 : vector<2x128xf32> to vector<2x1x128xf32>
    %9 = vector.broadcast %7 : vector<1x784x128xf32> to vector<2x784x128xf32>
    %10 = vector.broadcast %8 : vector<2x1x128xf32> to vector<2x784x128xf32>
    %11 = arith.addf %9, %10 : vector<2x784x128xf32>
    %c0_7 = arith.constant 0 : index
    %12 = memref.load %arg1[%c0_7] : memref<4xf32, #tpu.memory_space<smem>>
    %cst_8 = arith.constant 0.000000e+00 : f32
    %13 = vector.broadcast %cst_8 : f32 to vector<2x784x128xf32>
    %14 = arith.cmpf ogt, %11, %13 : vector<2x784x128xf32>
    %15 = vector.broadcast %12 : f32 to vector<2x784x128xf32>
    %16 = arith.mulf %15, %11 : vector<2x784x128xf32>
    %17 = arith.select %14, %11, %16 : vector<2x784x128xi1>, vector<2x784x128xf32>
    %18 = vector.shape_cast %17 : vector<2x784x128xf32> to vector<1568x128xf32>
    %c0_9 = arith.constant 0 : index
    %c0_10 = arith.constant 0 : index
    %19 = vector.load %arg6[%c0_9, %c0_10] : memref<128x128xf32, #tpu.memory_space<vmem>>, vector<128x128xf32>
    %cst_11 = arith.constant dense<0.000000e+00> : vector<1568x128xf32>
    %20 = tpu.matmul %18, %19, %cst_11 {dimension_numbers = #tpu.dot_dimension_numbers<[1], [0], [0], [1], [0, 0, 1, 1], [], []>} : vector<1568x128xf32>, vector<128x128xf32>, vector<1568x128xf32> -> vector<1568x128xf32>
    %c0_12 = arith.constant 0 : index
    %c0_13 = arith.constant 0 : index
    %21 = vector.load %arg7[%c0_12, %c0_13] : memref<1x128xf32, #tpu.memory_space<vmem>>, vector<1x128xf32>
    %22 = vector.broadcast %21 : vector<1x128xf32> to vector<1568x128xf32>
    %23 = arith.addf %20, %22 : vector<1568x128xf32>
    %c1 = arith.constant 1 : index
    %24 = memref.load %arg1[%c1] : memref<4xf32, #tpu.memory_space<smem>>
    %cst_14 = arith.constant 0.000000e+00 : f32
    %25 = vector.broadcast %cst_14 : f32 to vector<1568x128xf32>
    %26 = arith.cmpf ogt, %23, %25 : vector<1568x128xf32>
    %27 = vector.broadcast %24 : f32 to vector<1568x128xf32>
    %28 = arith.mulf %27, %23 : vector<1568x128xf32>
    %29 = arith.select %26, %23, %28 : vector<1568x128xi1>, vector<1568x128xf32>
    %c0_15 = arith.constant 0 : index
    %c0_16 = arith.constant 0 : index
    %30 = vector.load %arg8[%c0_15, %c0_16] : memref<128x128xf32, #tpu.memory_space<vmem>>, vector<128x128xf32>
    %cst_17 = arith.constant dense<0.000000e+00> : vector<1568x128xf32>
    %31 = tpu.matmul %29, %30, %cst_17 {dimension_numbers = #tpu.dot_dimension_numbers<[1], [0], [0], [1], [0, 0, 1, 1], [], []>} : vector<1568x128xf32>, vector<128x128xf32>, vector<1568x128xf32> -> vector<1568x128xf32>
    %c0_18 = arith.constant 0 : index
    %c0_19 = arith.constant 0 : index
    %32 = vector.load %arg9[%c0_18, %c0_19] : memref<1x128xf32, #tpu.memory_space<vmem>>, vector<1x128xf32>
    %33 = vector.broadcast %32 : vector<1x128xf32> to vector<1568x128xf32>
    %34 = arith.addf %31, %33 : vector<1568x128xf32>
    %c2 = arith.constant 2 : index
    %35 = memref.load %arg1[%c2] : memref<4xf32, #tpu.memory_space<smem>>
    %cst_20 = arith.constant 0.000000e+00 : f32
    %36 = vector.broadcast %cst_20 : f32 to vector<1568x128xf32>
    %37 = arith.cmpf ogt, %34, %36 : vector<1568x128xf32>
    %38 = vector.broadcast %35 : f32 to vector<1568x128xf32>
    %39 = arith.mulf %38, %34 : vector<1568x128xf32>
    %40 = arith.select %37, %34, %39 : vector<1568x128xi1>, vector<1568x128xf32>
    %c0_21 = arith.constant 0 : index
    %c0_22 = arith.constant 0 : index
    %41 = vector.load %arg10[%c0_21, %c0_22] : memref<1x128xf32, #tpu.memory_space<vmem>>, vector<1x128xf32>
    %cst_23 = arith.constant dense<0.000000e+00> : vector<1x1568xf32>
    %42 = tpu.matmul %41, %40, %cst_23 {dimension_numbers = #tpu.dot_dimension_numbers<[1], [1], [0], [0], [0, 0, 1, 0], [], []>} : vector<1x128xf32>, vector<1568x128xf32>, vector<1x1568xf32> -> vector<1x1568xf32>
    %c3 = arith.constant 3 : index
    %43 = memref.load %arg1[%c3] : memref<4xf32, #tpu.memory_space<smem>>
    %44 = vector.broadcast %43 : f32 to vector<1x1568xf32>
    %45 = arith.addf %42, %44 : vector<1x1568xf32>
    %c0_24 = arith.constant 0 : index
    %c0_25 = arith.constant 0 : index
    %46 = vector.load %arg11[%c0_24, %c0_25] : memref<1x1568xf32, #tpu.memory_space<vmem>>, vector<1x1568xf32>
    tpu.vector_store %arg11[%c0_24, %c0_25], %45 {strides = array<i32>} : memref<1x1568xf32, #tpu.memory_space<vmem>>, vector<1x1568xf32>,
    return
  }
  func.func @transform_0(%arg0: i32) -> i32 {
    %c0_i32 = arith.constant 0 : i32
    %c0_i32_0 = arith.constant 0 : i32
    return %c0_i32 : i32
  }
  func.func @transform_1(%arg0: i32) -> (i32, i32) {
    %c0_i32 = arith.constant 0 : i32
    %c0_i32_0 = arith.constant 0 : i32
    %c0_i32_1 = arith.constant 0 : i32
    return %c0_i32, %c0_i32_0 : i32, i32
  }
  func.func @transform_2(%arg0: i32) -> (i32, i32) {
    %c0_i32 = arith.constant 0 : i32
    %c0_i32_0 = arith.constant 0 : i32
    %c0_i32_1 = arith.constant 0 : i32
    return %c0_i32, %c0_i32_0 : i32, i32
  }
  func.func @transform_3(%arg0: i32) -> (i32, i32) {
    %c0_i32 = arith.constant 0 : i32
    %c0_i32_0 = arith.constant 0 : i32
    %c0_i32_1 = arith.constant 0 : i32
    return %c0_i32, %c0_i32_0 : i32, i32
  }
  func.func @transform_4(%arg0: i32) -> (i32, i32) {
    %c0_i32 = arith.constant 0 : i32
    %c0_i32_0 = arith.constant 0 : i32
    %c0_i32_1 = arith.constant 0 : i32
    return %c0_i32, %c0_i32_0 : i32, i32
  }
  func.func @transform_5(%arg0: i32) -> (i32, i32) {
    %c0_i32 = arith.constant 0 : i32
    %c0_i32_0 = arith.constant 0 : i32
    %c0_i32_1 = arith.constant 0 : i32
    return %c0_i32, %c0_i32_0 : i32, i32
  }
  func.func @transform_6(%arg0: i32) -> (i32, i32) {
    %c0_i32 = arith.constant 0 : i32
    %c0_i32_0 = arith.constant 0 : i32
    %c0_i32_1 = arith.constant 0 : i32
    return %c0_i32, %c0_i32_0 : i32, i32
  }
  func.func @transform_7(%arg0: i32) -> (i32, i32) {
    %c0_i32 = arith.constant 0 : i32
    %c0_i32_0 = arith.constant 0 : i32
    %c0_i32_1 = arith.constant 0 : i32
    return %c0_i32, %c0_i32_0 : i32, i32
  }
  func.func @transform_8(%arg0: i32) -> (i32, i32) {
    %c0_i32 = arith.constant 0 : i32
    %c0_i32_0 = arith.constant 0 : i32
    %c0_i32_1 = arith.constant 0 : i32
    return %c0_i32, %c0_i32_0 : i32, i32
  }
  func.func @transform_9(%arg0: i32) -> (i32, i32) {
    %c0_i32 = arith.constant 0 : i32
    %c0_i32_0 = arith.constant 0 : i32
    %c0_i32_1 = arith.constant 0 : i32
    return %c0_i32, %c0_i32_0 : i32, i32
  }
  func.func @transform_10(%arg0: i32) -> (i32, i32) {
    %c0_i32 = arith.constant 0 : i32
    %c0_i32_0 = arith.constant 0 : i32
    %c0_i32_1 = arith.constant 0 : i32
    return %c0_i32, %c0_i32_0 : i32, i32
  }
}

</mosaic_0001>

<llo_original>
// kernel: bump_transformer_pallas.1
$region0: #{bump_transformer_pallas.1}
  #allocation0 [shape = 'u32[]', space=smem, size = 0x4, offset = 0x4, fixed_abs, tag = 'smem constant byte address 0x4 - core index']
  #allocation1 [shape = 'u32[144,128]{1,0:T(1,128)}', space=vmem, size = 0x12000, scoped, tag = 'internal scratch']
  %s0 = inlined_call_operand.vmem [shape: f32[4], index: 0, kind: input, shape index: {}]
  %s1 = inlined_call_operand.hbm [shape: f32[2,56], index: 1, kind: input, shape index: {}]
  %s2 = inlined_call_operand.hbm [shape: f32[56,128], index: 2, kind: input, shape index: {}]
  %s3 = inlined_call_operand.hbm [shape: f32[1,128], index: 3, kind: input, shape index: {}]
  %s4 = inlined_call_operand.hbm [shape: f32[784,128], index: 4, kind: input, shape index: {}]
  %s5 = inlined_call_operand.hbm [shape: f32[128,128], index: 5, kind: input, shape index: {}]
  %s6 = inlined_call_operand.vmem [shape: f32[1,128], index: 6, kind: input, shape index: {}]
  %s7 = inlined_call_operand.hbm [shape: f32[128,128], index: 7, kind: input, shape index: {}]
  %s8 = inlined_call_operand.vmem [shape: f32[1,128], index: 8, kind: input, shape index: {}]
  %s9 = inlined_call_operand.vmem [shape: f32[1,128], index: 9, kind: input, shape index: {}]
  %s10 = inlined_call_operand.vmem [shape: f32[1,1568], index: 10, kind: output, shape index: {}]
  %s11 = sld [smem:[#allocation0]]
  $region78: #{bump_transformer_pallas.1} parent=0
    _
  %s13 = ssub.s32 1, %s11
  %s14 = scalar_select 0, %s13, %s11
  $region1: #{bump_transformer_pallas.1} parent=0
    #allocation2 [shape = 'u8[512]{0}', space=smem, size = 0x200, scoped, tag = 'input window, operand 0, single buffered']
    #allocation3 [shape = 's32[1]{0}', space=sflag, size = 0x4, scoped, tag = 'scoped memory for bump_transformer_pallas.1']
    #allocation4 [shape = 's32[1]{0}', space=sflag, size = 0x4, scoped, tag = 'scoped memory for bump_transformer_pallas.1']
    #allocation5 [shape = 'u8[1024]{0}', space=vmem, size = 0x400, scoped, tag = 'input window, operand 1, single buffered']
    #allocation6 [shape = 'u8[28672]{0}', space=vmem, size = 0x7000, scoped, tag = 'input window, operand 2, single buffered']
    #allocation7 [shape = 's32[1]{0}', space=sflag, size = 0x4, scoped, tag = 'scoped memory for bump_transformer_pallas.1']
    #allocation8 [shape = 'u8[512]{0}', space=vmem, size = 0x400, scoped, tag = 'input window, operand 3, single buffered']
    #allocation9 [shape = 'u8[401408]{0}', space=vmem, size = 0x62000, scoped, tag = 'input window, operand 4, single buffered']
    #allocation10 [shape = 's32[1]{0}', space=sflag, size = 0x4, scoped, tag = 'scoped memory for bump_transformer_pallas.1']
    #allocation11 [shape = 'u8[65536]{0}', space=vmem, size = 0x10000, scoped, tag = 'input window, operand 5, single buffered']
    #allocation12 [shape = 'u8[65536]{0}', space=vmem, size = 0x10000, scoped, tag = 'input window, operand 7, single buffered']
    #allocation13 [shape = 's32[1]{0}', space=sflag, size = 0x4, scoped, tag = 'scoped memory for bump_transformer_pallas.1']
    %15 = vsyncpa [#allocation4], 0
    %16 = vsyncpa [#allocation3], 0
    %17 = vsyncpa [#allocation7], 0
    %18 = vsyncpa [#allocation10], 0
    %19 = vsyncpa [#allocation13], 0
    // Predicated region
    $region2: #{bump_transformer_pallas.1} parent=1 // pred_check
      _
    $region3: #{bump_transformer_pallas.1} parent=1 // pred_check_branch
      %21 = sbr.rel (0) target = $region5
    $region4: #{bump_transformer_pallas.1} parent=1 // pred_region
      %s23 = ssub.s32 16, 16
      %24 = vsyncadd [#allocation4], %s23
      %s26 = sshll.u32 %s0, 4
      %s27 = int_to_ptr.vmem [resolvable:$true] %s26
      %29 = dma.vmem_to_smem %s27, 16, [#allocation2], [#allocation4]
    $region5: #{bump_transformer_pallas.1} parent=1 // pred_fallthru
      _
    // Predicated region
    $region6: #{bump_transformer_pallas.1} parent=1 // pred_check
      _
    $region7: #{bump_transformer_pallas.1} parent=1 // pred_check_branch
      %31 = sbr.rel (0) target = $region9
    $region8: #{bump_transformer_pallas.1} parent=1 // pred_region
      %s33 = ssub.s32 32, 32
      %34 = vsyncadd [#allocation3], %s33
      %s36 = sshll.u32 [#allocation5], 4
      %s37 = int_to_ptr.vmem [resolvable:$true] %s36
      %39 = dma.hbm_to_vmem [thread:$0]  %s1, 32, %s37, [#allocation3]
    $region9: #{bump_transformer_pallas.1} parent=1 // pred_fallthru
      _
    // Predicated region
    $region10: #{bump_transformer_pallas.1} parent=1 // pred_check
      _
    $region11: #{bump_transformer_pallas.1} parent=1 // pred_check_branch
      %41 = sbr.rel (0) target = $region13
    $region12: #{bump_transformer_pallas.1} parent=1 // pred_region
      %s43 = ssub.s32 896, 896
      %44 = vsyncadd [#allocation7], %s43
      %s45 = sshll.u32 [#allocation6], 4
      %s46 = int_to_ptr.vmem [resolvable:$true] %s45
      %51 = dma.hbm_to_vmem [thread:$0]  %s2, 896, %s46, [#allocation7], 128, 128, 8
    $region13: #{bump_transformer_pallas.1} parent=1 // pred_fallthru
      _
    // Predicated region
    $region14: #{bump_transformer_pallas.1} parent=1 // pred_check
      _
    $region15: #{bump_transformer_pallas.1} parent=1 // pred_check_branch
      %53 = sbr.rel (0) target = $region17
    $region16: #{bump_transformer_pallas.1} parent=1 // pred_region
      %s55 = ssub.s32 16, 16
      %56 = vsyncadd [#allocation7], %s55
      %s58 = sshll.u32 [#allocation8], 4
      %s59 = int_to_ptr.vmem [resolvable:$true] %s58
      %61 = dma.hbm_to_vmem [thread:$0]  %s3, 16, %s59, [#allocation7]
    $region17: #{bump_transformer_pallas.1} parent=1 // pred_fallthru
      _
    // Predicated region
    $region18: #{bump_transformer_pallas.1} parent=1 // pred_check
      _
    $region19: #{bump_transformer_pallas.1} parent=1 // pred_check_branch
      %63 = sbr.rel (0) target = $region21
    $region20: #{bump_transformer_pallas.1} parent=1 // pred_region
      %s65 = ssub.s32 12544, 12544
      %66 = vsyncadd [#allocation10], %s65
      %s67 = sshll.u32 [#allocation9], 4
      %s68 = int_to_ptr.vmem [resolvable:$true] %s67
      %73 = dma.hbm_to_vmem [thread:$0]  %s4, 12544, %s68, [#allocation10], 128, 128, 8
    $region21: #{bump_transformer_pallas.1} parent=1 // pred_fallthru
      _
    // Predicated region
    $region22: #{bump_transformer_pallas.1} parent=1 // pred_check
      _
    $region23: #{bump_transformer_pallas.1} parent=1 // pred_check_branch
      %75 = sbr.rel (0) target = $region25
    $region24: #{bump_transformer_pallas.1} parent=1 // pred_region
      %s77 = ssub.s32 2048, 2048
      %78 = vsyncadd [#allocation10], %s77
      %s79 = sshll.u32 [#allocation11], 4
      %s80 = int_to_ptr.vmem [resolvable:$true] %s79
      %85 = dma.hbm_to_vmem [thread:$0]  %s5, 2048, %s80, [#allocation10], 128, 128, 8
    $region25: #{bump_transformer_pallas.1} parent=1 // pred_fallthru
      _
    // Predicated region
    $region26: #{bump_transformer_pallas.1} parent=1 // pred_check
      _
    $region27: #{bump_transformer_pallas.1} parent=1 // pred_check_branch
      %87 = sbr.rel (0) target = $region29
    $region28: #{bump_transformer_pallas.1} parent=1 // pred_region
      _
    $region29: #{bump_transformer_pallas.1} parent=1 // pred_fallthru
      _
    // Predicated region
    $region30: #{bump_transformer_pallas.1} parent=1 // pred_check
      _
    $region31: #{bump_transformer_pallas.1} parent=1 // pred_check_branch
      %89 = sbr.rel (0) target = $region33
    $region32: #{bump_transformer_pallas.1} parent=1 // pred_region
      %s91 = ssub.s32 2048, 2048
      %92 = vsyncadd [#allocation13], %s91
      %s93 = sshll.u32 [#allocation12], 4
      %s94 = int_to_ptr.vmem [resolvable:$true] %s93
      %99 = dma.hbm_to_vmem [thread:$0]  %s7, 2048, %s94, [#allocation13], 128, 128, 8
    $region33: #{bump_transformer_pallas.1} parent=1 // pred_fallthru
      _
    // Predicated region
    $region34: #{bump_transformer_pallas.1} parent=1 // pred_check
      _
    $region35: #{bump_transformer_pallas.1} parent=1 // pred_check_branch
      %101 = sbr.rel (0) target = $region37
    $region36: #{bump_transformer_pallas.1} parent=1 // pred_region
      _
    $region37: #{bump_transformer_pallas.1} parent=1 // pred_fallthru
      _
    // Predicated region
    $region38: #{bump_transformer_pallas.1} parent=1 // pred_check
      _
    $region39: #{bump_transformer_pallas.1} parent=1 // pred_check_branch
      %103 = sbr.rel (0) target = $region41
    $region40: #{bump_transformer_pallas.1} parent=1 // pred_region
      _
    $region41: #{bump_transformer_pallas.1} parent=1 // pred_fallthru
      _
    // Predicated region
    $region42: #{bump_transformer_pallas.1} parent=1 // pred_check
      _
    $region43: #{bump_transformer_pallas.1} parent=1 // pred_check_branch
      %105 = sbr.rel (0) target = $region45
    $region44: #{bump_transformer_pallas.1} parent=1 // pred_region
      %106 = dma.done [#allocation4], 16
    $region45: #{bump_transformer_pallas.1} parent=1 // pred_fallthru
      _
    // Predicated region
    $region46: #{bump_transformer_pallas.1} parent=1 // pred_check
      _
    $region47: #{bump_transformer_pallas.1} parent=1 // pred_check_branch
      %108 = sbr.rel (0) target = $region49
    $region48: #{bump_transformer_pallas.1} parent=1 // pred_region
      %109 = dma.done [#allocation3], 32
    $region49: #{bump_transformer_pallas.1} parent=1 // pred_fallthru
      _
    // Predicated region
    $region50: #{bump_transformer_pallas.1} parent=1 // pred_check
      _
    $region51: #{bump_transformer_pallas.1} parent=1 // pred_check_branch
      %111 = sbr.rel (0) target = $region53
    $region52: #{bump_transformer_pallas.1} parent=1 // pred_region
      %112 = dma.done [#allocation7], 896
    $region53: #{bump_transformer_pallas.1} parent=1 // pred_fallthru
      _
    // Predicated region
    $region54: #{bump_transformer_pallas.1} parent=1 // pred_check
      _
    $region55: #{bump_transformer_pallas.1} parent=1 // pred_check_branch
      %114 = sbr.rel (0) target = $region57
    $region56: #{bump_transformer_pallas.1} parent=1 // pred_region
      %115 = dma.done [#allocation7], 16
    $region57: #{bump_transformer_pallas.1} parent=1 // pred_fallthru
      _
    // Predicated region
    $region58: #{bump_transformer_pallas.1} parent=1 // pred_check
      _
    $region59: #{bump_transformer_pallas.1} parent=1 // pred_check_branch
      %117 = sbr.rel (0) target = $region61
    $region60: #{bump_transformer_pallas.1} parent=1 // pred_region
      %118 = dma.done [#allocation10], 12544
    $region61: #{bump_transformer_pallas.1} parent=1 // pred_fallthru
      _
    // Predicated region
    $region62: #{bump_transformer_pallas.1} parent=1 // pred_check
      _
    $region63: #{bump_transformer_pallas.1} parent=1 // pred_check_branch
      %120 = sbr.rel (0) target = $region65
    $region64: #{bump_transformer_pallas.1} parent=1 // pred_region
      %121 = dma.done [#allocation10], 2048
    $region65: #{bump_transformer_pallas.1} parent=1 // pred_fallthru
      _
    // Predicated region
    $region66: #{bump_transformer_pallas.1} parent=1 // pred_check
      _
    $region67: #{bump_transformer_pallas.1} parent=1 // pred_check_branch
      %123 = sbr.rel (0) target = $region69
    $region68: #{bump_transformer_pallas.1} parent=1 // pred_region
      %124 = dma.done [#allocation13], 2048
    $region69: #{bump_transformer_pallas.1} parent=1 // pred_fallthru
      _
    %125 = sfence
    %v126 = vld [vmem:[#allocation5] sm:$0x3]
    %v127 = vld [vmem:[#allocation6] sm:$0xff]
    %v128 = vld [vmem:[#allocation6 + $0x8] sm:$0xff]
    %v129 = vld [vmem:[#allocation6 + $0x10] sm:$0xff]
    %v130 = vld [vmem:[#allocation6 + $0x18] sm:$0xff]
    %v131 = vld [vmem:[#allocation6 + $0x20] sm:$0xff]
    %v132 = vld [vmem:[#allocation6 + $0x28] sm:$0xff]
    %v133 = vld [vmem:[#allocation6 + $0x30] sm:$0xff]
    %v134 = vld [vmem:[#allocation8] sm:$0x1]
    %v136 = vlaneseq
    %v137 = vshrl.u32 %v136, 7
    %v138 = vsub.s32 0, %v137
    %v139 = vrot.slane %v134, %v138
    %vm141 = vcmask 457728
    %v143 = vsel %vm141, %v126, 0
    %145 = vmatprep.subr.mxu0 0.0
    %146 = vmatpush1.msra.mxu0 0.0
    %147 = vmatprep.subr.mxu0 0.0
    %148 = vmatpush1.msra.mxu0 0.0
    %149 = vmatprep.subr.mxu0 0.0
    %150 = vmatpush1.msra.mxu0 0.0
    %151 = vmatprep.subr.mxu0 0.0
    %152 = vmatpush1.msra.mxu0 0.0
    %153 = vmatprep.subr.mxu0 0.0
    %154 = vmatpush1.msra.mxu0 0.0
    %155 = vmatprep.subr.mxu0 0.0
    %156 = vmatpush1.msra.mxu0 0.0
    %157 = vmatprep.subr.mxu0 0.0
    %158 = vmatpush1.msra.mxu0 0.0
    %159 = vmatprep.subr.mxu0 0.0
    %160 = vmatpush1.msra.mxu0 0.0
    %161 = vmatprep.subr.mxu0 0.0
    %162 = vmatpush1.msra.mxu0 0.0
    %163 = vmatprep.subr.mxu0 0.0
    %164 = vmatpush1.msra.mxu0 %v133
    %165 = vmatprep.subr.mxu0 0.0
    %166 = vmatpush1.msra.mxu0 %v132
    %167 = vmatprep.subr.mxu0 0.0
    %168 = vmatpush1.msra.mxu0 %v131
    %169 = vmatprep.subr.mxu0 0.0
    %170 = vmatpush1.msra.mxu0 %v130
    %171 = vmatprep.subr.mxu0 0.0
    %172 = vmatpush1.msra.mxu0 %v129
    %173 = vmatprep.subr.mxu0 0.0
    %174 = vmatpush1.msra.mxu0 %v128
    %175 = vmatprep.subr.mxu0 0.0
    %176 = vmatpush1.msra.mxu0 %v127
    %177 = vmatprep.subr.mxu0 0.0
    %178 = vmatpush2.msra.mxu0 0.0
    %179 = vmatprep.subr.mxu0 0.0
    %180 = vmatpush2.msra.mxu0 0.0
    %181 = vmatprep.subr.mxu0 0.0
    %182 = vmatpush2.msra.mxu0 0.0
    %183 = vmatprep.subr.mxu0 0.0
    %184 = vmatpush2.msra.mxu0 0.0
    %185 = vmatprep.subr.mxu0 0.0
    %186 = vmatpush2.msra.mxu0 0.0
    %187 = vmatprep.subr.mxu0 0.0
    %188 = vmatpush2.msra.mxu0 0.0
    %189 = vmatprep.subr.mxu0 0.0
    %190 = vmatpush2.msra.mxu0 0.0
    %191 = vmatprep.subr.mxu0 0.0
    %192 = vmatpush2.msra.mxu0 0.0
    %193 = vmatprep.subr.mxu0 0.0
    %194 = vmatpush2.msra.mxu0 0.0
    %195 = vmatprep.subr.mxu0 0.0
    %196 = vmatpush2.msra.mxu0 0.0
    %197 = vmatprep.subr.mxu0 0.0
    %198 = vmatpush2.msra.mxu0 0.0
    %199 = vmatprep.subr.mxu0 0.0
    %200 = vmatpush2.msra.mxu0 0.0
    %201 = vmatprep.subr.mxu0 0.0
    %202 = vmatpush2.msra.mxu0 0.0
    %203 = vmatprep.subr.mxu0 0.0
    %204 = vmatpush2.msra.mxu0 0.0
    %205 = vmatprep.subr.mxu0 0.0
    %206 = vmatpush2.msra.mxu0 0.0
    %207 = vmatprep.subr.mxu0 0.0
    %208 = vmatpush2.msra.mxu0 0.0
    %209 = vmatprep.mubr.f32.mxu0 0.0
    %210 = vmatmul.mubr.f32.gmra.mxu0 %v143
    %v211 = vpop.f32.mrf.mxu0
    %v212 = vadd.f32 %v139, %v211
    %v213 = vpop.f32.mrf.mxu0
    %214 = vdwg.mxu0
    %v215 = vld [vmem:[#allocation9] sm:$0xff]
    %v216 = vld [vmem:[#allocation9 + $0x8] sm:$0xff]
    %v217 = vld [vmem:[#allocation9 + $0x10] sm:$0xff]
    %v218 = vld [vmem:[#allocation9 + $0x18] sm:$0xff]
    %v219 = vld [vmem:[#allocation9 + $0x20] sm:$0xff]
    %v220 = vld [vmem:[#allocation9 + $0x28] sm:$0xff]
    %v221 = vld [vmem:[#allocation9 + $0x30] sm:$0xff]
    %v222 = vld [vmem:[#allocation9 + $0x38] sm:$0xff]
    %v223 = vld [vmem:[#allocation9 + $0x40] sm:$0xff]
    %v224 = vld [vmem:[#allocation9 + $0x48] sm:$0xff]
    %v225 = vld [vmem:[#allocation9 + $0x50] sm:$0xff]
    %v226 = vld [vmem:[#allocation9 + $0x58] sm:$0xff]
    %v227 = vld [vmem:[#allocation9 + $0x60] sm:$0xff]
    %v228 = vld [vmem:[#allocation9 + $0x68] sm:$0xff]
    %v229 = vld [vmem:[#allocation9 + $0x70] sm:$0xff]
    %v230 = vld [vmem:[#allocation9 + $0x78] sm:$0xff]
    %v231 = vld [vmem:[#allocation9 + $0x80] sm:$0xff]
    %v232 = vld [vmem:[#allocation9 + $0x88] sm:$0xff]
    %v233 = vld [vmem:[#allocation9 + $0x90] sm:$0xff]
    %v234 = vld [vmem:[#allocation9 + $0x98] sm:$0xff]
    %v235 = vld [vmem:[#allocation9 + $0xa0] sm:$0xff]
    %v236 = vld [vmem:[#allocation9 + $0xa8] sm:$0xff]
    %v237 = vld [vmem:[#allocation9 + $0xb0] sm:$0xff]
    %v238 = vld [vmem:[#allocation9 + $0xb8] sm:$0xff]
    %v239 = vld [vmem:[#allocation9 + $0xc0] sm:$0xff]
    %v240 = vld [vmem:[#allocation9 + $0xc8] sm:$0xff]
    %v241 = vld [vmem:[#allocation9 + $0xd0] sm:$0xff]
    %v242 = vld [vmem:[#allocation9 + $0xd8] sm:$0xff]
    %v243 = vld [vmem:[#allocation9 + $0xe0] sm:$0xff]
    %v244 = vld [vmem:[#allocation9 + $0xe8] sm:$0xff]
    %v245 = vld [vmem:[#allocation9 + $0xf0] sm:$0xff]
    %v246 = vld [vmem:[#allocation9 + $0xf8] sm:$0xff]
    %v247 = vld [vmem:[#allocation9 + $0x100] sm:$0xff]
    %v248 = vld [vmem:[#allocation9 + $0x108] sm:$0xff]
    %v249 = vld [vmem:[#allocation9 + $0x110] sm:$0xff]
    %v250 = vld [vmem:[#allocation9 + $0x118] sm:$0xff]
    %v251 = vld [vmem:[#allocation9 + $0x120] sm:$0xff]
    %v252 = vld [vmem:[#allocation9 + $0x128] sm:$0xff]
    %v253 = vld [vmem:[#allocation9 + $0x130] sm:$0xff]
    %v254 = vld [vmem:[#allocation9 + $0x138] sm:$0xff]
    %v255 = vld [vmem:[#allocation9 + $0x140] sm:$0xff]
    %v256 = vld [vmem:[#allocation9 + $0x148] sm:$0xff]
    %v257 = vld [vmem:[#allocation9 + $0x150] sm:$0xff]
    %v258 = vld [vmem:[#allocation9 + $0x158] sm:$0xff]
    %v259 = vld [vmem:[#allocation9 + $0x160] sm:$0xff]
    %v260 = vld [vmem:[#allocation9 + $0x168] sm:$0xff]
    %v261 = vld [vmem:[#allocation9 + $0x170] sm:$0xff]
    %v262 = vld [vmem:[#allocation9 + $0x178] sm:$0xff]
    %v263 = vld [vmem:[#allocation9 + $0x180] sm:$0xff]
    %v264 = vld [vmem:[#allocation9 + $0x188] sm:$0xff]
    %v265 = vld [vmem:[#allocation9 + $0x190] sm:$0xff]
    %v266 = vld [vmem:[#allocation9 + $0x198] sm:$0xff]
    %v267 = vld [vmem:[#allocation9 + $0x1a0] sm:$0xff]
    %v268 = vld [vmem:[#allocation9 + $0x1a8] sm:$0xff]
    %v269 = vld [vmem:[#allocation9 + $0x1b0] sm:$0xff]
    %v270 = vld [vmem:[#allocation9 + $0x1b8] sm:$0xff]
    %v271 = vld [vmem:[#allocation9 + $0x1c0] sm:$0xff]
    %v272 = vld [vmem:[#allocation9 + $0x1c8] sm:$0xff]
    %v273 = vld [vmem:[#allocation9 + $0x1d0] sm:$0xff]
    %v274 = vld [vmem:[#allocation9 + $0x1d8] sm:$0xff]
    %v275 = vld [vmem:[#allocation9 + $0x1e0] sm:$0xff]
    %v276 = vld [vmem:[#allocation9 + $0x1e8] sm:$0xff]
    %v277 = vld [vmem:[#allocation9 + $0x1f0] sm:$0xff]
    %v278 = vld [vmem:[#allocation9 + $0x1f8] sm:$0xff]
    %v279 = vld [vmem:[#allocation9 + $0x200] sm:$0xff]
    %v280 = vld [vmem:[#allocation9 + $0x208] sm:$0xff]
    %v281 = vld [vmem:[#allocation9 + $0x210] sm:$0xff]
    %v282 = vld [vmem:[#allocation9 + $0x218] sm:$0xff]
    %v283 = vld [vmem:[#allocation9 + $0x220] sm:$0xff]
    %v284 = vld [vmem:[#allocation9 + $0x228] sm:$0xff]
    %v285 = vld [vmem:[#allocation9 + $0x230] sm:$0xff]
    %v286 = vld [vmem:[#allocation9 + $0x238] sm:$0xff]
    %v287 = vld [vmem:[#allocation9 + $0x240] sm:$0xff]
    %v288 = vld [vmem:[#allocation9 + $0x248] sm:$0xff]
    %v289 = vld [vmem:[#allocation9 + $0x250] sm:$0xff]
    %v290 = vld [vmem:[#allocation9 + $0x258] sm:$0xff]
    %v291 = vld [vmem:[#allocation9 + $0x260] sm:$0xff]
    %v292 = vld [vmem:[#allocation9 + $0x268] sm:$0xff]
    %v293 = vld [vmem:[#allocation9 + $0x270] sm:$0xff]
    %v294 = vld [vmem:[#allocation9 + $0x278] sm:$0xff]
    %v295 = vld [vmem:[#allocation9 + $0x280] sm:$0xff]
    %v296 = vld [vmem:[#allocation9 + $0x288] sm:$0xff]
    %v297 = vld [vmem:[#allocation9 + $0x290] sm:$0xff]
    %v298 = vld [vmem:[#allocation9 + $0x298] sm:$0xff]
    %v299 = vld [vmem:[#allocation9 + $0x2a0] sm:$0xff]
    %v300 = vld [vmem:[#allocation9 + $0x2a8] sm:$0xff]
    %v301 = vld [vmem:[#allocation9 + $0x2b0] sm:$0xff]
    %v302 = vld [vmem:[#allocation9 + $0x2b8] sm:$0xff]
    %v303 = vld [vmem:[#allocation9 + $0x2c0] sm:$0xff]
    %v304 = vld [vmem:[#allocation9 + $0x2c8] sm:$0xff]
    %v305 = vld [vmem:[#allocation9 + $0x2d0] sm:$0xff]
    %v306 = vld [vmem:[#allocation9 + $0x2d8] sm:$0xff]
    %v307 = vld [vmem:[#allocation9 + $0x2e0] sm:$0xff]
    %v308 = vld [vmem:[#allocation9 + $0x2e8] sm:$0xff]
    %v309 = vld [vmem:[#allocation9 + $0x2f0] sm:$0xff]
    %v310 = vld [vmem:[#allocation9 + $0x2f8] sm:$0xff]
    %v311 = vld [vmem:[#allocation9 + $0x300] sm:$0xff]
    %v312 = vld [vmem:[#allocation9 + $0x308] sm:$0xff]
    %v315 = vunpack.c.l.s4 1966171168
    %v316 = vunpack.c.0.s8 %v315
    %v317 = vlaneseq
    %v318 = vshrl.u32 %v317, 7
    %v319 = vsub.s32 %v316, %v318
    %v320 = vrot.slane %v212, %v319
    %v321 = vcombine.high %v320, %v320
    %v323 = vunpack.c.l.s4 1966171168
    %v324 = vunpack.c.0.s8 %v323
    %v325 = vlaneseq
    %v326 = vshrl.u32 %v325, 7
    %v327 = vsub.s32 %v324, %v326
    %v328 = vrot.slane %v320, %v327
    %v330 = vunpack.c.l.s4 1966171168
    %v331 = vunpack.c.0.s8 %v330
    %v332 = vlaneseq
    %v333 = vshrl.u32 %v332, 7
    %v334 = vsub.s32 %v331, %v333
    %v335 = vrot.slane %v321, %v334
    %v336 = vlaneseq
    %v337 = vshrl.u32 %v336, 7
    %v338 = vsub.s32 0, %v337
    %v339 = vrot.slane %v328, %v338
    %v340 = vlaneseq
    %v341 = vshrl.u32 %v340, 7
    %v342 = vsub.s32 0, %v341
    %v343 = vrot.slane %v335, %v342
    %v346 = vadd.f32 %v215, %v339
    %v347 = vadd.f32 %v216, %v339
    %v348 = vadd.f32 %v217, %v339
    %v349 = vadd.f32 %v218, %v339
    %v350 = vadd.f32 %v219, %v339
    %v351 = vadd.f32 %v220, %v339
    %v352 = vadd.f32 %v221, %v339
    %v353 = vadd.f32 %v222, %v339
    %v354 = vadd.f32 %v223, %v339
    %v355 = vadd.f32 %v224, %v339
    %v356 = vadd.f32 %v225, %v339
    %v357 = vadd.f32 %v226, %v339
    %v358 = vadd.f32 %v227, %v339
    %v359 = vadd.f32 %v228, %v339
    %v360 = vadd.f32 %v229, %v339
    %v361 = vadd.f32 %v230, %v339
    %v362 = vadd.f32 %v231, %v339
    %v363 = vadd.f32 %v232, %v339
    %v364 = vadd.f32 %v233, %v339
    %v365 = vadd.f32 %v234, %v339
    %v366 = vadd.f32 %v235, %v339
    %v367 = vadd.f32 %v236, %v339
    %v368 = vadd.f32 %v237, %v339
    %v369 = vadd.f32 %v238, %v339
    %v370 = vadd.f32 %v239, %v339
    %v371 = vadd.f32 %v240, %v339
    %v372 = vadd.f32 %v241, %v339
    %v373 = vadd.f32 %v242, %v339
    %v374 = vadd.f32 %v243, %v339
    %v375 = vadd.f32 %v244, %v339
    %v376 = vadd.f32 %v245, %v339
    %v377 = vadd.f32 %v246, %v339
    %v378 = vadd.f32 %v247, %v339
    %v379 = vadd.f32 %v248, %v339
    %v380 = vadd.f32 %v249, %v339
    %v381 = vadd.f32 %v250, %v339
    %v382 = vadd.f32 %v251, %v339
    %v383 = vadd.f32 %v252, %v339
    %v384 = vadd.f32 %v253, %v339
    %v385 = vadd.f32 %v254, %v339
    %v386 = vadd.f32 %v255, %v339
    %v387 = vadd.f32 %v256, %v339
    %v388 = vadd.f32 %v257, %v339
    %v389 = vadd.f32 %v258, %v339
    %v390 = vadd.f32 %v259, %v339
    %v391 = vadd.f32 %v260, %v339
    %v392 = vadd.f32 %v261, %v339
    %v393 = vadd.f32 %v262, %v339
    %v394 = vadd.f32 %v263, %v339
    %v395 = vadd.f32 %v264, %v339
    %v396 = vadd.f32 %v265, %v339
    %v397 = vadd.f32 %v266, %v339
    %v398 = vadd.f32 %v267, %v339
    %v399 = vadd.f32 %v268, %v339
    %v400 = vadd.f32 %v269, %v339
    %v401 = vadd.f32 %v270, %v339
    %v402 = vadd.f32 %v271, %v339
    %v403 = vadd.f32 %v272, %v339
    %v404 = vadd.f32 %v273, %v339
    %v405 = vadd.f32 %v274, %v339
    %v406 = vadd.f32 %v275, %v339
    %v407 = vadd.f32 %v276, %v339
    %v408 = vadd.f32 %v277, %v339
    %v409 = vadd.f32 %v278, %v339
    %v410 = vadd.f32 %v279, %v339
    %v411 = vadd.f32 %v280, %v339
    %v412 = vadd.f32 %v281, %v339
    %v413 = vadd.f32 %v282, %v339
    %v414 = vadd.f32 %v283, %v339
    %v415 = vadd.f32 %v284, %v339
    %v416 = vadd.f32 %v285, %v339
    %v417 = vadd.f32 %v286, %v339
    %v418 = vadd.f32 %v287, %v339
    %v419 = vadd.f32 %v288, %v339
    %v420 = vadd.f32 %v289, %v339
    %v421 = vadd.f32 %v290, %v339
    %v422 = vadd.f32 %v291, %v339
    %v423 = vadd.f32 %v292, %v339
    %v424 = vadd.f32 %v293, %v339
    %v425 = vadd.f32 %v294, %v339
    %v426 = vadd.f32 %v295, %v339
    %v427 = vadd.f32 %v296, %v339
    %v428 = vadd.f32 %v297, %v339
    %v429 = vadd.f32 %v298, %v339
    %v430 = vadd.f32 %v299, %v339
    %v431 = vadd.f32 %v300, %v339
    %v432 = vadd.f32 %v301, %v339
    %v433 = vadd.f32 %v302, %v339
    %v434 = vadd.f32 %v303, %v339
    %v435 = vadd.f32 %v304, %v339
    %v436 = vadd.f32 %v305, %v339
    %v437 = vadd.f32 %v306, %v339
    %v438 = vadd.f32 %v307, %v339
    %v439 = vadd.f32 %v308, %v339
    %v440 = vadd.f32 %v309, %v339
    %v441 = vadd.f32 %v310, %v339
    %v442 = vadd.f32 %v311, %v339
    %v443 = vadd.f32 %v312, %v339
    %v444 = vadd.f32 %v215, %v343
    %v445 = vadd.f32 %v216, %v343
    %v446 = vadd.f32 %v217, %v343
    %v447 = vadd.f32 %v218, %v343
    %v448 = vadd.f32 %v219, %v343
    %v449 = vadd.f32 %v220, %v343
    %v450 = vadd.f32 %v221, %v343
    %v451 = vadd.f32 %v222, %v343
    %v452 = vadd.f32 %v223, %v343
    %v453 = vadd.f32 %v224, %v343
    %v454 = vadd.f32 %v225, %v343
    %v455 = vadd.f32 %v226, %v343
    %v456 = vadd.f32 %v227, %v343
    %v457 = vadd.f32 %v228, %v343
    %v458 = vadd.f32 %v229, %v343
    %v459 = vadd.f32 %v230, %v343
    %v460 = vadd.f32 %v231, %v343
    %v461 = vadd.f32 %v232, %v343
    %v462 = vadd.f32 %v233, %v343
    %v463 = vadd.f32 %v234, %v343
    %v464 = vadd.f32 %v235, %v343
    %v465 = vadd.f32 %v236, %v343
    %v466 = vadd.f32 %v237, %v343
    %v467 = vadd.f32 %v238, %v343
    %v468 = vadd.f32 %v239, %v343
    %v469 = vadd.f32 %v240, %v343
    %v470 = vadd.f32 %v241, %v343
    %v471 = vadd.f32 %v242, %v343
    %v472 = vadd.f32 %v243, %v343
    %v473 = vadd.f32 %v244, %v343
    %v474 = vadd.f32 %v245, %v343
    %v475 = vadd.f32 %v246, %v343
    %v476 = vadd.f32 %v247, %v343
    %v477 = vadd.f32 %v248, %v343
    %v478 = vadd.f32 %v249, %v343
    %v479 = vadd.f32 %v250, %v343
    %v480 = vadd.f32 %v251, %v343
    %v481 = vadd.f32 %v252, %v343
    %v482 = vadd.f32 %v253, %v343
    %v483 = vadd.f32 %v254, %v343
    %v484 = vadd.f32 %v255, %v343
    %v485 = vadd.f32 %v256, %v343
    %v486 = vadd.f32 %v257, %v343
    %v487 = vadd.f32 %v258, %v343
    %v488 = vadd.f32 %v259, %v343
    %v489 = vadd.f32 %v260, %v343
    %v490 = vadd.f32 %v261, %v343
    %v491 = vadd.f32 %v262, %v343
    %v492 = vadd.f32 %v263, %v343
    %v493 = vadd.f32 %v264, %v343
    %v494 = vadd.f32 %v265, %v343
    %v495 = vadd.f32 %v266, %v343
    %v496 = vadd.f32 %v267, %v343
    %v497 = vadd.f32 %v268, %v343
    %v498 = vadd.f32 %v269, %v343
    %v499 = vadd.f32 %v270, %v343
    %v500 = vadd.f32 %v271, %v343
    %v501 = vadd.f32 %v272, %v343
    %v502 = vadd.f32 %v273, %v343
    %v503 = vadd.f32 %v274, %v343
    %v504 = vadd.f32 %v275, %v343
    %v505 = vadd.f32 %v276, %v343
    %v506 = vadd.f32 %v277, %v343
    %v507 = vadd.f32 %v278, %v343
    %v508 = vadd.f32 %v279, %v343
    %v509 = vadd.f32 %v280, %v343
    %v510 = vadd.f32 %v281, %v343
    %v511 = vadd.f32 %v282, %v343
    %v512 = vadd.f32 %v283, %v343
    %v513 = vadd.f32 %v284, %v343
    %v514 = vadd.f32 %v285, %v343
    %v515 = vadd.f32 %v286, %v343
    %v516 = vadd.f32 %v287, %v343
    %v517 = vadd.f32 %v288, %v343
    %v518 = vadd.f32 %v289, %v343
    %v519 = vadd.f32 %v290, %v343
    %v520 = vadd.f32 %v291, %v343
    %v521 = vadd.f32 %v292, %v343
    %v522 = vadd.f32 %v293, %v343
    %v523 = vadd.f32 %v294, %v343
    %v524 = vadd.f32 %v295, %v343
    %v525 = vadd.f32 %v296, %v343
    %v526 = vadd.f32 %v297, %v343
    %v527 = vadd.f32 %v298, %v343
    %v528 = vadd.f32 %v299, %v343
    %v529 = vadd.f32 %v300, %v343
    %v530 = vadd.f32 %v301, %v343
    %v531 = vadd.f32 %v302, %v343
    %v532 = vadd.f32 %v303, %v343
    %v533 = vadd.f32 %v304, %v343
    %v534 = vadd.f32 %v305, %v343
    %v535 = vadd.f32 %v306, %v343
    %v536 = vadd.f32 %v307, %v343
    %v537 = vadd.f32 %v308, %v343
    %v538 = vadd.f32 %v309, %v343
    %v539 = vadd.f32 %v310, %v343
    %v540 = vadd.f32 %v311, %v343
    %v541 = vadd.f32 %v312, %v343
    %s542 = sld [smem:[#allocation2]]
    %vm543 = vcmp.gt.f32.partialorder %v346, 0.0
    %vm544 = vcmp.gt.f32.partialorder %v347, 0.0
    %vm545 = vcmp.gt.f32.partialorder %v348, 0.0
    %vm546 = vcmp.gt.f32.partialorder %v349, 0.0
    %vm547 = vcmp.gt.f32.partialorder %v350, 0.0
    %vm548 = vcmp.gt.f32.partialorder %v351, 0.0
    %vm549 = vcmp.gt.f32.partialorder %v352, 0.0
    %vm550 = vcmp.gt.f32.partialorder %v353, 0.0
    %vm551 = vcmp.gt.f32.partialorder %v354, 0.0
    %vm552 = vcmp.gt.f32.partialorder %v355, 0.0
    %vm553 = vcmp.gt.f32.partialorder %v356, 0.0
    %vm554 = vcmp.gt.f32.partialorder %v357, 0.0
    %vm555 = vcmp.gt.f32.partialorder %v358, 0.0
    %vm556 = vcmp.gt.f32.partialorder %v359, 0.0
    %vm557 = vcmp.gt.f32.partialorder %v360, 0.0
    %vm558 = vcmp.gt.f32.partialorder %v361, 0.0
    %vm559 = vcmp.gt.f32.partialorder %v362, 0.0
    %vm560 = vcmp.gt.f32.partialorder %v363, 0.0
    %vm561 = vcmp.gt.f32.partialorder %v364, 0.0
    %vm562 = vcmp.gt.f32.partialorder %v365, 0.0
    %vm563 = vcmp.gt.f32.partialorder %v366, 0.0
    %vm564 = vcmp.gt.f32.partialorder %v367, 0.0
    %vm565 = vcmp.gt.f32.partialorder %v368, 0.0
    %vm566 = vcmp.gt.f32.partialorder %v369, 0.0
    %vm567 = vcmp.gt.f32.partialorder %v370, 0.0
    %vm568 = vcmp.gt.f32.partialorder %v371, 0.0
    %vm569 = vcmp.gt.f32.partialorder %v372, 0.0
    %vm570 = vcmp.gt.f32.partialorder %v373, 0.0
    %vm571 = vcmp.gt.f32.partialorder %v374, 0.0
    %vm572 = vcmp.gt.f32.partialorder %v375, 0.0
    %vm573 = vcmp.gt.f32.partialorder %v376, 0.0
    %vm574 = vcmp.gt.f32.partialorder %v377, 0.0
    %vm575 = vcmp.gt.f32.partialorder %v378, 0.0
    %vm576 = vcmp.gt.f32.partialorder %v379, 0.0
    %vm577 = vcmp.gt.f32.partialorder %v380, 0.0
    %vm578 = vcmp.gt.f32.partialorder %v381, 0.0
    %vm579 = vcmp.gt.f32.partialorder %v382, 0.0
    %vm580 = vcmp.gt.f32.partialorder %v383, 0.0
    %vm581 = vcmp.gt.f32.partialorder %v384, 0.0
    %vm582 = vcmp.gt.f32.partialorder %v385, 0.0
    %vm583 = vcmp.gt.f32.partialorder %v386, 0.0
    %vm584 = vcmp.gt.f32.partialorder %v387, 0.0
    %vm585 = vcmp.gt.f32.partialorder %v388, 0.0
    %vm586 = vcmp.gt.f32.partialorder %v389, 0.0
    %vm587 = vcmp.gt.f32.partialorder %v390, 0.0
    %vm588 = vcmp.gt.f32.partialorder %v391, 0.0
    %vm589 = vcmp.gt.f32.partialorder %v392, 0.0
    %vm590 = vcmp.gt.f32.partialorder %v393, 0.0
    %vm591 = vcmp.gt.f32.partialorder %v394, 0.0
    %vm592 = vcmp.gt.f32.partialorder %v395, 0.0
    %vm593 = vcmp.gt.f32.partialorder %v396, 0.0
    %vm594 = vcmp.gt.f32.partialorder %v397, 0.0
    %vm595 = vcmp.gt.f32.partialorder %v398, 0.0
    %vm596 = vcmp.gt.f32.partialorder %v399, 0.0
    %vm597 = vcmp.gt.f32.partialorder %v400, 0.0
    %vm598 = vcmp.gt.f32.partialorder %v401, 0.0
    %vm599 = vcmp.gt.f32.partialorder %v402, 0.0
    %vm600 = vcmp.gt.f32.partialorder %v403, 0.0
    %vm601 = vcmp.gt.f32.partialorder %v404, 0.0
    %vm602 = vcmp.gt.f32.partialorder %v405, 0.0
    %vm603 = vcmp.gt.f32.partialorder %v406, 0.0
    %vm604 = vcmp.gt.f32.partialorder %v407, 0.0
    %vm605 = vcmp.gt.f32.partialorder %v408, 0.0
    %vm606 = vcmp.gt.f32.partialorder %v409, 0.0
    %vm607 = vcmp.gt.f32.partialorder %v410, 0.0
    %vm608 = vcmp.gt.f32.partialorder %v411, 0.0
    %vm609 = vcmp.gt.f32.partialorder %v412, 0.0
    %vm610 = vcmp.gt.f32.partialorder %v413, 0.0
    %vm611 = vcmp.gt.f32.partialorder %v414, 0.0
    %vm612 = vcmp.gt.f32.partialorder %v415, 0.0
    %vm613 = vcmp.gt.f32.partialorder %v416, 0.0
    %vm614 = vcmp.gt.f32.partialorder %v417, 0.0
    %vm615 = vcmp.gt.f32.partialorder %v418, 0.0
    %vm616 = vcmp.gt.f32.partialorder %v419, 0.0
    %vm617 = vcmp.gt.f32.partialorder %v420, 0.0
    %vm618 = vcmp.gt.f32.partialorder %v421, 0.0
    %vm619 = vcmp.gt.f32.partialorder %v422, 0.0
    %vm620 = vcmp.gt.f32.partialorder %v423, 0.0
    %vm621 = vcmp.gt.f32.partialorder %v424, 0.0
    %vm622 = vcmp.gt.f32.partialorder %v425, 0.0
    %vm623 = vcmp.gt.f32.partialorder %v426, 0.0
    %vm624 = vcmp.gt.f32.partialorder %v427, 0.0
    %vm625 = vcmp.gt.f32.partialorder %v428, 0.0
    %vm626 = vcmp.gt.f32.partialorder %v429, 0.0
    %vm627 = vcmp.gt.f32.partialorder %v430, 0.0
    %vm628 = vcmp.gt.f32.partialorder %v431, 0.0
    %vm629 = vcmp.gt.f32.partialorder %v432, 0.0
    %vm630 = vcmp.gt.f32.partialorder %v433, 0.0
    %vm631 = vcmp.gt.f32.partialorder %v434, 0.0
    %vm632 = vcmp.gt.f32.partialorder %v435, 0.0
    %vm633 = vcmp.gt.f32.partialorder %v436, 0.0
    %vm634 = vcmp.gt.f32.partialorder %v437, 0.0
    %vm635 = vcmp.gt.f32.partialorder %v438, 0.0
    %vm636 = vcmp.gt.f32.partialorder %v439, 0.0
    %vm637 = vcmp.gt.f32.partialorder %v440, 0.0
    %vm638 = vcmp.gt.f32.partialorder %v441, 0.0
    %vm639 = vcmp.gt.f32.partialorder %v442, 0.0
    %vm640 = vcmp.gt.f32.partialorder %v443, 0.0
    %vm641 = vcmp.gt.f32.partialorder %v444, 0.0
    %vm642 = vcmp.gt.f32.partialorder %v445, 0.0
    %vm643 = vcmp.gt.f32.partialorder %v446, 0.0
    %vm644 = vcmp.gt.f32.partialorder %v447, 0.0
    %vm645 = vcmp.gt.f32.partialorder %v448, 0.0
    %vm646 = vcmp.gt.f32.partialorder %v449, 0.0
    %vm647 = vcmp.gt.f32.partialorder %v450, 0.0
    %vm648 = vcmp.gt.f32.partialorder %v451, 0.0
    %vm649 = vcmp.gt.f32.partialorder %v452, 0.0
    %vm650 = vcmp.gt.f32.partialorder %v453, 0.0
    %vm651 = vcmp.gt.f32.partialorder %v454, 0.0
    %vm652 = vcmp.gt.f32.partialorder %v455, 0.0
    %vm653 = vcmp.gt.f32.partialorder %v456, 0.0
    %vm654 = vcmp.gt.f32.partialorder %v457, 0.0
    %vm655 = vcmp.gt.f32.partialorder %v458, 0.0
    %vm656 = vcmp.gt.f32.partialorder %v459, 0.0
    %vm657 = vcmp.gt.f32.partialorder %v460, 0.0
    %vm658 = vcmp.gt.f32.partialorder %v461, 0.0
    %vm659 = vcmp.gt.f32.partialorder %v462, 0.0
    %vm660 = vcmp.gt.f32.partialorder %v463, 0.0
    %vm661 = vcmp.gt.f32.partialorder %v464, 0.0
    %vm662 = vcmp.gt.f32.partialorder %v465, 0.0
    %vm663 = vcmp.gt.f32.partialorder %v466, 0.0
    %vm664 = vcmp.gt.f32.partialorder %v467, 0.0
    %vm665 = vcmp.gt.f32.partialorder %v468, 0.0
    %vm666 = vcmp.gt.f32.partialorder %v469, 0.0
    %vm667 = vcmp.gt.f32.partialorder %v470, 0.0
    %vm668 = vcmp.gt.f32.partialorder %v471, 0.0
    %vm669 = vcmp.gt.f32.partialorder %v472, 0.0
    %vm670 = vcmp.gt.f32.partialorder %v473, 0.0
    %vm671 = vcmp.gt.f32.partialorder %v474, 0.0
    %vm672 = vcmp.gt.f32.partialorder %v475, 0.0
    %vm673 = vcmp.gt.f32.partialorder %v476, 0.0
    %vm674 = vcmp.gt.f32.partialorder %v477, 0.0
    %vm675 = vcmp.gt.f32.partialorder %v478, 0.0
    %vm676 = vcmp.gt.f32.partialorder %v479, 0.0
    %vm677 = vcmp.gt.f32.partialorder %v480, 0.0
    %vm678 = vcmp.gt.f32.partialorder %v481, 0.0
    %vm679 = vcmp.gt.f32.partialorder %v482, 0.0
    %vm680 = vcmp.gt.f32.partialorder %v483, 0.0
    %vm681 = vcmp.gt.f32.partialorder %v484, 0.0
    %vm682 = vcmp.gt.f32.partialorder %v485, 0.0
    %vm683 = vcmp.gt.f32.partialorder %v486, 0.0
    %vm684 = vcmp.gt.f32.partialorder %v487, 0.0
    %vm685 = vcmp.gt.f32.partialorder %v488, 0.0
    %vm686 = vcmp.gt.f32.partialorder %v489, 0.0
    %vm687 = vcmp.gt.f32.partialorder %v490, 0.0
    %vm688 = vcmp.gt.f32.partialorder %v491, 0.0
    %vm689 = vcmp.gt.f32.partialorder %v492, 0.0
    %vm690 = vcmp.gt.f32.partialorder %v493, 0.0
    %vm691 = vcmp.gt.f32.partialorder %v494, 0.0
    %vm692 = vcmp.gt.f32.partialorder %v495, 0.0
    %vm693 = vcmp.gt.f32.partialorder %v496, 0.0
    %vm694 = vcmp.gt.f32.partialorder %v497, 0.0
    %vm695 = vcmp.gt.f32.partialorder %v498, 0.0
    %vm696 = vcmp.gt.f32.partialorder %v499, 0.0
    %vm697 = vcmp.gt.f32.partialorder %v500, 0.0
    %vm698 = vcmp.gt.f32.partialorder %v501, 0.0
    %vm699 = vcmp.gt.f32.partialorder %v502, 0.0
    %vm700 = vcmp.gt.f32.partialorder %v503, 0.0
    %vm701 = vcmp.gt.f32.partialorder %v504, 0.0
    %vm702 = vcmp.gt.f32.partialorder %v505, 0.0
    %vm703 = vcmp.gt.f32.partialorder %v506, 0.0
    %vm704 = vcmp.gt.f32.partialorder %v507, 0.0
    %vm705 = vcmp.gt.f32.partialorder %v508, 0.0
    %vm706 = vcmp.gt.f32.partialorder %v509, 0.0
    %vm707 = vcmp.gt.f32.partialorder %v510, 0.0
    %vm708 = vcmp.gt.f32.partialorder %v511, 0.0
    %vm709 = vcmp.gt.f32.partialorder %v512, 0.0
    %vm710 = vcmp.gt.f32.partialorder %v513, 0.0
    %vm711 = vcmp.gt.f32.partialorder %v514, 0.0
    %vm712 = vcmp.gt.f32.partialorder %v515, 0.0
    %vm713 = vcmp.gt.f32.partialorder %v516, 0.0
    %vm714 = vcmp.gt.f32.partialorder %v517, 0.0
    %vm715 = vcmp.gt.f32.partialorder %v518, 0.0
    %vm716 = vcmp.gt.f32.partialorder %v519, 0.0
    %vm717 = vcmp.gt.f32.partialorder %v520, 0.0
    %vm718 = vcmp.gt.f32.partialorder %v521, 0.0
    %vm719 = vcmp.gt.f32.partialorder %v522, 0.0
    %vm720 = vcmp.gt.f32.partialorder %v523, 0.0
    %vm721 = vcmp.gt.f32.partialorder %v524, 0.0
    %vm722 = vcmp.gt.f32.partialorder %v525, 0.0
    %vm723 = vcmp.gt.f32.partialorder %v526, 0.0
    %vm724 = vcmp.gt.f32.partialorder %v527, 0.0
    %vm725 = vcmp.gt.f32.partialorder %v528, 0.0
    %vm726 = vcmp.gt.f32.partialorder %v529, 0.0
    %vm727 = vcmp.gt.f32.partialorder %v530, 0.0
    %vm728 = vcmp.gt.f32.partialorder %v531, 0.0
    %vm729 = vcmp.gt.f32.partialorder %v532, 0.0
    %vm730 = vcmp.gt.f32.partialorder %v533, 0.0
    %vm731 = vcmp.gt.f32.partialorder %v534, 0.0
    %vm732 = vcmp.gt.f32.partialorder %v535, 0.0
    %vm733 = vcmp.gt.f32.partialorder %v536, 0.0
    %vm734 = vcmp.gt.f32.partialorder %v537, 0.0
    %vm735 = vcmp.gt.f32.partialorder %v538, 0.0
    %vm736 = vcmp.gt.f32.partialorder %v539, 0.0
    %vm737 = vcmp.gt.f32.partialorder %v540, 0.0
    %vm738 = vcmp.gt.f32.partialorder %v541, 0.0
    %v739 = vstv %s542
    %v740 = vmul.f32 %v739, %v346
    %v741 = vmul.f32 %v739, %v347
    %v742 = vmul.f32 %v739, %v348
    %v743 = vmul.f32 %v739, %v349
    %v744 = vmul.f32 %v739, %v350
    %v745 = vmul.f32 %v739, %v351
    %v746 = vmul.f32 %v739, %v352
    %v747 = vmul.f32 %v739, %v353
    %v748 = vmul.f32 %v739, %v354
    %v749 = vmul.f32 %v739, %v355
    %v750 = vmul.f32 %v739, %v356
    %v751 = vmul.f32 %v739, %v357
    %v752 = vmul.f32 %v739, %v358
    %v753 = vmul.f32 %v739, %v359
    %v754 = vmul.f32 %v739, %v360
    %v755 = vmul.f32 %v739, %v361
    %v756 = vmul.f32 %v739, %v362
    %v757 = vmul.f32 %v739, %v363
    %v758 = vmul.f32 %v739, %v364
    %v759 = vmul.f32 %v739, %v365
    %v760 = vmul.f32 %v739, %v366
    %v761 = vmul.f32 %v739, %v367
    %v762 = vmul.f32 %v739, %v368
    %v763 = vmul.f32 %v739, %v369
    %v764 = vmul.f32 %v739, %v370
    %v765 = vmul.f32 %v739, %v371
    %v766 = vmul.f32 %v739, %v372
    %v767 = vmul.f32 %v739, %v373
    %v768 = vmul.f32 %v739, %v374
    %v769 = vmul.f32 %v739, %v375
    %v770 = vmul.f32 %v739, %v376
    %v771 = vmul.f32 %v739, %v377
    %v772 = vmul.f32 %v739, %v378
    %v773 = vmul.f32 %v739, %v379
    %v774 = vmul.f32 %v739, %v380
    %v775 = vmul.f32 %v739, %v381
    %v776 = vmul.f32 %v739, %v382
    %v777 = vmul.f32 %v739, %v383
    %v778 = vmul.f32 %v739, %v384
    %v779 = vmul.f32 %v739, %v385
    %v780 = vmul.f32 %v739, %v386
    %v781 = vmul.f32 %v739, %v387
    %v782 = vmul.f32 %v739, %v388
    %v783 = vmul.f32 %v739, %v389
    %v784 = vmul.f32 %v739, %v390
    %v785 = vmul.f32 %v739, %v391
    %v786 = vmul.f32 %v739, %v392
    %v787 = vmul.f32 %v739, %v393
    %v788 = vmul.f32 %v739, %v394
    %v789 = vmul.f32 %v739, %v395
    %v790 = vmul.f32 %v739, %v396
    %v791 = vmul.f32 %v739, %v397
    %v792 = vmul.f32 %v739, %v398
    %v793 = vmul.f32 %v739, %v399
    %v794 = vmul.f32 %v739, %v400
    %v795 = vmul.f32 %v739, %v401
    %v796 = vmul.f32 %v739, %v402
    %v797 = vmul.f32 %v739, %v403
    %v798 = vmul.f32 %v739, %v404
    %v799 = vmul.f32 %v739, %v405
    %v800 = vmul.f32 %v739, %v406
    %v801 = vmul.f32 %v739, %v407
    %v802 = vmul.f32 %v739, %v408
    %v803 = vmul.f32 %v739, %v409
    %v804 = vmul.f32 %v739, %v410
    %v805 = vmul.f32 %v739, %v411
    %v806 = vmul.f32 %v739, %v412
    %v807 = vmul.f32 %v739, %v413
    %v808 = vmul.f32 %v739, %v414
    %v809 = vmul.f32 %v739, %v415
    %v810 = vmul.f32 %v739, %v416
    %v811 = vmul.f32 %v739, %v417
    %v812 = vmul.f32 %v739, %v418
    %v813 = vmul.f32 %v739, %v419
    %v814 = vmul.f32 %v739, %v420
    %v815 = vmul.f32 %v739, %v421
    %v816 = vmul.f32 %v739, %v422
    %v817 = vmul.f32 %v739, %v423
    %v818 = vmul.f32 %v739, %v424
    %v819 = vmul.f32 %v739, %v425
    %v820 = vmul.f32 %v739, %v426
    %v821 = vmul.f32 %v739, %v427
    %v822 = vmul.f32 %v739, %v428
    %v823 = vmul.f32 %v739, %v429
    %v824 = vmul.f32 %v739, %v430
    %v825 = vmul.f32 %v739, %v431
    %v826 = vmul.f32 %v739, %v432
    %v827 = vmul.f32 %v739, %v433
    %v828 = vmul.f32 %v739, %v434
    %v829 = vmul.f32 %v739, %v435
    %v830 = vmul.f32 %v739, %v436
    %v831 = vmul.f32 %v739, %v437
    %v832 = vmul.f32 %v739, %v438
    %v833 = vmul.f32 %v739, %v439
    %v834 = vmul.f32 %v739, %v440
    %v835 = vmul.f32 %v739, %v441
    %v836 = vmul.f32 %v739, %v442
    %v837 = vmul.f32 %v739, %v443
    %v838 = vmul.f32 %v739, %v444
    %v839 = vmul.f32 %v739, %v445
    %v840 = vmul.f32 %v739, %v446
    %v841 = vmul.f32 %v739, %v447
    %v842 = vmul.f32 %v739, %v448
    %v843 = vmul.f32 %v739, %v449
    %v844 = vmul.f32 %v739, %v450
    %v845 = vmul.f32 %v739, %v451
    %v846 = vmul.f32 %v739, %v452
    %v847 = vmul.f32 %v739, %v453
    %v848 = vmul.f32 %v739, %v454
    %v849 = vmul.f32 %v739, %v455
    %v850 = vmul.f32 %v739, %v456
    %v851 = vmul.f32 %v739, %v457
    %v852 = vmul.f32 %v739, %v458
    %v853 = vmul.f32 %v739, %v459
    %v854 = vmul.f32 %v739, %v460
    %v855 = vmul.f32 %v739, %v461
    %v856 = vmul.f32 %v739, %v462
    %v857 = vmul.f32 %v739, %v463
    %v858 = vmul.f32 %v739, %v464
    %v859 = vmul.f32 %v739, %v465
    %v860 = vmul.f32 %v739, %v466
    %v861 = vmul.f32 %v739, %v467
    %v862 = vmul.f32 %v739, %v468
    %v863 = vmul.f32 %v739, %v469
    %v864 = vmul.f32 %v739, %v470
    %v865 = vmul.f32 %v739, %v471
    %v866 = vmul.f32 %v739, %v472
    %v867 = vmul.f32 %v739, %v473
    %v868 = vmul.f32 %v739, %v474
    %v869 = vmul.f32 %v739, %v475
    %v870 = vmul.f32 %v739, %v476
    %v871 = vmul.f32 %v739, %v477
    %v872 = vmul.f32 %v739, %v478
    %v873 = vmul.f32 %v739, %v479
    %v874 = vmul.f32 %v739, %v480
    %v875 = vmul.f32 %v739, %v481
    %v876 = vmul.f32 %v739, %v482
    %v877 = vmul.f32 %v739, %v483
    %v878 = vmul.f32 %v739, %v484
    %v879 = vmul.f32 %v739, %v485
    %v880 = vmul.f32 %v739, %v486
    %v881 = vmul.f32 %v739, %v487
    %v882 = vmul.f32 %v739, %v488
    %v883 = vmul.f32 %v739, %v489
    %v884 = vmul.f32 %v739, %v490
    %v885 = vmul.f32 %v739, %v491
    %v886 = vmul.f32 %v739, %v492
    %v887 = vmul.f32 %v739, %v493
    %v888 = vmul.f32 %v739, %v494
    %v889 = vmul.f32 %v739, %v495
    %v890 = vmul.f32 %v739, %v496
    %v891 = vmul.f32 %v739, %v497
    %v892 = vmul.f32 %v739, %v498
    %v893 = vmul.f32 %v739, %v499
    %v894 = vmul.f32 %v739, %v500
    %v895 = vmul.f32 %v739, %v501
    %v896 = vmul.f32 %v739, %v502
    %v897 = vmul.f32 %v739, %v503
    %v898 = vmul.f32 %v739, %v504
    %v899 = vmul.f32 %v739, %v505
    %v900 = vmul.f32 %v739, %v506
    %v901 = vmul.f32 %v739, %v507
    %v902 = vmul.f32 %v739, %v508
    %v903 = vmul.f32 %v739, %v509
    %v904 = vmul.f32 %v739, %v510
    %v905 = vmul.f32 %v739, %v511
    %v906 = vmul.f32 %v739, %v512
    %v907 = vmul.f32 %v739, %v513
    %v908 = vmul.f32 %v739, %v514
    %v909 = vmul.f32 %v739, %v515
    %v910 = vmul.f32 %v739, %v516
    %v911 = vmul.f32 %v739, %v517
    %v912 = vmul.f32 %v739, %v518
    %v913 = vmul.f32 %v739, %v519
    %v914 = vmul.f32 %v739, %v520
    %v915 = vmul.f32 %v739, %v521
    %v916 = vmul.f32 %v739, %v522
    %v917 = vmul.f32 %v739, %v523
    %v918 = vmul.f32 %v739, %v524
    %v919 = vmul.f32 %v739, %v525
    %v920 = vmul.f32 %v739, %v526
    %v921 = vmul.f32 %v739, %v527
    %v922 = vmul.f32 %v739, %v528
    %v923 = vmul.f32 %v739, %v529
    %v924 = vmul.f32 %v739, %v530
    %v925 = vmul.f32 %v739, %v531
    %v926 = vmul.f32 %v739, %v532
    %v927 = vmul.f32 %v739, %v533
    %v928 = vmul.f32 %v739, %v534
    %v929 = vmul.f32 %v739, %v535
    %v930 = vmul.f32 %v739, %v536
    %v931 = vmul.f32 %v739, %v537
    %v932 = vmul.f32 %v739, %v538
    %v933 = vmul.f32 %v739, %v539
    %v934 = vmul.f32 %v739, %v540
    %v935 = vmul.f32 %v739, %v541
    %v936 = vsel %vm543, %v346, %v740
    %v937 = vsel %vm544, %v347, %v741
    %v938 = vsel %vm545, %v348, %v742
    %v939 = vsel %vm546, %v349, %v743
    %v940 = vsel %vm547, %v350, %v744
    %v941 = vsel %vm548, %v351, %v745
    %v942 = vsel %vm549, %v352, %v746
    %v943 = vsel %vm550, %v353, %v747
    %v944 = vsel %vm551, %v354, %v748
    %v945 = vsel %vm552, %v355, %v749
    %v946 = vsel %vm553, %v356, %v750
    %v947 = vsel %vm554, %v357, %v751
    %v948 = vsel %vm555, %v358, %v752
    %v949 = vsel %vm556, %v359, %v753
    %v950 = vsel %vm557, %v360, %v754
    %v951 = vsel %vm558, %v361, %v755
    %v952 = vsel %vm559, %v362, %v756
    %v953 = vsel %vm560, %v363, %v757
    %v954 = vsel %vm561, %v364, %v758
    %v955 = vsel %vm562, %v365, %v759
    %v956 = vsel %vm563, %v366, %v760
    %v957 = vsel %vm564, %v367, %v761
    %v958 = vsel %vm565, %v368, %v762
    %v959 = vsel %vm566, %v369, %v763
    %v960 = vsel %vm567, %v370, %v764
    %v961 = vsel %vm568, %v371, %v765
    %v962 = vsel %vm569, %v372, %v766
    %v963 = vsel %vm570, %v373, %v767
    %v964 = vsel %vm571, %v374, %v768
    %v965 = vsel %vm572, %v375, %v769
    %v966 = vsel %vm573, %v376, %v770
    %v967 = vsel %vm574, %v377, %v771
    %v968 = vsel %vm575, %v378, %v772
    %v969 = vsel %vm576, %v379, %v773
    %v970 = vsel %vm577, %v380, %v774
    %v971 = vsel %vm578, %v381, %v775
    %v972 = vsel %vm579, %v382, %v776
    %v973 = vsel %vm580, %v383, %v777
    %v974 = vsel %vm581, %v384, %v778
    %v975 = vsel %vm582, %v385, %v779
    %v976 = vsel %vm583, %v386, %v780
    %v977 = vsel %vm584, %v387, %v781
    %v978 = vsel %vm585, %v388, %v782
    %v979 = vsel %vm586, %v389, %v783
    %v980 = vsel %vm587, %v390, %v784
    %v981 = vsel %vm588, %v391, %v785
    %v982 = vsel %vm589, %v392, %v786
    %v983 = vsel %vm590, %v393, %v787
    %v984 = vsel %vm591, %v394, %v788
    %v985 = vsel %vm592, %v395, %v789
    %v986 = vsel %vm593, %v396, %v790
    %v987 = vsel %vm594, %v397, %v791
    %v988 = vsel %vm595, %v398, %v792
    %v989 = vsel %vm596, %v399, %v793
    %v990 = vsel %vm597, %v400, %v794
    %v991 = vsel %vm598, %v401, %v795
    %v992 = vsel %vm599, %v402, %v796
    %v993 = vsel %vm600, %v403, %v797
    %v994 = vsel %vm601, %v404, %v798
    %v995 = vsel %vm602, %v405, %v799
    %v996 = vsel %vm603, %v406, %v800
    %v997 = vsel %vm604, %v407, %v801
    %v998 = vsel %vm605, %v408, %v802
    %v999 = vsel %vm606, %v409, %v803
    %v1000 = vsel %vm607, %v410, %v804
    %v1001 = vsel %vm608, %v411, %v805
    %v1002 = vsel %vm609, %v412, %v806
    %v1003 = vsel %vm610, %v413, %v807
    %v1004 = vsel %vm611, %v414, %v808
    %v1005 = vsel %vm612, %v415, %v809
    %v1006 = vsel %vm613, %v416, %v810
    %v1007 = vsel %vm614, %v417, %v811
    %v1008 = vsel %vm615, %v418, %v812
    %v1009 = vsel %vm616, %v419, %v813
    %v1010 = vsel %vm617, %v420, %v814
    %v1011 = vsel %vm618, %v421, %v815
    %v1012 = vsel %vm619, %v422, %v816
    %v1013 = vsel %vm620, %v423, %v817
    %v1014 = vsel %vm621, %v424, %v818
    %v1015 = vsel %vm622, %v425, %v819
    %v1016 = vsel %vm623, %v426, %v820
    %v1017 = vsel %vm624, %v427, %v821
    %v1018 = vsel %vm625, %v428, %v822
    %v1019 = vsel %vm626, %v429, %v823
    %v1020 = vsel %vm627, %v430, %v824
    %v1021 = vsel %vm628, %v431, %v825
    %v1022 = vsel %vm629, %v432, %v826
    %v1023 = vsel %vm630, %v433, %v827
    %v1024 = vsel %vm631, %v434, %v828
    %v1025 = vsel %vm632, %v435, %v829
    %v1026 = vsel %vm633, %v436, %v830
    %v1027 = vsel %vm634, %v437, %v831
    %v1028 = vsel %vm635, %v438, %v832
    %v1029 = vsel %vm636, %v439, %v833
    %v1030 = vsel %vm637, %v440, %v834
    %v1031 = vsel %vm638, %v441, %v835
    %v1032 = vsel %vm639, %v442, %v836
    %v1033 = vsel %vm640, %v443, %v837
    %v1034 = vsel %vm641, %v444, %v838
    %v1035 = vsel %vm642, %v445, %v839
    %v1036 = vsel %vm643, %v446, %v840
    %v1037 = vsel %vm644, %v447, %v841
    %v1038 = vsel %vm645, %v448, %v842
    %v1039 = vsel %vm646, %v449, %v843
    %v1040 = vsel %vm647, %v450, %v844
    %v1041 = vsel %vm648, %v451, %v845
    %v1042 = vsel %vm649, %v452, %v846
    %v1043 = vsel %vm650, %v453, %v847
    %v1044 = vsel %vm651, %v454, %v848
    %v1045 = vsel %vm652, %v455, %v849
    %v1046 = vsel %vm653, %v456, %v850
    %v1047 = vsel %vm654, %v457, %v851
    %v1048 = vsel %vm655, %v458, %v852
    %v1049 = vsel %vm656, %v459, %v853
    %v1050 = vsel %vm657, %v460, %v854
    %v1051 = vsel %vm658, %v461, %v855
    %v1052 = vsel %vm659, %v462, %v856
    %v1053 = vsel %vm660, %v463, %v857
    %v1054 = vsel %vm661, %v464, %v858
    %v1055 = vsel %vm662, %v465, %v859
    %v1056 = vsel %vm663, %v466, %v860
    %v1057 = vsel %vm664, %v467, %v861
    %v1058 = vsel %vm665, %v468, %v862
    %v1059 = vsel %vm666, %v469, %v863
    %v1060 = vsel %vm667, %v470, %v864
    %v1061 = vsel %vm668, %v471, %v865
    %v1062 = vsel %vm669, %v472, %v866
    %v1063 = vsel %vm670, %v473, %v867
    %v1064 = vsel %vm671, %v474, %v868
    %v1065 = vsel %vm672, %v475, %v869
    %v1066 = vsel %vm673, %v476, %v870
    %v1067 = vsel %vm674, %v477, %v871
    %v1068 = vsel %vm675, %v478, %v872
    %v1069 = vsel %vm676, %v479, %v873
    %v1070 = vsel %vm677, %v480, %v874
    %v1071 = vsel %vm678, %v481, %v875
    %v1072 = vsel %vm679, %v482, %v876
    %v1073 = vsel %vm680, %v483, %v877
    %v1074 = vsel %vm681, %v484, %v878
    %v1075 = vsel %vm682, %v485, %v879
    %v1076 = vsel %vm683, %v486, %v880
    %v1077 = vsel %vm684, %v487, %v881
    %v1078 = vsel %vm685, %v488, %v882
    %v1079 = vsel %vm686, %v489, %v883
    %v1080 = vsel %vm687, %v490, %v884
    %v1081 = vsel %vm688, %v491, %v885
    %v1082 = vsel %vm689, %v492, %v886
    %v1083 = vsel %vm690, %v493, %v887
    %v1084 = vsel %vm691, %v494, %v888
    %v1085 = vsel %vm692, %v495, %v889
    %v1086 = vsel %vm693, %v496, %v890
    %v1087 = vsel %vm694, %v497, %v891
    %v1088 = vsel %vm695, %v498, %v892
    %v1089 = vsel %vm696, %v499, %v893
    %v1090 = vsel %vm697, %v500, %v894
    %v1091 = vsel %vm698, %v501, %v895
    %v1092 = vsel %vm699, %v502, %v896
    %v1093 = vsel %vm700, %v503, %v897
    %v1094 = vsel %vm701, %v504, %v898
    %v1095 = vsel %vm702, %v505, %v899
    %v1096 = vsel %vm703, %v506, %v900
    %v1097 = vsel %vm704, %v507, %v901
    %v1098 = vsel %vm705, %v508, %v902
    %v1099 = vsel %vm706, %v509, %v903
    %v1100 = vsel %vm707, %v510, %v904
    %v1101 = vsel %vm708, %v511, %v905
    %v1102 = vsel %vm709, %v512, %v906
    %v1103 = vsel %vm710, %v513, %v907
    %v1104 = vsel %vm711, %v514, %v908
    %v1105 = vsel %vm712, %v515, %v909
    %v1106 = vsel %vm713, %v516, %v910
    %v1107 = vsel %vm714, %v517, %v911
    %v1108 = vsel %vm715, %v518, %v912
    %v1109 = vsel %vm716, %v519, %v913
    %v1110 = vsel %vm717, %v520, %v914
    %v1111 = vsel %vm718, %v521, %v915
    %v1112 = vsel %vm719, %v522, %v916
    %v1113 = vsel %vm720, %v523, %v917
    %v1114 = vsel %vm721, %v524, %v918
    %v1115 = vsel %vm722, %v525, %v919
    %v1116 = vsel %vm723, %v526, %v920
    %v1117 = vsel %vm724, %v527, %v921
    %v1118 = vsel %vm725, %v528, %v922
    %v1119 = vsel %vm726, %v529, %v923
    %v1120 = vsel %vm727, %v530, %v924
    %v1121 = vsel %vm728, %v531, %v925
    %v1122 = vsel %vm729, %v532, %v926
    %v1123 = vsel %vm730, %v533, %v927
    %v1124 = vsel %vm731, %v534, %v928
    %v1125 = vsel %vm732, %v535, %v929
    %v1126 = vsel %vm733, %v536, %v930
    %v1127 = vsel %vm734, %v537, %v931
    %v1128 = vsel %vm735, %v538, %v932
    %v1129 = vsel %vm736, %v539, %v933
    %v1130 = vsel %vm737, %v540, %v934
    %v1131 = vsel %vm738, %v541, %v935
    %v1132 = vld [vmem:[#allocation11] sm:$0xff]
    %v1133 = vld [vmem:[#allocation11 + $0x8] sm:$0xff]
    %v1134 = vld [vmem:[#allocation11 + $0x10] sm:$0xff]
    %v1135 = vld [vmem:[#allocation11 + $0x18] sm:$0xff]
    %v1136 = vld [vmem:[#allocation11 + $0x20] sm:$0xff]
    %v1137 = vld [vmem:[#allocation11 + $0x28] sm:$0xff]
    %v1138 = vld [vmem:[#allocation11 + $0x30] sm:$0xff]
    %v1139 = vld [vmem:[#allocation11 + $0x38] sm:$0xff]
    %v1140 = vld [vmem:[#allocation11 + $0x40] sm:$0xff]
    %v1141 = vld [vmem:[#allocation11 + $0x48] sm:$0xff]
    %v1142 = vld [vmem:[#allocation11 + $0x50] sm:$0xff]
    %v1143 = vld [vmem:[#allocation11 + $0x58] sm:$0xff]
    %v1144 = vld [vmem:[#allocation11 + $0x60] sm:$0xff]
    %v1145 = vld [vmem:[#allocation11 + $0x68] sm:$0xff]
    %v1146 = vld [vmem:[#allocation11 + $0x70] sm:$0xff]
    %v1147 = vld [vmem:[#allocation11 + $0x78] sm:$0xff]
    %v1148 = vld [vmem:[%s6] sm:$0x1]
    %v1150 = vlaneseq
    %v1151 = vshrl.u32 %v1150, 7
    %v1152 = vsub.s32 0, %v1151
    %v1153 = vrot.slane %v1148, %v1152
    %1155 = vmatprep.subr.mxu0 0.0
    %1156 = vmatpush1.msra.mxu0 %v1147
    %1157 = vmatprep.subr.mxu0 0.0
    %1158 = vmatpush1.msra.mxu0 %v1146
    %1159 = vmatprep.subr.mxu0 0.0
    %1160 = vmatpush1.msra.mxu0 %v1145
    %1161 = vmatprep.subr.mxu0 0.0
    %1162 = vmatpush1.msra.mxu0 %v1144
    %1163 = vmatprep.subr.mxu0 0.0
    %1164 = vmatpush1.msra.mxu0 %v1143
    %1165 = vmatprep.subr.mxu0 0.0
    %1166 = vmatpush1.msra.mxu0 %v1142
    %1167 = vmatprep.subr.mxu0 0.0
    %1168 = vmatpush1.msra.mxu0 %v1141
    %1169 = vmatprep.subr.mxu0 0.0
    %1170 = vmatpush1.msra.mxu0 %v1140
    %1171 = vmatprep.subr.mxu0 0.0
    %1172 = vmatpush1.msra.mxu0 %v1139
    %1173 = vmatprep.subr.mxu0 0.0
    %1174 = vmatpush1.msra.mxu0 %v1138
    %1175 = vmatprep.subr.mxu0 0.0
    %1176 = vmatpush1.msra.mxu0 %v1137
    %1177 = vmatprep.subr.mxu0 0.0
    %1178 = vmatpush1.msra.mxu0 %v1136
    %1179 = vmatprep.subr.mxu0 0.0
    %1180 = vmatpush1.msra.mxu0 %v1135
    %1181 = vmatprep.subr.mxu0 0.0
    %1182 = vmatpush1.msra.mxu0 %v1134
    %1183 = vmatprep.subr.mxu0 0.0
    %1184 = vmatpush1.msra.mxu0 %v1133
    %1185 = vmatprep.subr.mxu0 0.0
    %1186 = vmatpush1.msra.mxu0 %v1132
    %1187 = vmatprep.subr.mxu0 0.0
    %1188 = vmatpush2.msra.mxu0 0.0
    %1189 = vmatprep.subr.mxu0 0.0
    %1190 = vmatpush2.msra.mxu0 0.0
    %1191 = vmatprep.subr.mxu0 0.0
    %1192 = vmatpush2.msra.mxu0 0.0
    %1193 = vmatprep.subr.mxu0 0.0
    %1194 = vmatpush2.msra.mxu0 0.0
    %1195 = vmatprep.subr.mxu0 0.0
    %1196 = vmatpush2.msra.mxu0 0.0
    %1197 = vmatprep.subr.mxu0 0.0
    %1198 = vmatpush2.msra.mxu0 0.0
    %1199 = vmatprep.subr.mxu0 0.0
    %1200 = vmatpush2.msra.mxu0 0.0
    %1201 = vmatprep.subr.mxu0 0.0
    %1202 = vmatpush2.msra.mxu0 0.0
    %1203 = vmatprep.subr.mxu0 0.0
    %1204 = vmatpush2.msra.mxu0 0.0
    %1205 = vmatprep.subr.mxu0 0.0
    %1206 = vmatpush2.msra.mxu0 0.0
    %1207 = vmatprep.subr.mxu0 0.0
    %1208 = vmatpush2.msra.mxu0 0.0
    %1209 = vmatprep.subr.mxu0 0.0
    %1210 = vmatpush2.msra.mxu0 0.0
    %1211 = vmatprep.subr.mxu0 0.0
    %1212 = vmatpush2.msra.mxu0 0.0
    %1213 = vmatprep.subr.mxu0 0.0
    %1214 = vmatpush2.msra.mxu0 0.0
    %1215 = vmatprep.subr.mxu0 0.0
    %1216 = vmatpush2.msra.mxu0 0.0
    %1217 = vmatprep.subr.mxu0 0.0
    %1218 = vmatpush2.msra.mxu0 0.0
    %1219 = vmatprep.mubr.f32.mxu0 0.0
    %1220 = vmatmul.mubr.f32.gmra.mxu0 %v936
    %v1221 = vpop.f32.mrf.mxu0
    %v1222 = vadd.f32 %v1153, %v1221
    %v1223 = vpop.f32.mrf.mxu0
    %1224 = vmatprep.mubr.f32.mxu0 0.0
    %1225 = vmatmul.mubr.f32.gmra.mxu0 %v937
    %v1226 = vpop.f32.mrf.mxu0
    %v1227 = vadd.f32 %v1153, %v1226
    %v1228 = vpop.f32.mrf.mxu0
    %1229 = vmatprep.mubr.f32.mxu0 0.0
    %1230 = vmatmul.mubr.f32.gmra.mxu0 %v938
    %v1231 = vpop.f32.mrf.mxu0
    %v1232 = vadd.f32 %v1153, %v1231
    %v1233 = vpop.f32.mrf.mxu0
    %1234 = vmatprep.mubr.f32.mxu0 0.0
    %1235 = vmatmul.mubr.f32.gmra.mxu0 %v939
    %v1236 = vpop.f32.mrf.mxu0
    %v1237 = vadd.f32 %v1153, %v1236
    %v1238 = vpop.f32.mrf.mxu0
    %1239 = vmatprep.mubr.f32.mxu0 0.0
    %1240 = vmatmul.mubr.f32.gmra.mxu0 %v940
    %v1241 = vpop.f32.mrf.mxu0
    %v1242 = vadd.f32 %v1153, %v1241
    %v1243 = vpop.f32.mrf.mxu0
    %1244 = vmatprep.mubr.f32.mxu0 0.0
    %1245 = vmatmul.mubr.f32.gmra.mxu0 %v941
    %v1246 = vpop.f32.mrf.mxu0
    %v1247 = vadd.f32 %v1153, %v1246
    %v1248 = vpop.f32.mrf.mxu0
    %1249 = vmatprep.mubr.f32.mxu0 0.0
    %1250 = vmatmul.mubr.f32.gmra.mxu0 %v942
    %v1251 = vpop.f32.mrf.mxu0
    %v1252 = vadd.f32 %v1153, %v1251
    %v1253 = vpop.f32.mrf.mxu0
    %1254 = vmatprep.mubr.f32.mxu0 0.0
    %1255 = vmatmul.mubr.f32.gmra.mxu0 %v943
    %v1256 = vpop.f32.mrf.mxu0
    %v1257 = vadd.f32 %v1153, %v1256
    %v1258 = vpop.f32.mrf.mxu0
    %1259 = vmatprep.mubr.f32.mxu0 0.0
    %1260 = vmatmul.mubr.f32.gmra.mxu0 %v944
    %v1261 = vpop.f32.mrf.mxu0
    %v1262 = vadd.f32 %v1153, %v1261
    %v1263 = vpop.f32.mrf.mxu0
    %1264 = vmatprep.mubr.f32.mxu0 0.0
    %1265 = vmatmul.mubr.f32.gmra.mxu0 %v945
    %v1266 = vpop.f32.mrf.mxu0
    %v1267 = vadd.f32 %v1153, %v1266
    %v1268 = vpop.f32.mrf.mxu0
    %1269 = vmatprep.mubr.f32.mxu0 0.0
    %1270 = vmatmul.mubr.f32.gmra.mxu0 %v946
    %v1271 = vpop.f32.mrf.mxu0
    %v1272 = vadd.f32 %v1153, %v1271
    %v1273 = vpop.f32.mrf.mxu0
    %1274 = vmatprep.mubr.f32.mxu0 0.0
    %1275 = vmatmul.mubr.f32.gmra.mxu0 %v947
    %v1276 = vpop.f32.mrf.mxu0
    %v1277 = vadd.f32 %v1153, %v1276
    %v1278 = vpop.f32.mrf.mxu0
    %1279 = vmatprep.mubr.f32.mxu0 0.0
    %1280 = vmatmul.mubr.f32.gmra.mxu0 %v948
    %v1281 = vpop.f32.mrf.mxu0
    %v1282 = vadd.f32 %v1153, %v1281
    %v1283 = vpop.f32.mrf.mxu0
    %1284 = vmatprep.mubr.f32.mxu0 0.0
    %1285 = vmatmul.mubr.f32.gmra.mxu0 %v949
    %v1286 = vpop.f32.mrf.mxu0
    %v1287 = vadd.f32 %v1153, %v1286
    %v1288 = vpop.f32.mrf.mxu0
    %1289 = vmatprep.mubr.f32.mxu0 0.0
    %1290 = vmatmul.mubr.f32.gmra.mxu0 %v950
    %v1291 = vpop.f32.mrf.mxu0
    %v1292 = vadd.f32 %v1153, %v1291
    %v1293 = vpop.f32.mrf.mxu0
    %1294 = vmatprep.mubr.f32.mxu0 0.0
    %1295 = vmatmul.mubr.f32.gmra.mxu0 %v951
    %v1296 = vpop.f32.mrf.mxu0
    %v1297 = vadd.f32 %v1153, %v1296
    %v1298 = vpop.f32.mrf.mxu0
    %1299 = vmatprep.mubr.f32.mxu0 0.0
    %1300 = vmatmul.mubr.f32.gmra.mxu0 %v952
    %v1301 = vpop.f32.mrf.mxu0
    %v1302 = vadd.f32 %v1153, %v1301
    %v1303 = vpop.f32.mrf.mxu0
    %1304 = vmatprep.mubr.f32.mxu0 0.0
    %1305 = vmatmul.mubr.f32.gmra.mxu0 %v953
    %v1306 = vpop.f32.mrf.mxu0
    %v1307 = vadd.f32 %v1153, %v1306
    %v1308 = vpop.f32.mrf.mxu0
    %1309 = vmatprep.mubr.f32.mxu0 0.0
    %1310 = vmatmul.mubr.f32.gmra.mxu0 %v954
    %v1311 = vpop.f32.mrf.mxu0
    %v1312 = vadd.f32 %v1153, %v1311
    %v1313 = vpop.f32.mrf.mxu0
    %1314 = vmatprep.mubr.f32.mxu0 0.0
    %1315 = vmatmul.mubr.f32.gmra.mxu0 %v955
    %v1316 = vpop.f32.mrf.mxu0
    %v1317 = vadd.f32 %v1153, %v1316
    %v1318 = vpop.f32.mrf.mxu0
    %1319 = vmatprep.mubr.f32.mxu0 0.0
    %1320 = vmatmul.mubr.f32.gmra.mxu0 %v956
    %v1321 = vpop.f32.mrf.mxu0
    %v1322 = vadd.f32 %v1153, %v1321
    %v1323 = vpop.f32.mrf.mxu0
    %1324 = vmatprep.mubr.f32.mxu0 0.0
    %1325 = vmatmul.mubr.f32.gmra.mxu0 %v957
    %v1326 = vpop.f32.mrf.mxu0
    %v1327 = vadd.f32 %v1153, %v1326
    %v1328 = vpop.f32.mrf.mxu0
    %1329 = vmatprep.mubr.f32.mxu0 0.0
    %1330 = vmatmul.mubr.f32.gmra.mxu0 %v958
    %v1331 = vpop.f32.mrf.mxu0
    %v1332 = vadd.f32 %v1153, %v1331
    %v1333 = vpop.f32.mrf.mxu0
    %1334 = vmatprep.mubr.f32.mxu0 0.0
    %1335 = vmatmul.mubr.f32.gmra.mxu0 %v959
    %v1336 = vpop.f32.mrf.mxu0
    %v1337 = vadd.f32 %v1153, %v1336
    %v1338 = vpop.f32.mrf.mxu0
    %1339 = vmatprep.mubr.f32.mxu0 0.0
    %1340 = vmatmul.mubr.f32.gmra.mxu0 %v960
    %v1341 = vpop.f32.mrf.mxu0
    %v1342 = vadd.f32 %v1153, %v1341
    %v1343 = vpop.f32.mrf.mxu0
    %1344 = vmatprep.mubr.f32.mxu0 0.0
    %1345 = vmatmul.mubr.f32.gmra.mxu0 %v961
    %v1346 = vpop.f32.mrf.mxu0
    %v1347 = vadd.f32 %v1153, %v1346
    %v1348 = vpop.f32.mrf.mxu0
    %1349 = vmatprep.mubr.f32.mxu0 0.0
    %1350 = vmatmul.mubr.f32.gmra.mxu0 %v962
    %v1351 = vpop.f32.mrf.mxu0
    %v1352 = vadd.f32 %v1153, %v1351
    %v1353 = vpop.f32.mrf.mxu0
    %1354 = vmatprep.mubr.f32.mxu0 0.0
    %1355 = vmatmul.mubr.f32.gmra.mxu0 %v963
    %v1356 = vpop.f32.mrf.mxu0
    %v1357 = vadd.f32 %v1153, %v1356
    %v1358 = vpop.f32.mrf.mxu0
    %1359 = vmatprep.mubr.f32.mxu0 0.0
    %1360 = vmatmul.mubr.f32.gmra.mxu0 %v964
    %v1361 = vpop.f32.mrf.mxu0
    %v1362 = vadd.f32 %v1153, %v1361
    %v1363 = vpop.f32.mrf.mxu0
    %1364 = vmatprep.mubr.f32.mxu0 0.0
    %1365 = vmatmul.mubr.f32.gmra.mxu0 %v965
    %v1366 = vpop.f32.mrf.mxu0
    %v1367 = vadd.f32 %v1153, %v1366
    %v1368 = vpop.f32.mrf.mxu0
    %1369 = vmatprep.mubr.f32.mxu0 0.0
    %1370 = vmatmul.mubr.f32.gmra.mxu0 %v966
    %v1371 = vpop.f32.mrf.mxu0
    %v1372 = vadd.f32 %v1153, %v1371
    %v1373 = vpop.f32.mrf.mxu0
    %1374 = vmatprep.mubr.f32.mxu0 0.0
    %1375 = vmatmul.mubr.f32.gmra.mxu0 %v967
    %v1376 = vpop.f32.mrf.mxu0
    %v1377 = vadd.f32 %v1153, %v1376
    %v1378 = vpop.f32.mrf.mxu0
    %1379 = vmatprep.mubr.f32.mxu0 0.0
    %1380 = vmatmul.mubr.f32.gmra.mxu0 %v968
    %v1381 = vpop.f32.mrf.mxu0
    %v1382 = vadd.f32 %v1153, %v1381
    %v1383 = vpop.f32.mrf.mxu0
    %1384 = vmatprep.mubr.f32.mxu0 0.0
    %1385 = vmatmul.mubr.f32.gmra.mxu0 %v969
    %v1386 = vpop.f32.mrf.mxu0
    %v1387 = vadd.f32 %v1153, %v1386
    %v1388 = vpop.f32.mrf.mxu0
    %1389 = vmatprep.mubr.f32.mxu0 0.0
    %1390 = vmatmul.mubr.f32.gmra.mxu0 %v970
    %v1391 = vpop.f32.mrf.mxu0
    %v1392 = vadd.f32 %v1153, %v1391
    %v1393 = vpop.f32.mrf.mxu0
    %1394 = vmatprep.mubr.f32.mxu0 0.0
    %1395 = vmatmul.mubr.f32.gmra.mxu0 %v971
    %v1396 = vpop.f32.mrf.mxu0
    %v1397 = vadd.f32 %v1153, %v1396
    %v1398 = vpop.f32.mrf.mxu0
    %1399 = vmatprep.mubr.f32.mxu0 0.0
    %1400 = vmatmul.mubr.f32.gmra.mxu0 %v972
    %v1401 = vpop.f32.mrf.mxu0
    %v1402 = vadd.f32 %v1153, %v1401
    %v1403 = vpop.f32.mrf.mxu0
    %1404 = vmatprep.mubr.f32.mxu0 0.0
    %1405 = vmatmul.mubr.f32.gmra.mxu0 %v973
    %v1406 = vpop.f32.mrf.mxu0
    %v1407 = vadd.f32 %v1153, %v1406
    %v1408 = vpop.f32.mrf.mxu0
    %1409 = vmatprep.mubr.f32.mxu0 0.0
    %1410 = vmatmul.mubr.f32.gmra.mxu0 %v974
    %v1411 = vpop.f32.mrf.mxu0
    %v1412 = vadd.f32 %v1153, %v1411
    %v1413 = vpop.f32.mrf.mxu0
    %1414 = vmatprep.mubr.f32.mxu0 0.0
    %1415 = vmatmul.mubr.f32.gmra.mxu0 %v975
    %v1416 = vpop.f32.mrf.mxu0
    %v1417 = vadd.f32 %v1153, %v1416
    %v1418 = vpop.f32.mrf.mxu0
    %1419 = vmatprep.mubr.f32.mxu0 0.0
    %1420 = vmatmul.mubr.f32.gmra.mxu0 %v976
    %v1421 = vpop.f32.mrf.mxu0
    %v1422 = vadd.f32 %v1153, %v1421
    %v1423 = vpop.f32.mrf.mxu0
    %1424 = vmatprep.mubr.f32.mxu0 0.0
    %1425 = vmatmul.mubr.f32.gmra.mxu0 %v977
    %v1426 = vpop.f32.mrf.mxu0
    %v1427 = vadd.f32 %v1153, %v1426
    %v1428 = vpop.f32.mrf.mxu0
    %1429 = vmatprep.mubr.f32.mxu0 0.0
    %1430 = vmatmul.mubr.f32.gmra.mxu0 %v978
    %v1431 = vpop.f32.mrf.mxu0
    %v1432 = vadd.f32 %v1153, %v1431
    %v1433 = vpop.f32.mrf.mxu0
    %1434 = vmatprep.mubr.f32.mxu0 0.0
    %1435 = vmatmul.mubr.f32.gmra.mxu0 %v979
    %v1436 = vpop.f32.mrf.mxu0
    %v1437 = vadd.f32 %v1153, %v1436
    %v1438 = vpop.f32.mrf.mxu0
    %1439 = vmatprep.mubr.f32.mxu0 0.0
    %1440 = vmatmul.mubr.f32.gmra.mxu0 %v980
    %v1441 = vpop.f32.mrf.mxu0
    %v1442 = vadd.f32 %v1153, %v1441
    %v1443 = vpop.f32.mrf.mxu0
    %1444 = vmatprep.mubr.f32.mxu0 0.0
    %1445 = vmatmul.mubr.f32.gmra.mxu0 %v981
    %v1446 = vpop.f32.mrf.mxu0
    %v1447 = vadd.f32 %v1153, %v1446
    %v1448 = vpop.f32.mrf.mxu0
    %1449 = vmatprep.mubr.f32.mxu0 0.0
    %1450 = vmatmul.mubr.f32.gmra.mxu0 %v982
    %v1451 = vpop.f32.mrf.mxu0
    %v1452 = vadd.f32 %v1153, %v1451
    %v1453 = vpop.f32.mrf.mxu0
    %1454 = vmatprep.mubr.f32.mxu0 0.0
    %1455 = vmatmul.mubr.f32.gmra.mxu0 %v983
    %v1456 = vpop.f32.mrf.mxu0
    %v1457 = vadd.f32 %v1153, %v1456
    %v1458 = vpop.f32.mrf.mxu0
    %1459 = vmatprep.mubr.f32.mxu0 0.0
    %1460 = vmatmul.mubr.f32.gmra.mxu0 %v984
    %v1461 = vpop.f32.mrf.mxu0
    %v1462 = vadd.f32 %v1153, %v1461
    %v1463 = vpop.f32.mrf.mxu0
    %1464 = vmatprep.mubr.f32.mxu0 0.0
    %1465 = vmatmul.mubr.f32.gmra.mxu0 %v985
    %v1466 = vpop.f32.mrf.mxu0
    %v1467 = vadd.f32 %v1153, %v1466
    %v1468 = vpop.f32.mrf.mxu0
    %1469 = vmatprep.mubr.f32.mxu0 0.0
    %1470 = vmatmul.mubr.f32.gmra.mxu0 %v986
    %v1471 = vpop.f32.mrf.mxu0
    %v1472 = vadd.f32 %v1153, %v1471
    %v1473 = vpop.f32.mrf.mxu0
    %1474 = vmatprep.mubr.f32.mxu0 0.0
    %1475 = vmatmul.mubr.f32.gmra.mxu0 %v987
    %v1476 = vpop.f32.mrf.mxu0
    %v1477 = vadd.f32 %v1153, %v1476
    %v1478 = vpop.f32.mrf.mxu0
    %1479 = vmatprep.mubr.f32.mxu0 0.0
    %1480 = vmatmul.mubr.f32.gmra.mxu0 %v988
    %v1481 = vpop.f32.mrf.mxu0
    %v1482 = vadd.f32 %v1153, %v1481
    %v1483 = vpop.f32.mrf.mxu0
    %1484 = vmatprep.mubr.f32.mxu0 0.0
    %1485 = vmatmul.mubr.f32.gmra.mxu0 %v989
    %v1486 = vpop.f32.mrf.mxu0
    %v1487 = vadd.f32 %v1153, %v1486
    %v1488 = vpop.f32.mrf.mxu0
    %1489 = vmatprep.mubr.f32.mxu0 0.0
    %1490 = vmatmul.mubr.f32.gmra.mxu0 %v990
    %v1491 = vpop.f32.mrf.mxu0
    %v1492 = vadd.f32 %v1153, %v1491
    %v1493 = vpop.f32.mrf.mxu0
    %1494 = vmatprep.mubr.f32.mxu0 0.0
    %1495 = vmatmul.mubr.f32.gmra.mxu0 %v991
    %v1496 = vpop.f32.mrf.mxu0
    %v1497 = vadd.f32 %v1153, %v1496
    %v1498 = vpop.f32.mrf.mxu0
    %1499 = vmatprep.mubr.f32.mxu0 0.0
    %1500 = vmatmul.mubr.f32.gmra.mxu0 %v992
    %v1501 = vpop.f32.mrf.mxu0
    %v1502 = vadd.f32 %v1153, %v1501
    %v1503 = vpop.f32.mrf.mxu0
    %1504 = vmatprep.mubr.f32.mxu0 0.0
    %1505 = vmatmul.mubr.f32.gmra.mxu0 %v993
    %v1506 = vpop.f32.mrf.mxu0
    %v1507 = vadd.f32 %v1153, %v1506
    %v1508 = vpop.f32.mrf.mxu0
    %1509 = vmatprep.mubr.f32.mxu0 0.0
    %1510 = vmatmul.mubr.f32.gmra.mxu0 %v994
    %v1511 = vpop.f32.mrf.mxu0
    %v1512 = vadd.f32 %v1153, %v1511
    %v1513 = vpop.f32.mrf.mxu0
    %1514 = vmatprep.mubr.f32.mxu0 0.0
    %1515 = vmatmul.mubr.f32.gmra.mxu0 %v995
    %v1516 = vpop.f32.mrf.mxu0
    %v1517 = vadd.f32 %v1153, %v1516
    %v1518 = vpop.f32.mrf.mxu0
    %1519 = vmatprep.mubr.f32.mxu0 0.0
    %1520 = vmatmul.mubr.f32.gmra.mxu0 %v996
    %v1521 = vpop.f32.mrf.mxu0
    %v1522 = vadd.f32 %v1153, %v1521
    %v1523 = vpop.f32.mrf.mxu0
    %1524 = vmatprep.mubr.f32.mxu0 0.0
    %1525 = vmatmul.mubr.f32.gmra.mxu0 %v997
    %v1526 = vpop.f32.mrf.mxu0
    %v1527 = vadd.f32 %v1153, %v1526
    %v1528 = vpop.f32.mrf.mxu0
    %1529 = vmatprep.mubr.f32.mxu0 0.0
    %1530 = vmatmul.mubr.f32.gmra.mxu0 %v998
    %v1531 = vpop.f32.mrf.mxu0
    %v1532 = vadd.f32 %v1153, %v1531
    %v1533 = vpop.f32.mrf.mxu0
    %1534 = vmatprep.mubr.f32.mxu0 0.0
    %1535 = vmatmul.mubr.f32.gmra.mxu0 %v999
    %v1536 = vpop.f32.mrf.mxu0
    %v1537 = vadd.f32 %v1153, %v1536
    %v1538 = vpop.f32.mrf.mxu0
    %1539 = vmatprep.mubr.f32.mxu0 0.0
    %1540 = vmatmul.mubr.f32.gmra.mxu0 %v1000
    %v1541 = vpop.f32.mrf.mxu0
    %v1542 = vadd.f32 %v1153, %v1541
    %v1543 = vpop.f32.mrf.mxu0
    %1544 = vmatprep.mubr.f32.mxu0 0.0
    %1545 = vmatmul.mubr.f32.gmra.mxu0 %v1001
    %v1546 = vpop.f32.mrf.mxu0
    %v1547 = vadd.f32 %v1153, %v1546
    %v1548 = vpop.f32.mrf.mxu0
    %1549 = vmatprep.mubr.f32.mxu0 0.0
    %1550 = vmatmul.mubr.f32.gmra.mxu0 %v1002
    %v1551 = vpop.f32.mrf.mxu0
    %v1552 = vadd.f32 %v1153, %v1551
    %v1553 = vpop.f32.mrf.mxu0
    %1554 = vmatprep.mubr.f32.mxu0 0.0
    %1555 = vmatmul.mubr.f32.gmra.mxu0 %v1003
    %v1556 = vpop.f32.mrf.mxu0
    %v1557 = vadd.f32 %v1153, %v1556
    %v1558 = vpop.f32.mrf.mxu0
    %1559 = vmatprep.mubr.f32.mxu0 0.0
    %1560 = vmatmul.mubr.f32.gmra.mxu0 %v1004
    %v1561 = vpop.f32.mrf.mxu0
    %v1562 = vadd.f32 %v1153, %v1561
    %v1563 = vpop.f32.mrf.mxu0
    %1564 = vmatprep.mubr.f32.mxu0 0.0
    %1565 = vmatmul.mubr.f32.gmra.mxu0 %v1005
    %v1566 = vpop.f32.mrf.mxu0
    %v1567 = vadd.f32 %v1153, %v1566
    %v1568 = vpop.f32.mrf.mxu0
    %1569 = vmatprep.mubr.f32.mxu0 0.0
    %1570 = vmatmul.mubr.f32.gmra.mxu0 %v1006
    %v1571 = vpop.f32.mrf.mxu0
    %v1572 = vadd.f32 %v1153, %v1571
    %v1573 = vpop.f32.mrf.mxu0
    %1574 = vmatprep.mubr.f32.mxu0 0.0
    %1575 = vmatmul.mubr.f32.gmra.mxu0 %v1007
    %v1576 = vpop.f32.mrf.mxu0
    %v1577 = vadd.f32 %v1153, %v1576
    %v1578 = vpop.f32.mrf.mxu0
    %1579 = vmatprep.mubr.f32.mxu0 0.0
    %1580 = vmatmul.mubr.f32.gmra.mxu0 %v1008
    %v1581 = vpop.f32.mrf.mxu0
    %v1582 = vadd.f32 %v1153, %v1581
    %v1583 = vpop.f32.mrf.mxu0
    %1584 = vmatprep.mubr.f32.mxu0 0.0
    %1585 = vmatmul.mubr.f32.gmra.mxu0 %v1009
    %v1586 = vpop.f32.mrf.mxu0
    %v1587 = vadd.f32 %v1153, %v1586
    %v1588 = vpop.f32.mrf.mxu0
    %1589 = vmatprep.mubr.f32.mxu0 0.0
    %1590 = vmatmul.mubr.f32.gmra.mxu0 %v1010
    %v1591 = vpop.f32.mrf.mxu0
    %v1592 = vadd.f32 %v1153, %v1591
    %v1593 = vpop.f32.mrf.mxu0
    %1594 = vmatprep.mubr.f32.mxu0 0.0
    %1595 = vmatmul.mubr.f32.gmra.mxu0 %v1011
    %v1596 = vpop.f32.mrf.mxu0
    %v1597 = vadd.f32 %v1153, %v1596
    %v1598 = vpop.f32.mrf.mxu0
    %1599 = vmatprep.mubr.f32.mxu0 0.0
    %1600 = vmatmul.mubr.f32.gmra.mxu0 %v1012
    %v1601 = vpop.f32.mrf.mxu0
    %v1602 = vadd.f32 %v1153, %v1601
    %v1603 = vpop.f32.mrf.mxu0
    %1604 = vmatprep.mubr.f32.mxu0 0.0
    %1605 = vmatmul.mubr.f32.gmra.mxu0 %v1013
    %v1606 = vpop.f32.mrf.mxu0
    %v1607 = vadd.f32 %v1153, %v1606
    %v1608 = vpop.f32.mrf.mxu0
    %1609 = vmatprep.mubr.f32.mxu0 0.0
    %1610 = vmatmul.mubr.f32.gmra.mxu0 %v1014
    %v1611 = vpop.f32.mrf.mxu0
    %v1612 = vadd.f32 %v1153, %v1611
    %v1613 = vpop.f32.mrf.mxu0
    %1614 = vmatprep.mubr.f32.mxu0 0.0
    %1615 = vmatmul.mubr.f32.gmra.mxu0 %v1015
    %v1616 = vpop.f32.mrf.mxu0
    %v1617 = vadd.f32 %v1153, %v1616
    %v1618 = vpop.f32.mrf.mxu0
    %1619 = vmatprep.mubr.f32.mxu0 0.0
    %1620 = vmatmul.mubr.f32.gmra.mxu0 %v1016
    %v1621 = vpop.f32.mrf.mxu0
    %v1622 = vadd.f32 %v1153, %v1621
    %v1623 = vpop.f32.mrf.mxu0
    %1624 = vmatprep.mubr.f32.mxu0 0.0
    %1625 = vmatmul.mubr.f32.gmra.mxu0 %v1017
    %v1626 = vpop.f32.mrf.mxu0
    %v1627 = vadd.f32 %v1153, %v1626
    %v1628 = vpop.f32.mrf.mxu0
    %1629 = vmatprep.mubr.f32.mxu0 0.0
    %1630 = vmatmul.mubr.f32.gmra.mxu0 %v1018
    %v1631 = vpop.f32.mrf.mxu0
    %v1632 = vadd.f32 %v1153, %v1631
    %v1633 = vpop.f32.mrf.mxu0
    %1634 = vmatprep.mubr.f32.mxu0 0.0
    %1635 = vmatmul.mubr.f32.gmra.mxu0 %v1019
    %v1636 = vpop.f32.mrf.mxu0
    %v1637 = vadd.f32 %v1153, %v1636
    %v1638 = vpop.f32.mrf.mxu0
    %1639 = vmatprep.mubr.f32.mxu0 0.0
    %1640 = vmatmul.mubr.f32.gmra.mxu0 %v1020
    %v1641 = vpop.f32.mrf.mxu0
    %v1642 = vadd.f32 %v1153, %v1641
    %v1643 = vpop.f32.mrf.mxu0
    %1644 = vmatprep.mubr.f32.mxu0 0.0
    %1645 = vmatmul.mubr.f32.gmra.mxu0 %v1021
    %v1646 = vpop.f32.mrf.mxu0
    %v1647 = vadd.f32 %v1153, %v1646
    %v1648 = vpop.f32.mrf.mxu0
    %1649 = vmatprep.mubr.f32.mxu0 0.0
    %1650 = vmatmul.mubr.f32.gmra.mxu0 %v1022
    %v1651 = vpop.f32.mrf.mxu0
    %v1652 = vadd.f32 %v1153, %v1651
    %v1653 = vpop.f32.mrf.mxu0
    %1654 = vmatprep.mubr.f32.mxu0 0.0
    %1655 = vmatmul.mubr.f32.gmra.mxu0 %v1023
    %v1656 = vpop.f32.mrf.mxu0
    %v1657 = vadd.f32 %v1153, %v1656
    %v1658 = vpop.f32.mrf.mxu0
    %1659 = vmatprep.mubr.f32.mxu0 0.0
    %1660 = vmatmul.mubr.f32.gmra.mxu0 %v1024
    %v1661 = vpop.f32.mrf.mxu0
    %v1662 = vadd.f32 %v1153, %v1661
    %v1663 = vpop.f32.mrf.mxu0
    %1664 = vmatprep.mubr.f32.mxu0 0.0
    %1665 = vmatmul.mubr.f32.gmra.mxu0 %v1025
    %v1666 = vpop.f32.mrf.mxu0
    %v1667 = vadd.f32 %v1153, %v1666
    %v1668 = vpop.f32.mrf.mxu0
    %1669 = vmatprep.mubr.f32.mxu0 0.0
    %1670 = vmatmul.mubr.f32.gmra.mxu0 %v1026
    %v1671 = vpop.f32.mrf.mxu0
    %v1672 = vadd.f32 %v1153, %v1671
    %v1673 = vpop.f32.mrf.mxu0
    %1674 = vmatprep.mubr.f32.mxu0 0.0
    %1675 = vmatmul.mubr.f32.gmra.mxu0 %v1027
    %v1676 = vpop.f32.mrf.mxu0
    %v1677 = vadd.f32 %v1153, %v1676
    %v1678 = vpop.f32.mrf.mxu0
    %1679 = vmatprep.mubr.f32.mxu0 0.0
    %1680 = vmatmul.mubr.f32.gmra.mxu0 %v1028
    %v1681 = vpop.f32.mrf.mxu0
    %v1682 = vadd.f32 %v1153, %v1681
    %v1683 = vpop.f32.mrf.mxu0
    %1684 = vmatprep.mubr.f32.mxu0 0.0
    %1685 = vmatmul.mubr.f32.gmra.mxu0 %v1029
    %v1686 = vpop.f32.mrf.mxu0
    %v1687 = vadd.f32 %v1153, %v1686
    %v1688 = vpop.f32.mrf.mxu0
    %1689 = vmatprep.mubr.f32.mxu0 0.0
    %1690 = vmatmul.mubr.f32.gmra.mxu0 %v1030
    %v1691 = vpop.f32.mrf.mxu0
    %v1692 = vadd.f32 %v1153, %v1691
    %v1693 = vpop.f32.mrf.mxu0
    %1694 = vmatprep.mubr.f32.mxu0 0.0
    %1695 = vmatmul.mubr.f32.gmra.mxu0 %v1031
    %v1696 = vpop.f32.mrf.mxu0
    %v1697 = vadd.f32 %v1153, %v1696
    %v1698 = vpop.f32.mrf.mxu0
    %1699 = vmatprep.mubr.f32.mxu0 0.0
    %1700 = vmatmul.mubr.f32.gmra.mxu0 %v1032
    %v1701 = vpop.f32.mrf.mxu0
    %v1702 = vadd.f32 %v1153, %v1701
    %v1703 = vpop.f32.mrf.mxu0
    %1704 = vmatprep.mubr.f32.mxu0 0.0
    %1705 = vmatmul.mubr.f32.gmra.mxu0 %v1033
    %v1706 = vpop.f32.mrf.mxu0
    %v1707 = vadd.f32 %v1153, %v1706
    %v1708 = vpop.f32.mrf.mxu0
    %1709 = vmatprep.mubr.f32.mxu0 0.0
    %1710 = vmatmul.mubr.f32.gmra.mxu0 %v1034
    %v1711 = vpop.f32.mrf.mxu0
    %v1712 = vadd.f32 %v1153, %v1711
    %v1713 = vpop.f32.mrf.mxu0
    %1714 = vmatprep.mubr.f32.mxu0 0.0
    %1715 = vmatmul.mubr.f32.gmra.mxu0 %v1035
    %v1716 = vpop.f32.mrf.mxu0
    %v1717 = vadd.f32 %v1153, %v1716
    %v1718 = vpop.f32.mrf.mxu0
    %1719 = vmatprep.mubr.f32.mxu0 0.0
    %1720 = vmatmul.mubr.f32.gmra.mxu0 %v1036
    %v1721 = vpop.f32.mrf.mxu0
    %v1722 = vadd.f32 %v1153, %v1721
    %v1723 = vpop.f32.mrf.mxu0
    %1724 = vmatprep.mubr.f32.mxu0 0.0
    %1725 = vmatmul.mubr.f32.gmra.mxu0 %v1037
    %v1726 = vpop.f32.mrf.mxu0
    %v1727 = vadd.f32 %v1153, %v1726
    %v1728 = vpop.f32.mrf.mxu0
    %1729 = vmatprep.mubr.f32.mxu0 0.0
    %1730 = vmatmul.mubr.f32.gmra.mxu0 %v1038
    %v1731 = vpop.f32.mrf.mxu0
    %v1732 = vadd.f32 %v1153, %v1731
    %v1733 = vpop.f32.mrf.mxu0
    %1734 = vmatprep.mubr.f32.mxu0 0.0
    %1735 = vmatmul.mubr.f32.gmra.mxu0 %v1039
    %v1736 = vpop.f32.mrf.mxu0
    %v1737 = vadd.f32 %v1153, %v1736
    %v1738 = vpop.f32.mrf.mxu0
    %1739 = vmatprep.mubr.f32.mxu0 0.0
    %1740 = vmatmul.mubr.f32.gmra.mxu0 %v1040
    %v1741 = vpop.f32.mrf.mxu0
    %v1742 = vadd.f32 %v1153, %v1741
    %v1743 = vpop.f32.mrf.mxu0
    %1744 = vmatprep.mubr.f32.mxu0 0.0
    %1745 = vmatmul.mubr.f32.gmra.mxu0 %v1041
    %v1746 = vpop.f32.mrf.mxu0
    %v1747 = vadd.f32 %v1153, %v1746
    %v1748 = vpop.f32.mrf.mxu0
    %1749 = vmatprep.mubr.f32.mxu0 0.0
    %1750 = vmatmul.mubr.f32.gmra.mxu0 %v1042
    %v1751 = vpop.f32.mrf.mxu0
    %v1752 = vadd.f32 %v1153, %v1751
    %v1753 = vpop.f32.mrf.mxu0
    %1754 = vmatprep.mubr.f32.mxu0 0.0
    %1755 = vmatmul.mubr.f32.gmra.mxu0 %v1043
    %v1756 = vpop.f32.mrf.mxu0
    %v1757 = vadd.f32 %v1153, %v1756
    %v1758 = vpop.f32.mrf.mxu0
    %1759 = vmatprep.mubr.f32.mxu0 0.0
    %1760 = vmatmul.mubr.f32.gmra.mxu0 %v1044
    %v1761 = vpop.f32.mrf.mxu0
    %v1762 = vadd.f32 %v1153, %v1761
    %v1763 = vpop.f32.mrf.mxu0
    %1764 = vmatprep.mubr.f32.mxu0 0.0
    %1765 = vmatmul.mubr.f32.gmra.mxu0 %v1045
    %v1766 = vpop.f32.mrf.mxu0
    %v1767 = vadd.f32 %v1153, %v1766
    %v1768 = vpop.f32.mrf.mxu0
    %1769 = vmatprep.mubr.f32.mxu0 0.0
    %1770 = vmatmul.mubr.f32.gmra.mxu0 %v1046
    %v1771 = vpop.f32.mrf.mxu0
    %v1772 = vadd.f32 %v1153, %v1771
    %v1773 = vpop.f32.mrf.mxu0
    %1774 = vmatprep.mubr.f32.mxu0 0.0
    %1775 = vmatmul.mubr.f32.gmra.mxu0 %v1047
    %v1776 = vpop.f32.mrf.mxu0
    %v1777 = vadd.f32 %v1153, %v1776
    %v1778 = vpop.f32.mrf.mxu0
    %1779 = vmatprep.mubr.f32.mxu0 0.0
    %1780 = vmatmul.mubr.f32.gmra.mxu0 %v1048
    %v1781 = vpop.f32.mrf.mxu0
    %v1782 = vadd.f32 %v1153, %v1781
    %v1783 = vpop.f32.mrf.mxu0
    %1784 = vmatprep.mubr.f32.mxu0 0.0
    %1785 = vmatmul.mubr.f32.gmra.mxu0 %v1049
    %v1786 = vpop.f32.mrf.mxu0
    %v1787 = vadd.f32 %v1153, %v1786
    %v1788 = vpop.f32.mrf.mxu0
    %1789 = vmatprep.mubr.f32.mxu0 0.0
    %1790 = vmatmul.mubr.f32.gmra.mxu0 %v1050
    %v1791 = vpop.f32.mrf.mxu0
    %v1792 = vadd.f32 %v1153, %v1791
    %v1793 = vpop.f32.mrf.mxu0
    %1794 = vmatprep.mubr.f32.mxu0 0.0
    %1795 = vmatmul.mubr.f32.gmra.mxu0 %v1051
    %v1796 = vpop.f32.mrf.mxu0
    %v1797 = vadd.f32 %v1153, %v1796
    %v1798 = vpop.f32.mrf.mxu0
    %1799 = vmatprep.mubr.f32.mxu0 0.0
    %1800 = vmatmul.mubr.f32.gmra.mxu0 %v1052
    %v1801 = vpop.f32.mrf.mxu0
    %v1802 = vadd.f32 %v1153, %v1801
    %v1803 = vpop.f32.mrf.mxu0
    %1804 = vmatprep.mubr.f32.mxu0 0.0
    %1805 = vmatmul.mubr.f32.gmra.mxu0 %v1053
    %v1806 = vpop.f32.mrf.mxu0
    %v1807 = vadd.f32 %v1153, %v1806
    %v1808 = vpop.f32.mrf.mxu0
    %1809 = vmatprep.mubr.f32.mxu0 0.0
    %1810 = vmatmul.mubr.f32.gmra.mxu0 %v1054
    %v1811 = vpop.f32.mrf.mxu0
    %v1812 = vadd.f32 %v1153, %v1811
    %v1813 = vpop.f32.mrf.mxu0
    %1814 = vmatprep.mubr.f32.mxu0 0.0
    %1815 = vmatmul.mubr.f32.gmra.mxu0 %v1055
    %v1816 = vpop.f32.mrf.mxu0
    %v1817 = vadd.f32 %v1153, %v1816
    %v1818 = vpop.f32.mrf.mxu0
    %1819 = vmatprep.mubr.f32.mxu0 0.0
    %1820 = vmatmul.mubr.f32.gmra.mxu0 %v1056
    %v1821 = vpop.f32.mrf.mxu0
    %v1822 = vadd.f32 %v1153, %v1821
    %v1823 = vpop.f32.mrf.mxu0
    %1824 = vmatprep.mubr.f32.mxu0 0.0
    %1825 = vmatmul.mubr.f32.gmra.mxu0 %v1057
    %v1826 = vpop.f32.mrf.mxu0
    %v1827 = vadd.f32 %v1153, %v1826
    %v1828 = vpop.f32.mrf.mxu0
    %1829 = vmatprep.mubr.f32.mxu0 0.0
    %1830 = vmatmul.mubr.f32.gmra.mxu0 %v1058
    %v1831 = vpop.f32.mrf.mxu0
    %v1832 = vadd.f32 %v1153, %v1831
    %v1833 = vpop.f32.mrf.mxu0
    %1834 = vmatprep.mubr.f32.mxu0 0.0
    %1835 = vmatmul.mubr.f32.gmra.mxu0 %v1059
    %v1836 = vpop.f32.mrf.mxu0
    %v1837 = vadd.f32 %v1153, %v1836
    %v1838 = vpop.f32.mrf.mxu0
    %1839 = vmatprep.mubr.f32.mxu0 0.0
    %1840 = vmatmul.mubr.f32.gmra.mxu0 %v1060
    %v1841 = vpop.f32.mrf.mxu0
    %v1842 = vadd.f32 %v1153, %v1841
    %v1843 = vpop.f32.mrf.mxu0
    %1844 = vmatprep.mubr.f32.mxu0 0.0
    %1845 = vmatmul.mubr.f32.gmra.mxu0 %v1061
    %v1846 = vpop.f32.mrf.mxu0
    %v1847 = vadd.f32 %v1153, %v1846
    %v1848 = vpop.f32.mrf.mxu0
    %1849 = vmatprep.mubr.f32.mxu0 0.0
    %1850 = vmatmul.mubr.f32.gmra.mxu0 %v1062
    %v1851 = vpop.f32.mrf.mxu0
    %v1852 = vadd.f32 %v1153, %v1851
    %v1853 = vpop.f32.mrf.mxu0
    %1854 = vmatprep.mubr.f32.mxu0 0.0
    %1855 = vmatmul.mubr.f32.gmra.mxu0 %v1063
    %v1856 = vpop.f32.mrf.mxu0
    %v1857 = vadd.f32 %v1153, %v1856
    %v1858 = vpop.f32.mrf.mxu0
    %1859 = vmatprep.mubr.f32.mxu0 0.0
    %1860 = vmatmul.mubr.f32.gmra.mxu0 %v1064
    %v1861 = vpop.f32.mrf.mxu0
    %v1862 = vadd.f32 %v1153, %v1861
    %v1863 = vpop.f32.mrf.mxu0
    %1864 = vmatprep.mubr.f32.mxu0 0.0
    %1865 = vmatmul.mubr.f32.gmra.mxu0 %v1065
    %v1866 = vpop.f32.mrf.mxu0
    %v1867 = vadd.f32 %v1153, %v1866
    %v1868 = vpop.f32.mrf.mxu0
    %1869 = vmatprep.mubr.f32.mxu0 0.0
    %1870 = vmatmul.mubr.f32.gmra.mxu0 %v1066
    %v1871 = vpop.f32.mrf.mxu0
    %v1872 = vadd.f32 %v1153, %v1871
    %v1873 = vpop.f32.mrf.mxu0
    %1874 = vmatprep.mubr.f32.mxu0 0.0
    %1875 = vmatmul.mubr.f32.gmra.mxu0 %v1067
    %v1876 = vpop.f32.mrf.mxu0
    %v1877 = vadd.f32 %v1153, %v1876
    %v1878 = vpop.f32.mrf.mxu0
    %1879 = vmatprep.mubr.f32.mxu0 0.0
    %1880 = vmatmul.mubr.f32.gmra.mxu0 %v1068
    %v1881 = vpop.f32.mrf.mxu0
    %v1882 = vadd.f32 %v1153, %v1881
    %v1883 = vpop.f32.mrf.mxu0
    %1884 = vmatprep.mubr.f32.mxu0 0.0
    %1885 = vmatmul.mubr.f32.gmra.mxu0 %v1069
    %v1886 = vpop.f32.mrf.mxu0
    %v1887 = vadd.f32 %v1153, %v1886
    %v1888 = vpop.f32.mrf.mxu0
    %1889 = vmatprep.mubr.f32.mxu0 0.0
    %1890 = vmatmul.mubr.f32.gmra.mxu0 %v1070
    %v1891 = vpop.f32.mrf.mxu0
    %v1892 = vadd.f32 %v1153, %v1891
    %v1893 = vpop.f32.mrf.mxu0
    %1894 = vmatprep.mubr.f32.mxu0 0.0
    %1895 = vmatmul.mubr.f32.gmra.mxu0 %v1071
    %v1896 = vpop.f32.mrf.mxu0
    %v1897 = vadd.f32 %v1153, %v1896
    %v1898 = vpop.f32.mrf.mxu0
    %1899 = vmatprep.mubr.f32.mxu0 0.0
    %1900 = vmatmul.mubr.f32.gmra.mxu0 %v1072
    %v1901 = vpop.f32.mrf.mxu0
    %v1902 = vadd.f32 %v1153, %v1901
    %v1903 = vpop.f32.mrf.mxu0
    %1904 = vmatprep.mubr.f32.mxu0 0.0
    %1905 = vmatmul.mubr.f32.gmra.mxu0 %v1073
    %v1906 = vpop.f32.mrf.mxu0
    %v1907 = vadd.f32 %v1153, %v1906
    %v1908 = vpop.f32.mrf.mxu0
    %1909 = vmatprep.mubr.f32.mxu0 0.0
    %1910 = vmatmul.mubr.f32.gmra.mxu0 %v1074
    %v1911 = vpop.f32.mrf.mxu0
    %v1912 = vadd.f32 %v1153, %v1911
    %v1913 = vpop.f32.mrf.mxu0
    %1914 = vmatprep.mubr.f32.mxu0 0.0
    %1915 = vmatmul.mubr.f32.gmra.mxu0 %v1075
    %v1916 = vpop.f32.mrf.mxu0
    %v1917 = vadd.f32 %v1153, %v1916
    %v1918 = vpop.f32.mrf.mxu0
    %1919 = vmatprep.mubr.f32.mxu0 0.0
    %1920 = vmatmul.mubr.f32.gmra.mxu0 %v1076
    %v1921 = vpop.f32.mrf.mxu0
    %v1922 = vadd.f32 %v1153, %v1921
    %v1923 = vpop.f32.mrf.mxu0
    %1924 = vmatprep.mubr.f32.mxu0 0.0
    %1925 = vmatmul.mubr.f32.gmra.mxu0 %v1077
    %v1926 = vpop.f32.mrf.mxu0
    %v1927 = vadd.f32 %v1153, %v1926
    %v1928 = vpop.f32.mrf.mxu0
    %1929 = vmatprep.mubr.f32.mxu0 0.0
    %1930 = vmatmul.mubr.f32.gmra.mxu0 %v1078
    %v1931 = vpop.f32.mrf.mxu0
    %v1932 = vadd.f32 %v1153, %v1931
    %v1933 = vpop.f32.mrf.mxu0
    %1934 = vmatprep.mubr.f32.mxu0 0.0
    %1935 = vmatmul.mubr.f32.gmra.mxu0 %v1079
    %v1936 = vpop.f32.mrf.mxu0
    %v1937 = vadd.f32 %v1153, %v1936
    %v1938 = vpop.f32.mrf.mxu0
    %1939 = vmatprep.mubr.f32.mxu0 0.0
    %1940 = vmatmul.mubr.f32.gmra.mxu0 %v1080
    %v1941 = vpop.f32.mrf.mxu0
    %v1942 = vadd.f32 %v1153, %v1941
    %v1943 = vpop.f32.mrf.mxu0
    %1944 = vmatprep.mubr.f32.mxu0 0.0
    %1945 = vmatmul.mubr.f32.gmra.mxu0 %v1081
    %v1946 = vpop.f32.mrf.mxu0
    %v1947 = vadd.f32 %v1153, %v1946
    %v1948 = vpop.f32.mrf.mxu0
    %1949 = vmatprep.mubr.f32.mxu0 0.0
    %1950 = vmatmul.mubr.f32.gmra.mxu0 %v1082
    %v1951 = vpop.f32.mrf.mxu0
    %v1952 = vadd.f32 %v1153, %v1951
    %v1953 = vpop.f32.mrf.mxu0
    %1954 = vmatprep.mubr.f32.mxu0 0.0
    %1955 = vmatmul.mubr.f32.gmra.mxu0 %v1083
    %v1956 = vpop.f32.mrf.mxu0
    %v1957 = vadd.f32 %v1153, %v1956
    %v1958 = vpop.f32.mrf.mxu0
    %1959 = vmatprep.mubr.f32.mxu0 0.0
    %1960 = vmatmul.mubr.f32.gmra.mxu0 %v1084
    %v1961 = vpop.f32.mrf.mxu0
    %v1962 = vadd.f32 %v1153, %v1961
    %v1963 = vpop.f32.mrf.mxu0
    %1964 = vmatprep.mubr.f32.mxu0 0.0
    %1965 = vmatmul.mubr.f32.gmra.mxu0 %v1085
    %v1966 = vpop.f32.mrf.mxu0
    %v1967 = vadd.f32 %v1153, %v1966
    %v1968 = vpop.f32.mrf.mxu0
    %1969 = vmatprep.mubr.f32.mxu0 0.0
    %1970 = vmatmul.mubr.f32.gmra.mxu0 %v1086
    %v1971 = vpop.f32.mrf.mxu0
    %v1972 = vadd.f32 %v1153, %v1971
    %v1973 = vpop.f32.mrf.mxu0
    %1974 = vmatprep.mubr.f32.mxu0 0.0
    %1975 = vmatmul.mubr.f32.gmra.mxu0 %v1087
    %v1976 = vpop.f32.mrf.mxu0
    %v1977 = vadd.f32 %v1153, %v1976
    %v1978 = vpop.f32.mrf.mxu0
    %1979 = vmatprep.mubr.f32.mxu0 0.0
    %1980 = vmatmul.mubr.f32.gmra.mxu0 %v1088
    %v1981 = vpop.f32.mrf.mxu0
    %v1982 = vadd.f32 %v1153, %v1981
    %v1983 = vpop.f32.mrf.mxu0
    %1984 = vmatprep.mubr.f32.mxu0 0.0
    %1985 = vmatmul.mubr.f32.gmra.mxu0 %v1089
    %v1986 = vpop.f32.mrf.mxu0
    %v1987 = vadd.f32 %v1153, %v1986
    %v1988 = vpop.f32.mrf.mxu0
    %1989 = vmatprep.mubr.f32.mxu0 0.0
    %1990 = vmatmul.mubr.f32.gmra.mxu0 %v1090
    %v1991 = vpop.f32.mrf.mxu0
    %v1992 = vadd.f32 %v1153, %v1991
    %v1993 = vpop.f32.mrf.mxu0
    %1994 = vmatprep.mubr.f32.mxu0 0.0
    %1995 = vmatmul.mubr.f32.gmra.mxu0 %v1091
    %v1996 = vpop.f32.mrf.mxu0
    %v1997 = vadd.f32 %v1153, %v1996
    %v1998 = vpop.f32.mrf.mxu0
    %1999 = vmatprep.mubr.f32.mxu0 0.0
    %2000 = vmatmul.mubr.f32.gmra.mxu0 %v1092
    %v2001 = vpop.f32.mrf.mxu0
    %v2002 = vadd.f32 %v1153, %v2001
    %v2003 = vpop.f32.mrf.mxu0
    %2004 = vmatprep.mubr.f32.mxu0 0.0
    %2005 = vmatmul.mubr.f32.gmra.mxu0 %v1093
    %v2006 = vpop.f32.mrf.mxu0
    %v2007 = vadd.f32 %v1153, %v2006
    %v2008 = vpop.f32.mrf.mxu0
    %2009 = vmatprep.mubr.f32.mxu0 0.0
    %2010 = vmatmul.mubr.f32.gmra.mxu0 %v1094
    %v2011 = vpop.f32.mrf.mxu0
    %v2012 = vadd.f32 %v1153, %v2011
    %v2013 = vpop.f32.mrf.mxu0
    %2014 = vmatprep.mubr.f32.mxu0 0.0
    %2015 = vmatmul.mubr.f32.gmra.mxu0 %v1095
    %v2016 = vpop.f32.mrf.mxu0
    %v2017 = vadd.f32 %v1153, %v2016
    %v2018 = vpop.f32.mrf.mxu0
    %2019 = vmatprep.mubr.f32.mxu0 0.0
    %2020 = vmatmul.mubr.f32.gmra.mxu0 %v1096
    %v2021 = vpop.f32.mrf.mxu0
    %v2022 = vadd.f32 %v1153, %v2021
    %v2023 = vpop.f32.mrf.mxu0
    %2024 = vmatprep.mubr.f32.mxu0 0.0
    %2025 = vmatmul.mubr.f32.gmra.mxu0 %v1097
    %v2026 = vpop.f32.mrf.mxu0
    %v2027 = vadd.f32 %v1153, %v2026
    %v2028 = vpop.f32.mrf.mxu0
    %2029 = vmatprep.mubr.f32.mxu0 0.0
    %2030 = vmatmul.mubr.f32.gmra.mxu0 %v1098
    %v2031 = vpop.f32.mrf.mxu0
    %v2032 = vadd.f32 %v1153, %v2031
    %v2033 = vpop.f32.mrf.mxu0
    %2034 = vmatprep.mubr.f32.mxu0 0.0
    %2035 = vmatmul.mubr.f32.gmra.mxu0 %v1099
    %v2036 = vpop.f32.mrf.mxu0
    %v2037 = vadd.f32 %v1153, %v2036
    %v2038 = vpop.f32.mrf.mxu0
    %2039 = vmatprep.mubr.f32.mxu0 0.0
    %2040 = vmatmul.mubr.f32.gmra.mxu0 %v1100
    %v2041 = vpop.f32.mrf.mxu0
    %v2042 = vadd.f32 %v1153, %v2041
    %v2043 = vpop.f32.mrf.mxu0
    %2044 = vmatprep.mubr.f32.mxu0 0.0
    %2045 = vmatmul.mubr.f32.gmra.mxu0 %v1101
    %v2046 = vpop.f32.mrf.mxu0
    %v2047 = vadd.f32 %v1153, %v2046
    %v2048 = vpop.f32.mrf.mxu0
    %2049 = vmatprep.mubr.f32.mxu0 0.0
    %2050 = vmatmul.mubr.f32.gmra.mxu0 %v1102
    %v2051 = vpop.f32.mrf.mxu0
    %v2052 = vadd.f32 %v1153, %v2051
    %v2053 = vpop.f32.mrf.mxu0
    %2054 = vmatprep.mubr.f32.mxu0 0.0
    %2055 = vmatmul.mubr.f32.gmra.mxu0 %v1103
    %v2056 = vpop.f32.mrf.mxu0
    %v2057 = vadd.f32 %v1153, %v2056
    %v2058 = vpop.f32.mrf.mxu0
    %2059 = vmatprep.mubr.f32.mxu0 0.0
    %2060 = vmatmul.mubr.f32.gmra.mxu0 %v1104
    %v2061 = vpop.f32.mrf.mxu0
    %v2062 = vadd.f32 %v1153, %v2061
    %v2063 = vpop.f32.mrf.mxu0
    %2064 = vmatprep.mubr.f32.mxu0 0.0
    %2065 = vmatmul.mubr.f32.gmra.mxu0 %v1105
    %v2066 = vpop.f32.mrf.mxu0
    %v2067 = vadd.f32 %v1153, %v2066
    %v2068 = vpop.f32.mrf.mxu0
    %2069 = vmatprep.mubr.f32.mxu0 0.0
    %2070 = vmatmul.mubr.f32.gmra.mxu0 %v1106
    %v2071 = vpop.f32.mrf.mxu0
    %v2072 = vadd.f32 %v1153, %v2071
    %v2073 = vpop.f32.mrf.mxu0
    %2074 = vmatprep.mubr.f32.mxu0 0.0
    %2075 = vmatmul.mubr.f32.gmra.mxu0 %v1107
    %v2076 = vpop.f32.mrf.mxu0
    %v2077 = vadd.f32 %v1153, %v2076
    %v2078 = vpop.f32.mrf.mxu0
    %2079 = vmatprep.mubr.f32.mxu0 0.0
    %2080 = vmatmul.mubr.f32.gmra.mxu0 %v1108
    %v2081 = vpop.f32.mrf.mxu0
    %v2082 = vadd.f32 %v1153, %v2081
    %v2083 = vpop.f32.mrf.mxu0
    %2084 = vmatprep.mubr.f32.mxu0 0.0
    %2085 = vmatmul.mubr.f32.gmra.mxu0 %v1109
    %v2086 = vpop.f32.mrf.mxu0
    %v2087 = vadd.f32 %v1153, %v2086
    %v2088 = vpop.f32.mrf.mxu0
    %2089 = vmatprep.mubr.f32.mxu0 0.0
    %2090 = vmatmul.mubr.f32.gmra.mxu0 %v1110
    %v2091 = vpop.f32.mrf.mxu0
    %v2092 = vadd.f32 %v1153, %v2091
    %v2093 = vpop.f32.mrf.mxu0
    %2094 = vmatprep.mubr.f32.mxu0 0.0
    %2095 = vmatmul.mubr.f32.gmra.mxu0 %v1111
    %v2096 = vpop.f32.mrf.mxu0
    %v2097 = vadd.f32 %v1153, %v2096
    %v2098 = vpop.f32.mrf.mxu0
    %2099 = vmatprep.mubr.f32.mxu0 0.0
    %2100 = vmatmul.mubr.f32.gmra.mxu0 %v1112
    %v2101 = vpop.f32.mrf.mxu0
    %v2102 = vadd.f32 %v1153, %v2101
    %v2103 = vpop.f32.mrf.mxu0
    %2104 = vmatprep.mubr.f32.mxu0 0.0
    %2105 = vmatmul.mubr.f32.gmra.mxu0 %v1113
    %v2106 = vpop.f32.mrf.mxu0
    %v2107 = vadd.f32 %v1153, %v2106
    %v2108 = vpop.f32.mrf.mxu0
    %2109 = vmatprep.mubr.f32.mxu0 0.0
    %2110 = vmatmul.mubr.f32.gmra.mxu0 %v1114
    %v2111 = vpop.f32.mrf.mxu0
    %v2112 = vadd.f32 %v1153, %v2111
    %v2113 = vpop.f32.mrf.mxu0
    %2114 = vmatprep.mubr.f32.mxu0 0.0
    %2115 = vmatmul.mubr.f32.gmra.mxu0 %v1115
    %v2116 = vpop.f32.mrf.mxu0
    %v2117 = vadd.f32 %v1153, %v2116
    %v2118 = vpop.f32.mrf.mxu0
    %2119 = vmatprep.mubr.f32.mxu0 0.0
    %2120 = vmatmul.mubr.f32.gmra.mxu0 %v1116
    %v2121 = vpop.f32.mrf.mxu0
    %v2122 = vadd.f32 %v1153, %v2121
    %v2123 = vpop.f32.mrf.mxu0
    %2124 = vmatprep.mubr.f32.mxu0 0.0
    %2125 = vmatmul.mubr.f32.gmra.mxu0 %v1117
    %v2126 = vpop.f32.mrf.mxu0
    %v2127 = vadd.f32 %v1153, %v2126
    %v2128 = vpop.f32.mrf.mxu0
    %2129 = vmatprep.mubr.f32.mxu0 0.0
    %2130 = vmatmul.mubr.f32.gmra.mxu0 %v1118
    %v2131 = vpop.f32.mrf.mxu0
    %v2132 = vadd.f32 %v1153, %v2131
    %v2133 = vpop.f32.mrf.mxu0
    %2134 = vmatprep.mubr.f32.mxu0 0.0
    %2135 = vmatmul.mubr.f32.gmra.mxu0 %v1119
    %v2136 = vpop.f32.mrf.mxu0
    %v2137 = vadd.f32 %v1153, %v2136
    %v2138 = vpop.f32.mrf.mxu0
    %2139 = vmatprep.mubr.f32.mxu0 0.0
    %2140 = vmatmul.mubr.f32.gmra.mxu0 %v1120
    %v2141 = vpop.f32.mrf.mxu0
    %v2142 = vadd.f32 %v1153, %v2141
    %v2143 = vpop.f32.mrf.mxu0
    %2144 = vmatprep.mubr.f32.mxu0 0.0
    %2145 = vmatmul.mubr.f32.gmra.mxu0 %v1121
    %v2146 = vpop.f32.mrf.mxu0
    %v2147 = vadd.f32 %v1153, %v2146
    %v2148 = vpop.f32.mrf.mxu0
    %2149 = vmatprep.mubr.f32.mxu0 0.0
    %2150 = vmatmul.mubr.f32.gmra.mxu0 %v1122
    %v2151 = vpop.f32.mrf.mxu0
    %v2152 = vadd.f32 %v1153, %v2151
    %v2153 = vpop.f32.mrf.mxu0
    %2154 = vmatprep.mubr.f32.mxu0 0.0
    %2155 = vmatmul.mubr.f32.gmra.mxu0 %v1123
    %v2156 = vpop.f32.mrf.mxu0
    %v2157 = vadd.f32 %v1153, %v2156
    %v2158 = vpop.f32.mrf.mxu0
    %2159 = vmatprep.mubr.f32.mxu0 0.0
    %2160 = vmatmul.mubr.f32.gmra.mxu0 %v1124
    %v2161 = vpop.f32.mrf.mxu0
    %v2162 = vadd.f32 %v1153, %v2161
    %v2163 = vpop.f32.mrf.mxu0
    %2164 = vmatprep.mubr.f32.mxu0 0.0
    %2165 = vmatmul.mubr.f32.gmra.mxu0 %v1125
    %v2166 = vpop.f32.mrf.mxu0
    %v2167 = vadd.f32 %v1153, %v2166
    %v2168 = vpop.f32.mrf.mxu0
    %2169 = vmatprep.mubr.f32.mxu0 0.0
    %2170 = vmatmul.mubr.f32.gmra.mxu0 %v1126
    %v2171 = vpop.f32.mrf.mxu0
    %v2172 = vadd.f32 %v1153, %v2171
    %v2173 = vpop.f32.mrf.mxu0
    %2174 = vmatprep.mubr.f32.mxu0 0.0
    %2175 = vmatmul.mubr.f32.gmra.mxu0 %v1127
    %v2176 = vpop.f32.mrf.mxu0
    %v2177 = vadd.f32 %v1153, %v2176
    %v2178 = vpop.f32.mrf.mxu0
    %2179 = vmatprep.mubr.f32.mxu0 0.0
    %2180 = vmatmul.mubr.f32.gmra.mxu0 %v1128
    %v2181 = vpop.f32.mrf.mxu0
    %v2182 = vadd.f32 %v1153, %v2181
    %v2183 = vpop.f32.mrf.mxu0
    %2184 = vmatprep.mubr.f32.mxu0 0.0
    %2185 = vmatmul.mubr.f32.gmra.mxu0 %v1129
    %v2186 = vpop.f32.mrf.mxu0
    %v2187 = vadd.f32 %v1153, %v2186
    %v2188 = vpop.f32.mrf.mxu0
    %2189 = vmatprep.mubr.f32.mxu0 0.0
    %2190 = vmatmul.mubr.f32.gmra.mxu0 %v1130
    %v2191 = vpop.f32.mrf.mxu0
    %v2192 = vadd.f32 %v1153, %v2191
    %v2193 = vpop.f32.mrf.mxu0
    %2194 = vmatprep.mubr.f32.mxu0 0.0
    %2195 = vmatmul.mubr.f32.gmra.mxu0 %v1131
    %v2196 = vpop.f32.mrf.mxu0
    %v2197 = vadd.f32 %v1153, %v2196
    %v2198 = vpop.f32.mrf.mxu0
    %2199 = vdwg.mxu0
    %s2200 = sld [smem:[#allocation2 + $0x1]]
    %vm2201 = vcmp.gt.f32.partialorder %v1222, 0.0
    %vm2202 = vcmp.gt.f32.partialorder %v1227, 0.0
    %vm2203 = vcmp.gt.f32.partialorder %v1232, 0.0
    %vm2204 = vcmp.gt.f32.partialorder %v1237, 0.0
    %vm2205 = vcmp.gt.f32.partialorder %v1242, 0.0
    %vm2206 = vcmp.gt.f32.partialorder %v1247, 0.0
    %vm2207 = vcmp.gt.f32.partialorder %v1252, 0.0
    %vm2208 = vcmp.gt.f32.partialorder %v1257, 0.0
    %vm2209 = vcmp.gt.f32.partialorder %v1262, 0.0
    %vm2210 = vcmp.gt.f32.partialorder %v1267, 0.0
    %vm2211 = vcmp.gt.f32.partialorder %v1272, 0.0
    %vm2212 = vcmp.gt.f32.partialorder %v1277, 0.0
    %vm2213 = vcmp.gt.f32.partialorder %v1282, 0.0
    %vm2214 = vcmp.gt.f32.partialorder %v1287, 0.0
    %vm2215 = vcmp.gt.f32.partialorder %v1292, 0.0
    %vm2216 = vcmp.gt.f32.partialorder %v1297, 0.0
    %vm2217 = vcmp.gt.f32.partialorder %v1302, 0.0
    %vm2218 = vcmp.gt.f32.partialorder %v1307, 0.0
    %vm2219 = vcmp.gt.f32.partialorder %v1312, 0.0
    %vm2220 = vcmp.gt.f32.partialorder %v1317, 0.0
    %vm2221 = vcmp.gt.f32.partialorder %v1322, 0.0
    %vm2222 = vcmp.gt.f32.partialorder %v1327, 0.0
    %vm2223 = vcmp.gt.f32.partialorder %v1332, 0.0
    %vm2224 = vcmp.gt.f32.partialorder %v1337, 0.0
    %vm2225 = vcmp.gt.f32.partialorder %v1342, 0.0
    %vm2226 = vcmp.gt.f32.partialorder %v1347, 0.0
    %vm2227 = vcmp.gt.f32.partialorder %v1352, 0.0
    %vm2228 = vcmp.gt.f32.partialorder %v1357, 0.0
    %vm2229 = vcmp.gt.f32.partialorder %v1362, 0.0
    %vm2230 = vcmp.gt.f32.partialorder %v1367, 0.0
    %vm2231 = vcmp.gt.f32.partialorder %v1372, 0.0
    %vm2232 = vcmp.gt.f32.partialorder %v1377, 0.0
    %vm2233 = vcmp.gt.f32.partialorder %v1382, 0.0
    %vm2234 = vcmp.gt.f32.partialorder %v1387, 0.0
    %vm2235 = vcmp.gt.f32.partialorder %v1392, 0.0
    %vm2236 = vcmp.gt.f32.partialorder %v1397, 0.0
    %vm2237 = vcmp.gt.f32.partialorder %v1402, 0.0
    %vm2238 = vcmp.gt.f32.partialorder %v1407, 0.0
    %vm2239 = vcmp.gt.f32.partialorder %v1412, 0.0
    %vm2240 = vcmp.gt.f32.partialorder %v1417, 0.0
    %vm2241 = vcmp.gt.f32.partialorder %v1422, 0.0
    %vm2242 = vcmp.gt.f32.partialorder %v1427, 0.0
    %vm2243 = vcmp.gt.f32.partialorder %v1432, 0.0
    %vm2244 = vcmp.gt.f32.partialorder %v1437, 0.0
    %vm2245 = vcmp.gt.f32.partialorder %v1442, 0.0
    %vm2246 = vcmp.gt.f32.partialorder %v1447, 0.0
    %vm2247 = vcmp.gt.f32.partialorder %v1452, 0.0
    %vm2248 = vcmp.gt.f32.partialorder %v1457, 0.0
    %vm2249 = vcmp.gt.f32.partialorder %v1462, 0.0
    %vm2250 = vcmp.gt.f32.partialorder %v1467, 0.0
    %vm2251 = vcmp.gt.f32.partialorder %v1472, 0.0
    %vm2252 = vcmp.gt.f32.partialorder %v1477, 0.0
    %vm2253 = vcmp.gt.f32.partialorder %v1482, 0.0
    %vm2254 = vcmp.gt.f32.partialorder %v1487, 0.0
    %vm2255 = vcmp.gt.f32.partialorder %v1492, 0.0
    %vm2256 = vcmp.gt.f32.partialorder %v1497, 0.0
    %vm2257 = vcmp.gt.f32.partialorder %v1502, 0.0
    %vm2258 = vcmp.gt.f32.partialorder %v1507, 0.0
    %vm2259 = vcmp.gt.f32.partialorder %v1512, 0.0
    %vm2260 = vcmp.gt.f32.partialorder %v1517, 0.0
    %vm2261 = vcmp.gt.f32.partialorder %v1522, 0.0
    %vm2262 = vcmp.gt.f32.partialorder %v1527, 0.0
    %vm2263 = vcmp.gt.f32.partialorder %v1532, 0.0
    %vm2264 = vcmp.gt.f32.partialorder %v1537, 0.0
    %vm2265 = vcmp.gt.f32.partialorder %v1542, 0.0
    %vm2266 = vcmp.gt.f32.partialorder %v1547, 0.0
    %vm2267 = vcmp.gt.f32.partialorder %v1552, 0.0
    %vm2268 = vcmp.gt.f32.partialorder %v1557, 0.0
    %vm2269 = vcmp.gt.f32.partialorder %v1562, 0.0
    %vm2270 = vcmp.gt.f32.partialorder %v1567, 0.0
    %vm2271 = vcmp.gt.f32.partialorder %v1572, 0.0
    %vm2272 = vcmp.gt.f32.partialorder %v1577, 0.0
    %vm2273 = vcmp.gt.f32.partialorder %v1582, 0.0
    %vm2274 = vcmp.gt.f32.partialorder %v1587, 0.0
    %vm2275 = vcmp.gt.f32.partialorder %v1592, 0.0
    %vm2276 = vcmp.gt.f32.partialorder %v1597, 0.0
    %vm2277 = vcmp.gt.f32.partialorder %v1602, 0.0
    %vm2278 = vcmp.gt.f32.partialorder %v1607, 0.0
    %vm2279 = vcmp.gt.f32.partialorder %v1612, 0.0
    %vm2280 = vcmp.gt.f32.partialorder %v1617, 0.0
    %vm2281 = vcmp.gt.f32.partialorder %v1622, 0.0
    %vm2282 = vcmp.gt.f32.partialorder %v1627, 0.0
    %vm2283 = vcmp.gt.f32.partialorder %v1632, 0.0
    %vm2284 = vcmp.gt.f32.partialorder %v1637, 0.0
    %vm2285 = vcmp.gt.f32.partialorder %v1642, 0.0
    %vm2286 = vcmp.gt.f32.partialorder %v1647, 0.0
    %vm2287 = vcmp.gt.f32.partialorder %v1652, 0.0
    %vm2288 = vcmp.gt.f32.partialorder %v1657, 0.0
    %vm2289 = vcmp.gt.f32.partialorder %v1662, 0.0
    %vm2290 = vcmp.gt.f32.partialorder %v1667, 0.0
    %vm2291 = vcmp.gt.f32.partialorder %v1672, 0.0
    %vm2292 = vcmp.gt.f32.partialorder %v1677, 0.0
    %vm2293 = vcmp.gt.f32.partialorder %v1682, 0.0
    %vm2294 = vcmp.gt.f32.partialorder %v1687, 0.0
    %vm2295 = vcmp.gt.f32.partialorder %v1692, 0.0
    %vm2296 = vcmp.gt.f32.partialorder %v1697, 0.0
    %vm2297 = vcmp.gt.f32.partialorder %v1702, 0.0
    %vm2298 = vcmp.gt.f32.partialorder %v1707, 0.0
    %vm2299 = vcmp.gt.f32.partialorder %v1712, 0.0
    %vm2300 = vcmp.gt.f32.partialorder %v1717, 0.0
    %vm2301 = vcmp.gt.f32.partialorder %v1722, 0.0
    %vm2302 = vcmp.gt.f32.partialorder %v1727, 0.0
    %vm2303 = vcmp.gt.f32.partialorder %v1732, 0.0
    %vm2304 = vcmp.gt.f32.partialorder %v1737, 0.0
    %vm2305 = vcmp.gt.f32.partialorder %v1742, 0.0
    %vm2306 = vcmp.gt.f32.partialorder %v1747, 0.0
    %vm2307 = vcmp.gt.f32.partialorder %v1752, 0.0
    %vm2308 = vcmp.gt.f32.partialorder %v1757, 0.0
    %vm2309 = vcmp.gt.f32.partialorder %v1762, 0.0
    %vm2310 = vcmp.gt.f32.partialorder %v1767, 0.0
    %vm2311 = vcmp.gt.f32.partialorder %v1772, 0.0
    %vm2312 = vcmp.gt.f32.partialorder %v1777, 0.0
    %vm2313 = vcmp.gt.f32.partialorder %v1782, 0.0
    %vm2314 = vcmp.gt.f32.partialorder %v1787, 0.0
    %vm2315 = vcmp.gt.f32.partialorder %v1792, 0.0
    %vm2316 = vcmp.gt.f32.partialorder %v1797, 0.0
    %vm2317 = vcmp.gt.f32.partialorder %v1802, 0.0
    %vm2318 = vcmp.gt.f32.partialorder %v1807, 0.0
    %vm2319 = vcmp.gt.f32.partialorder %v1812, 0.0
    %vm2320 = vcmp.gt.f32.partialorder %v1817, 0.0
    %vm2321 = vcmp.gt.f32.partialorder %v1822, 0.0
    %vm2322 = vcmp.gt.f32.partialorder %v1827, 0.0
    %vm2323 = vcmp.gt.f32.partialorder %v1832, 0.0
    %vm2324 = vcmp.gt.f32.partialorder %v1837, 0.0
    %vm2325 = vcmp.gt.f32.partialorder %v1842, 0.0
    %vm2326 = vcmp.gt.f32.partialorder %v1847, 0.0
    %vm2327 = vcmp.gt.f32.partialorder %v1852, 0.0
    %vm2328 = vcmp.gt.f32.partialorder %v1857, 0.0
    %vm2329 = vcmp.gt.f32.partialorder %v1862, 0.0
    %vm2330 = vcmp.gt.f32.partialorder %v1867, 0.0
    %vm2331 = vcmp.gt.f32.partialorder %v1872, 0.0
    %vm2332 = vcmp.gt.f32.partialorder %v1877, 0.0
    %vm2333 = vcmp.gt.f32.partialorder %v1882, 0.0
    %vm2334 = vcmp.gt.f32.partialorder %v1887, 0.0
    %vm2335 = vcmp.gt.f32.partialorder %v1892, 0.0
    %vm2336 = vcmp.gt.f32.partialorder %v1897, 0.0
    %vm2337 = vcmp.gt.f32.partialorder %v1902, 0.0
    %vm2338 = vcmp.gt.f32.partialorder %v1907, 0.0
    %vm2339 = vcmp.gt.f32.partialorder %v1912, 0.0
    %vm2340 = vcmp.gt.f32.partialorder %v1917, 0.0
    %vm2341 = vcmp.gt.f32.partialorder %v1922, 0.0
    %vm2342 = vcmp.gt.f32.partialorder %v1927, 0.0
    %vm2343 = vcmp.gt.f32.partialorder %v1932, 0.0
    %vm2344 = vcmp.gt.f32.partialorder %v1937, 0.0
    %vm2345 = vcmp.gt.f32.partialorder %v1942, 0.0
    %vm2346 = vcmp.gt.f32.partialorder %v1947, 0.0
    %vm2347 = vcmp.gt.f32.partialorder %v1952, 0.0
    %vm2348 = vcmp.gt.f32.partialorder %v1957, 0.0
    %vm2349 = vcmp.gt.f32.partialorder %v1962, 0.0
    %vm2350 = vcmp.gt.f32.partialorder %v1967, 0.0
    %vm2351 = vcmp.gt.f32.partialorder %v1972, 0.0
    %vm2352 = vcmp.gt.f32.partialorder %v1977, 0.0
    %vm2353 = vcmp.gt.f32.partialorder %v1982, 0.0
    %vm2354 = vcmp.gt.f32.partialorder %v1987, 0.0
    %vm2355 = vcmp.gt.f32.partialorder %v1992, 0.0
    %vm2356 = vcmp.gt.f32.partialorder %v1997, 0.0
    %vm2357 = vcmp.gt.f32.partialorder %v2002, 0.0
    %vm2358 = vcmp.gt.f32.partialorder %v2007, 0.0
    %vm2359 = vcmp.gt.f32.partialorder %v2012, 0.0
    %vm2360 = vcmp.gt.f32.partialorder %v2017, 0.0
    %vm2361 = vcmp.gt.f32.partialorder %v2022, 0.0
    %vm2362 = vcmp.gt.f32.partialorder %v2027, 0.0
    %vm2363 = vcmp.gt.f32.partialorder %v2032, 0.0
    %vm2364 = vcmp.gt.f32.partialorder %v2037, 0.0
    %vm2365 = vcmp.gt.f32.partialorder %v2042, 0.0
    %vm2366 = vcmp.gt.f32.partialorder %v2047, 0.0
    %vm2367 = vcmp.gt.f32.partialorder %v2052, 0.0
    %vm2368 = vcmp.gt.f32.partialorder %v2057, 0.0
    %vm2369 = vcmp.gt.f32.partialorder %v2062, 0.0
    %vm2370 = vcmp.gt.f32.partialorder %v2067, 0.0
    %vm2371 = vcmp.gt.f32.partialorder %v2072, 0.0
    %vm2372 = vcmp.gt.f32.partialorder %v2077, 0.0
    %vm2373 = vcmp.gt.f32.partialorder %v2082, 0.0
    %vm2374 = vcmp.gt.f32.partialorder %v2087, 0.0
    %vm2375 = vcmp.gt.f32.partialorder %v2092, 0.0
    %vm2376 = vcmp.gt.f32.partialorder %v2097, 0.0
    %vm2377 = vcmp.gt.f32.partialorder %v2102, 0.0
    %vm2378 = vcmp.gt.f32.partialorder %v2107, 0.0
    %vm2379 = vcmp.gt.f32.partialorder %v2112, 0.0
    %vm2380 = vcmp.gt.f32.partialorder %v2117, 0.0
    %vm2381 = vcmp.gt.f32.partialorder %v2122, 0.0
    %vm2382 = vcmp.gt.f32.partialorder %v2127, 0.0
    %vm2383 = vcmp.gt.f32.partialorder %v2132, 0.0
    %vm2384 = vcmp.gt.f32.partialorder %v2137, 0.0
    %vm2385 = vcmp.gt.f32.partialorder %v2142, 0.0
    %vm2386 = vcmp.gt.f32.partialorder %v2147, 0.0
    %vm2387 = vcmp.gt.f32.partialorder %v2152, 0.0
    %vm2388 = vcmp.gt.f32.partialorder %v2157, 0.0
    %vm2389 = vcmp.gt.f32.partialorder %v2162, 0.0
    %vm2390 = vcmp.gt.f32.partialorder %v2167, 0.0
    %vm2391 = vcmp.gt.f32.partialorder %v2172, 0.0
    %vm2392 = vcmp.gt.f32.partialorder %v2177, 0.0
    %vm2393 = vcmp.gt.f32.partialorder %v2182, 0.0
    %vm2394 = vcmp.gt.f32.partialorder %v2187, 0.0
    %vm2395 = vcmp.gt.f32.partialorder %v2192, 0.0
    %vm2396 = vcmp.gt.f32.partialorder %v2197, 0.0
    %v2397 = vstv %s2200
    %v2398 = vmul.f32 %v2397, %v1222
    %v2399 = vmul.f32 %v2397, %v1227
    %v2400 = vmul.f32 %v2397, %v1232
    %v2401 = vmul.f32 %v2397, %v1237
    %v2402 = vmul.f32 %v2397, %v1242
    %v2403 = vmul.f32 %v2397, %v1247
    %v2404 = vmul.f32 %v2397, %v1252
    %v2405 = vmul.f32 %v2397, %v1257
    %v2406 = vmul.f32 %v2397, %v1262
    %v2407 = vmul.f32 %v2397, %v1267
    %v2408 = vmul.f32 %v2397, %v1272
    %v2409 = vmul.f32 %v2397, %v1277
    %v2410 = vmul.f32 %v2397, %v1282
    %v2411 = vmul.f32 %v2397, %v1287
    %v2412 = vmul.f32 %v2397, %v1292
    %v2413 = vmul.f32 %v2397, %v1297
    %v2414 = vmul.f32 %v2397, %v1302
    %v2415 = vmul.f32 %v2397, %v1307
    %v2416 = vmul.f32 %v2397, %v1312
    %v2417 = vmul.f32 %v2397, %v1317
    %v2418 = vmul.f32 %v2397, %v1322
    %v2419 = vmul.f32 %v2397, %v1327
    %v2420 = vmul.f32 %v2397, %v1332
    %v2421 = vmul.f32 %v2397, %v1337
    %v2422 = vmul.f32 %v2397, %v1342
    %v2423 = vmul.f32 %v2397, %v1347
    %v2424 = vmul.f32 %v2397, %v1352
    %v2425 = vmul.f32 %v2397, %v1357
    %v2426 = vmul.f32 %v2397, %v1362
    %v2427 = vmul.f32 %v2397, %v1367
    %v2428 = vmul.f32 %v2397, %v1372
    %v2429 = vmul.f32 %v2397, %v1377
    %v2430 = vmul.f32 %v2397, %v1382
    %v2431 = vmul.f32 %v2397, %v1387
    %v2432 = vmul.f32 %v2397, %v1392
    %v2433 = vmul.f32 %v2397, %v1397
    %v2434 = vmul.f32 %v2397, %v1402
    %v2435 = vmul.f32 %v2397, %v1407
    %v2436 = vmul.f32 %v2397, %v1412
    %v2437 = vmul.f32 %v2397, %v1417
    %v2438 = vmul.f32 %v2397, %v1422
    %v2439 = vmul.f32 %v2397, %v1427
    %v2440 = vmul.f32 %v2397, %v1432
    %v2441 = vmul.f32 %v2397, %v1437
    %v2442 = vmul.f32 %v2397, %v1442
    %v2443 = vmul.f32 %v2397, %v1447
    %v2444 = vmul.f32 %v2397, %v1452
    %v2445 = vmul.f32 %v2397, %v1457
    %v2446 = vmul.f32 %v2397, %v1462
    %v2447 = vmul.f32 %v2397, %v1467
    %v2448 = vmul.f32 %v2397, %v1472
    %v2449 = vmul.f32 %v2397, %v1477
    %v2450 = vmul.f32 %v2397, %v1482
    %v2451 = vmul.f32 %v2397, %v1487
    %v2452 = vmul.f32 %v2397, %v1492
    %v2453 = vmul.f32 %v2397, %v1497
    %v2454 = vmul.f32 %v2397, %v1502
    %v2455 = vmul.f32 %v2397, %v1507
    %v2456 = vmul.f32 %v2397, %v1512
    %v2457 = vmul.f32 %v2397, %v1517
    %v2458 = vmul.f32 %v2397, %v1522
    %v2459 = vmul.f32 %v2397, %v1527
    %v2460 = vmul.f32 %v2397, %v1532
    %v2461 = vmul.f32 %v2397, %v1537
    %v2462 = vmul.f32 %v2397, %v1542
    %v2463 = vmul.f32 %v2397, %v1547
    %v2464 = vmul.f32 %v2397, %v1552
    %v2465 = vmul.f32 %v2397, %v1557
    %v2466 = vmul.f32 %v2397, %v1562
    %v2467 = vmul.f32 %v2397, %v1567
    %v2468 = vmul.f32 %v2397, %v1572
    %v2469 = vmul.f32 %v2397, %v1577
    %v2470 = vmul.f32 %v2397, %v1582
    %v2471 = vmul.f32 %v2397, %v1587
    %v2472 = vmul.f32 %v2397, %v1592
    %v2473 = vmul.f32 %v2397, %v1597
    %v2474 = vmul.f32 %v2397, %v1602
    %v2475 = vmul.f32 %v2397, %v1607
    %v2476 = vmul.f32 %v2397, %v1612
    %v2477 = vmul.f32 %v2397, %v1617
    %v2478 = vmul.f32 %v2397, %v1622
    %v2479 = vmul.f32 %v2397, %v1627
    %v2480 = vmul.f32 %v2397, %v1632
    %v2481 = vmul.f32 %v2397, %v1637
    %v2482 = vmul.f32 %v2397, %v1642
    %v2483 = vmul.f32 %v2397, %v1647
    %v2484 = vmul.f32 %v2397, %v1652
    %v2485 = vmul.f32 %v2397, %v1657
    %v2486 = vmul.f32 %v2397, %v1662
    %v2487 = vmul.f32 %v2397, %v1667
    %v2488 = vmul.f32 %v2397, %v1672
    %v2489 = vmul.f32 %v2397, %v1677
    %v2490 = vmul.f32 %v2397, %v1682
    %v2491 = vmul.f32 %v2397, %v1687
    %v2492 = vmul.f32 %v2397, %v1692
    %v2493 = vmul.f32 %v2397, %v1697
    %v2494 = vmul.f32 %v2397, %v1702
    %v2495 = vmul.f32 %v2397, %v1707
    %v2496 = vmul.f32 %v2397, %v1712
    %v2497 = vmul.f32 %v2397, %v1717
    %v2498 = vmul.f32 %v2397, %v1722
    %v2499 = vmul.f32 %v2397, %v1727
    %v2500 = vmul.f32 %v2397, %v1732
    %v2501 = vmul.f32 %v2397, %v1737
    %v2502 = vmul.f32 %v2397, %v1742
    %v2503 = vmul.f32 %v2397, %v1747
    %v2504 = vmul.f32 %v2397, %v1752
    %v2505 = vmul.f32 %v2397, %v1757
    %v2506 = vmul.f32 %v2397, %v1762
    %v2507 = vmul.f32 %v2397, %v1767
    %v2508 = vmul.f32 %v2397, %v1772
    %v2509 = vmul.f32 %v2397, %v1777
    %v2510 = vmul.f32 %v2397, %v1782
    %v2511 = vmul.f32 %v2397, %v1787
    %v2512 = vmul.f32 %v2397, %v1792
    %v2513 = vmul.f32 %v2397, %v1797
    %v2514 = vmul.f32 %v2397, %v1802
    %v2515 = vmul.f32 %v2397, %v1807
    %v2516 = vmul.f32 %v2397, %v1812
    %v2517 = vmul.f32 %v2397, %v1817
    %v2518 = vmul.f32 %v2397, %v1822
    %v2519 = vmul.f32 %v2397, %v1827
    %v2520 = vmul.f32 %v2397, %v1832
    %v2521 = vmul.f32 %v2397, %v1837
    %v2522 = vmul.f32 %v2397, %v1842
    %v2523 = vmul.f32 %v2397, %v1847
    %v2524 = vmul.f32 %v2397, %v1852
    %v2525 = vmul.f32 %v2397, %v1857
    %v2526 = vmul.f32 %v2397, %v1862
    %v2527 = vmul.f32 %v2397, %v1867
    %v2528 = vmul.f32 %v2397, %v1872
    %v2529 = vmul.f32 %v2397, %v1877
    %v2530 = vmul.f32 %v2397, %v1882
    %v2531 = vmul.f32 %v2397, %v1887
    %v2532 = vmul.f32 %v2397, %v1892
    %v2533 = vmul.f32 %v2397, %v1897
    %v2534 = vmul.f32 %v2397, %v1902
    %v2535 = vmul.f32 %v2397, %v1907
    %v2536 = vmul.f32 %v2397, %v1912
    %v2537 = vmul.f32 %v2397, %v1917
    %v2538 = vmul.f32 %v2397, %v1922
    %v2539 = vmul.f32 %v2397, %v1927
    %v2540 = vmul.f32 %v2397, %v1932
    %v2541 = vmul.f32 %v2397, %v1937
    %v2542 = vmul.f32 %v2397, %v1942
    %v2543 = vmul.f32 %v2397, %v1947
    %v2544 = vmul.f32 %v2397, %v1952
    %v2545 = vmul.f32 %v2397, %v1957
    %v2546 = vmul.f32 %v2397, %v1962
    %v2547 = vmul.f32 %v2397, %v1967
    %v2548 = vmul.f32 %v2397, %v1972
    %v2549 = vmul.f32 %v2397, %v1977
    %v2550 = vmul.f32 %v2397, %v1982
    %v2551 = vmul.f32 %v2397, %v1987
    %v2552 = vmul.f32 %v2397, %v1992
    %v2553 = vmul.f32 %v2397, %v1997
    %v2554 = vmul.f32 %v2397, %v2002
    %v2555 = vmul.f32 %v2397, %v2007
    %v2556 = vmul.f32 %v2397, %v2012
    %v2557 = vmul.f32 %v2397, %v2017
    %v2558 = vmul.f32 %v2397, %v2022
    %v2559 = vmul.f32 %v2397, %v2027
    %v2560 = vmul.f32 %v2397, %v2032
    %v2561 = vmul.f32 %v2397, %v2037
    %v2562 = vmul.f32 %v2397, %v2042
    %v2563 = vmul.f32 %v2397, %v2047
    %v2564 = vmul.f32 %v2397, %v2052
    %v2565 = vmul.f32 %v2397, %v2057
    %v2566 = vmul.f32 %v2397, %v2062
    %v2567 = vmul.f32 %v2397, %v2067
    %v2568 = vmul.f32 %v2397, %v2072
    %v2569 = vmul.f32 %v2397, %v2077
    %v2570 = vmul.f32 %v2397, %v2082
    %v2571 = vmul.f32 %v2397, %v2087
    %v2572 = vmul.f32 %v2397, %v2092
    %v2573 = vmul.f32 %v2397, %v2097
    %v2574 = vmul.f32 %v2397, %v2102
    %v2575 = vmul.f32 %v2397, %v2107
    %v2576 = vmul.f32 %v2397, %v2112
    %v2577 = vmul.f32 %v2397, %v2117
    %v2578 = vmul.f32 %v2397, %v2122
    %v2579 = vmul.f32 %v2397, %v2127
    %v2580 = vmul.f32 %v2397, %v2132
    %v2581 = vmul.f32 %v2397, %v2137
    %v2582 = vmul.f32 %v2397, %v2142
    %v2583 = vmul.f32 %v2397, %v2147
    %v2584 = vmul.f32 %v2397, %v2152
    %v2585 = vmul.f32 %v2397, %v2157
    %v2586 = vmul.f32 %v2397, %v2162
    %v2587 = vmul.f32 %v2397, %v2167
    %v2588 = vmul.f32 %v2397, %v2172
    %v2589 = vmul.f32 %v2397, %v2177
    %v2590 = vmul.f32 %v2397, %v2182
    %v2591 = vmul.f32 %v2397, %v2187
    %v2592 = vmul.f32 %v2397, %v2192
    %v2593 = vmul.f32 %v2397, %v2197
    %v2594 = vsel %vm2201, %v1222, %v2398
    %v2595 = vsel %vm2202, %v1227, %v2399
    %v2596 = vsel %vm2203, %v1232, %v2400
    %v2597 = vsel %vm2204, %v1237, %v2401
    %v2598 = vsel %vm2205, %v1242, %v2402
    %v2599 = vsel %vm2206, %v1247, %v2403
    %v2600 = vsel %vm2207, %v1252, %v2404
    %v2601 = vsel %vm2208, %v1257, %v2405
    %v2602 = vsel %vm2209, %v1262, %v2406
    %v2603 = vsel %vm2210, %v1267, %v2407
    %v2604 = vsel %vm2211, %v1272, %v2408
    %v2605 = vsel %vm2212, %v1277, %v2409
    %v2606 = vsel %vm2213, %v1282, %v2410
    %v2607 = vsel %vm2214, %v1287, %v2411
    %v2608 = vsel %vm2215, %v1292, %v2412
    %v2609 = vsel %vm2216, %v1297, %v2413
    %v2610 = vsel %vm2217, %v1302, %v2414
    %v2611 = vsel %vm2218, %v1307, %v2415
    %v2612 = vsel %vm2219, %v1312, %v2416
    %v2613 = vsel %vm2220, %v1317, %v2417
    %v2614 = vsel %vm2221, %v1322, %v2418
    %v2615 = vsel %vm2222, %v1327, %v2419
    %v2616 = vsel %vm2223, %v1332, %v2420
    %v2617 = vsel %vm2224, %v1337, %v2421
    %v2618 = vsel %vm2225, %v1342, %v2422
    %v2619 = vsel %vm2226, %v1347, %v2423
    %v2620 = vsel %vm2227, %v1352, %v2424
    %v2621 = vsel %vm2228, %v1357, %v2425
    %v2622 = vsel %vm2229, %v1362, %v2426
    %v2623 = vsel %vm2230, %v1367, %v2427
    %v2624 = vsel %vm2231, %v1372, %v2428
    %v2625 = vsel %vm2232, %v1377, %v2429
    %v2626 = vsel %vm2233, %v1382, %v2430
    %v2627 = vsel %vm2234, %v1387, %v2431
    %v2628 = vsel %vm2235, %v1392, %v2432
    %v2629 = vsel %vm2236, %v1397, %v2433
    %v2630 = vsel %vm2237, %v1402, %v2434
    %v2631 = vsel %vm2238, %v1407, %v2435
    %v2632 = vsel %vm2239, %v1412, %v2436
    %v2633 = vsel %vm2240, %v1417, %v2437
    %v2634 = vsel %vm2241, %v1422, %v2438
    %v2635 = vsel %vm2242, %v1427, %v2439
    %v2636 = vsel %vm2243, %v1432, %v2440
    %v2637 = vsel %vm2244, %v1437, %v2441
    %v2638 = vsel %vm2245, %v1442, %v2442
    %v2639 = vsel %vm2246, %v1447, %v2443
    %v2640 = vsel %vm2247, %v1452, %v2444
    %v2641 = vsel %vm2248, %v1457, %v2445
    %v2642 = vsel %vm2249, %v1462, %v2446
    %v2643 = vsel %vm2250, %v1467, %v2447
    %v2644 = vsel %vm2251, %v1472, %v2448
    %v2645 = vsel %vm2252, %v1477, %v2449
    %v2646 = vsel %vm2253, %v1482, %v2450
    %v2647 = vsel %vm2254, %v1487, %v2451
    %v2648 = vsel %vm2255, %v1492, %v2452
    %v2649 = vsel %vm2256, %v1497, %v2453
    %v2650 = vsel %vm2257, %v1502, %v2454
    %v2651 = vsel %vm2258, %v1507, %v2455
    %v2652 = vsel %vm2259, %v1512, %v2456
    %v2653 = vsel %vm2260, %v1517, %v2457
    %v2654 = vsel %vm2261, %v1522, %v2458
    %v2655 = vsel %vm2262, %v1527, %v2459
    %v2656 = vsel %vm2263, %v1532, %v2460
    %v2657 = vsel %vm2264, %v1537, %v2461
    %v2658 = vsel %vm2265, %v1542, %v2462
    %v2659 = vsel %vm2266, %v1547, %v2463
    %v2660 = vsel %vm2267, %v1552, %v2464
    %v2661 = vsel %vm2268, %v1557, %v2465
    %v2662 = vsel %vm2269, %v1562, %v2466
    %v2663 = vsel %vm2270, %v1567, %v2467
    %v2664 = vsel %vm2271, %v1572, %v2468
    %v2665 = vsel %vm2272, %v1577, %v2469
    %v2666 = vsel %vm2273, %v1582, %v2470
    %v2667 = vsel %vm2274, %v1587, %v2471
    %v2668 = vsel %vm2275, %v1592, %v2472
    %v2669 = vsel %vm2276, %v1597, %v2473
    %v2670 = vsel %vm2277, %v1602, %v2474
    %v2671 = vsel %vm2278, %v1607, %v2475
    %v2672 = vsel %vm2279, %v1612, %v2476
    %v2673 = vsel %vm2280, %v1617, %v2477
    %v2674 = vsel %vm2281, %v1622, %v2478
    %v2675 = vsel %vm2282, %v1627, %v2479
    %v2676 = vsel %vm2283, %v1632, %v2480
    %v2677 = vsel %vm2284, %v1637, %v2481
    %v2678 = vsel %vm2285, %v1642, %v2482
    %v2679 = vsel %vm2286, %v1647, %v2483
    %v2680 = vsel %vm2287, %v1652, %v2484
    %v2681 = vsel %vm2288, %v1657, %v2485
    %v2682 = vsel %vm2289, %v1662, %v2486
    %v2683 = vsel %vm2290, %v1667, %v2487
    %v2684 = vsel %vm2291, %v1672, %v2488
    %v2685 = vsel %vm2292, %v1677, %v2489
    %v2686 = vsel %vm2293, %v1682, %v2490
    %v2687 = vsel %vm2294, %v1687, %v2491
    %v2688 = vsel %vm2295, %v1692, %v2492
    %v2689 = vsel %vm2296, %v1697, %v2493
    %v2690 = vsel %vm2297, %v1702, %v2494
    %v2691 = vsel %vm2298, %v1707, %v2495
    %v2692 = vsel %vm2299, %v1712, %v2496
    %v2693 = vsel %vm2300, %v1717, %v2497
    %v2694 = vsel %vm2301, %v1722, %v2498
    %v2695 = vsel %vm2302, %v1727, %v2499
    %v2696 = vsel %vm2303, %v1732, %v2500
    %v2697 = vsel %vm2304, %v1737, %v2501
    %v2698 = vsel %vm2305, %v1742, %v2502
    %v2699 = vsel %vm2306, %v1747, %v2503
    %v2700 = vsel %vm2307, %v1752, %v2504
    %v2701 = vsel %vm2308, %v1757, %v2505
    %v2702 = vsel %vm2309, %v1762, %v2506
    %v2703 = vsel %vm2310, %v1767, %v2507
    %v2704 = vsel %vm2311, %v1772, %v2508
    %v2705 = vsel %vm2312, %v1777, %v2509
    %v2706 = vsel %vm2313, %v1782, %v2510
    %v2707 = vsel %vm2314, %v1787, %v2511
    %v2708 = vsel %vm2315, %v1792, %v2512
    %v2709 = vsel %vm2316, %v1797, %v2513
    %v2710 = vsel %vm2317, %v1802, %v2514
    %v2711 = vsel %vm2318, %v1807, %v2515
    %v2712 = vsel %vm2319, %v1812, %v2516
    %v2713 = vsel %vm2320, %v1817, %v2517
    %v2714 = vsel %vm2321, %v1822, %v2518
    %v2715 = vsel %vm2322, %v1827, %v2519
    %v2716 = vsel %vm2323, %v1832, %v2520
    %v2717 = vsel %vm2324, %v1837, %v2521
    %v2718 = vsel %vm2325, %v1842, %v2522
    %v2719 = vsel %vm2326, %v1847, %v2523
    %v2720 = vsel %vm2327, %v1852, %v2524
    %v2721 = vsel %vm2328, %v1857, %v2525
    %v2722 = vsel %vm2329, %v1862, %v2526
    %v2723 = vsel %vm2330, %v1867, %v2527
    %v2724 = vsel %vm2331, %v1872, %v2528
    %v2725 = vsel %vm2332, %v1877, %v2529
    %v2726 = vsel %vm2333, %v1882, %v2530
    %v2727 = vsel %vm2334, %v1887, %v2531
    %v2728 = vsel %vm2335, %v1892, %v2532
    %v2729 = vsel %vm2336, %v1897, %v2533
    %v2730 = vsel %vm2337, %v1902, %v2534
    %v2731 = vsel %vm2338, %v1907, %v2535
    %v2732 = vsel %vm2339, %v1912, %v2536
    %v2733 = vsel %vm2340, %v1917, %v2537
    %v2734 = vsel %vm2341, %v1922, %v2538
    %v2735 = vsel %vm2342, %v1927, %v2539
    %v2736 = vsel %vm2343, %v1932, %v2540
    %v2737 = vsel %vm2344, %v1937, %v2541
    %v2738 = vsel %vm2345, %v1942, %v2542
    %v2739 = vsel %vm2346, %v1947, %v2543
    %v2740 = vsel %vm2347, %v1952, %v2544
    %v2741 = vsel %vm2348, %v1957, %v2545
    %v2742 = vsel %vm2349, %v1962, %v2546
    %v2743 = vsel %vm2350, %v1967, %v2547
    %v2744 = vsel %vm2351, %v1972, %v2548
    %v2745 = vsel %vm2352, %v1977, %v2549
    %v2746 = vsel %vm2353, %v1982, %v2550
    %v2747 = vsel %vm2354, %v1987, %v2551
    %v2748 = vsel %vm2355, %v1992, %v2552
    %v2749 = vsel %vm2356, %v1997, %v2553
    %v2750 = vsel %vm2357, %v2002, %v2554
    %v2751 = vsel %vm2358, %v2007, %v2555
    %v2752 = vsel %vm2359, %v2012, %v2556
    %v2753 = vsel %vm2360, %v2017, %v2557
    %v2754 = vsel %vm2361, %v2022, %v2558
    %v2755 = vsel %vm2362, %v2027, %v2559
    %v2756 = vsel %vm2363, %v2032, %v2560
    %v2757 = vsel %vm2364, %v2037, %v2561
    %v2758 = vsel %vm2365, %v2042, %v2562
    %v2759 = vsel %vm2366, %v2047, %v2563
    %v2760 = vsel %vm2367, %v2052, %v2564
    %v2761 = vsel %vm2368, %v2057, %v2565
    %v2762 = vsel %vm2369, %v2062, %v2566
    %v2763 = vsel %vm2370, %v2067, %v2567
    %v2764 = vsel %vm2371, %v2072, %v2568
    %v2765 = vsel %vm2372, %v2077, %v2569
    %v2766 = vsel %vm2373, %v2082, %v2570
    %v2767 = vsel %vm2374, %v2087, %v2571
    %v2768 = vsel %vm2375, %v2092, %v2572
    %v2769 = vsel %vm2376, %v2097, %v2573
    %v2770 = vsel %vm2377, %v2102, %v2574
    %v2771 = vsel %vm2378, %v2107, %v2575
    %v2772 = vsel %vm2379, %v2112, %v2576
    %v2773 = vsel %vm2380, %v2117, %v2577
    %v2774 = vsel %vm2381, %v2122, %v2578
    %v2775 = vsel %vm2382, %v2127, %v2579
    %v2776 = vsel %vm2383, %v2132, %v2580
    %v2777 = vsel %vm2384, %v2137, %v2581
    %v2778 = vsel %vm2385, %v2142, %v2582
    %v2779 = vsel %vm2386, %v2147, %v2583
    %v2780 = vsel %vm2387, %v2152, %v2584
    %v2781 = vsel %vm2388, %v2157, %v2585
    %v2782 = vsel %vm2389, %v2162, %v2586
    %v2783 = vsel %vm2390, %v2167, %v2587
    %v2784 = vsel %vm2391, %v2172, %v2588
    %v2785 = vsel %vm2392, %v2177, %v2589
    %v2786 = vsel %vm2393, %v2182, %v2590
    %v2787 = vsel %vm2394, %v2187, %v2591
    %v2788 = vsel %vm2395, %v2192, %v2592
    %v2789 = vsel %vm2396, %v2197, %v2593
    %v2790 = vld [vmem:[#allocation12] sm:$0xff]
    %v2791 = vld [vmem:[#allocation12 + $0x8] sm:$0xff]
    %v2792 = vld [vmem:[#allocation12 + $0x10] sm:$0xff]
    %v2793 = vld [vmem:[#allocation12 + $0x18] sm:$0xff]
    %v2794 = vld [vmem:[#allocation12 + $0x20] sm:$0xff]
    %v2795 = vld [vmem:[#allocation12 + $0x28] sm:$0xff]
    %v2796 = vld [vmem:[#allocation12 + $0x30] sm:$0xff]
    %v2797 = vld [vmem:[#allocation12 + $0x38] sm:$0xff]
    %v2798 = vld [vmem:[#allocation12 + $0x40] sm:$0xff]
    %v2799 = vld [vmem:[#allocation12 + $0x48] sm:$0xff]
    %v2800 = vld [vmem:[#allocation12 + $0x50] sm:$0xff]
    %v2801 = vld [vmem:[#allocation12 + $0x58] sm:$0xff]
    %v2802 = vld [vmem:[#allocation12 + $0x60] sm:$0xff]
    %v2803 = vld [vmem:[#allocation12 + $0x68] sm:$0xff]
    %v2804 = vld [vmem:[#allocation12 + $0x70] sm:$0xff]
    %v2805 = vld [vmem:[#allocation12 + $0x78] sm:$0xff]
    %v2806 = vld [vmem:[%s8] sm:$0x1]
    %v2808 = vlaneseq
    %v2809 = vshrl.u32 %v2808, 7
    %v2810 = vsub.s32 0, %v2809
    %v2811 = vrot.slane %v2806, %v2810
    %2813 = vmatprep.subr.mxu0 0.0
    %2814 = vmatpush1.msra.mxu0 %v2805
    %2815 = vmatprep.subr.mxu0 0.0
    %2816 = vmatpush1.msra.mxu0 %v2804
    %2817 = vmatprep.subr.mxu0 0.0
    %2818 = vmatpush1.msra.mxu0 %v2803
    %2819 = vmatprep.subr.mxu0 0.0
    %2820 = vmatpush1.msra.mxu0 %v2802
    %2821 = vmatprep.subr.mxu0 0.0
    %2822 = vmatpush1.msra.mxu0 %v2801
    %2823 = vmatprep.subr.mxu0 0.0
    %2824 = vmatpush1.msra.mxu0 %v2800
    %2825 = vmatprep.subr.mxu0 0.0
    %2826 = vmatpush1.msra.mxu0 %v2799
    %2827 = vmatprep.subr.mxu0 0.0
    %2828 = vmatpush1.msra.mxu0 %v2798
    %2829 = vmatprep.subr.mxu0 0.0
    %2830 = vmatpush1.msra.mxu0 %v2797
    %2831 = vmatprep.subr.mxu0 0.0
    %2832 = vmatpush1.msra.mxu0 %v2796
    %2833 = vmatprep.subr.mxu0 0.0
    %2834 = vmatpush1.msra.mxu0 %v2795
    %2835 = vmatprep.subr.mxu0 0.0
    %2836 = vmatpush1.msra.mxu0 %v2794
    %2837 = vmatprep.subr.mxu0 0.0
    %2838 = vmatpush1.msra.mxu0 %v2793
    %2839 = vmatprep.subr.mxu0 0.0
    %2840 = vmatpush1.msra.mxu0 %v2792
    %2841 = vmatprep.subr.mxu0 0.0
    %2842 = vmatpush1.msra.mxu0 %v2791
    %2843 = vmatprep.subr.mxu0 0.0
    %2844 = vmatpush1.msra.mxu0 %v2790
    %2845 = vmatprep.subr.mxu0 0.0
    %2846 = vmatpush2.msra.mxu0 0.0
    %2847 = vmatprep.subr.mxu0 0.0
    %2848 = vmatpush2.msra.mxu0 0.0
    %2849 = vmatprep.subr.mxu0 0.0
    %2850 = vmatpush2.msra.mxu0 0.0
    %2851 = vmatprep.subr.mxu0 0.0
    %2852 = vmatpush2.msra.mxu0 0.0
    %2853 = vmatprep.subr.mxu0 0.0
    %2854 = vmatpush2.msra.mxu0 0.0
    %2855 = vmatprep.subr.mxu0 0.0
    %2856 = vmatpush2.msra.mxu0 0.0
    %2857 = vmatprep.subr.mxu0 0.0
    %2858 = vmatpush2.msra.mxu0 0.0
    %2859 = vmatprep.subr.mxu0 0.0
    %2860 = vmatpush2.msra.mxu0 0.0
    %2861 = vmatprep.subr.mxu0 0.0
    %2862 = vmatpush2.msra.mxu0 0.0
    %2863 = vmatprep.subr.mxu0 0.0
    %2864 = vmatpush2.msra.mxu0 0.0
    %2865 = vmatprep.subr.mxu0 0.0
    %2866 = vmatpush2.msra.mxu0 0.0
    %2867 = vmatprep.subr.mxu0 0.0
    %2868 = vmatpush2.msra.mxu0 0.0
    %2869 = vmatprep.subr.mxu0 0.0
    %2870 = vmatpush2.msra.mxu0 0.0
    %2871 = vmatprep.subr.mxu0 0.0
    %2872 = vmatpush2.msra.mxu0 0.0
    %2873 = vmatprep.subr.mxu0 0.0
    %2874 = vmatpush2.msra.mxu0 0.0
    %2875 = vmatprep.subr.mxu0 0.0
    %2876 = vmatpush2.msra.mxu0 0.0
    %2877 = vmatprep.mubr.f32.mxu0 0.0
    %2878 = vmatmul.mubr.f32.gmra.mxu0 %v2594
    %v2879 = vpop.f32.mrf.mxu0
    %v2880 = vadd.f32 %v2811, %v2879
    %v2881 = vpop.f32.mrf.mxu0
    %2882 = vmatprep.mubr.f32.mxu0 0.0
    %2883 = vmatmul.mubr.f32.gmra.mxu0 %v2595
    %v2884 = vpop.f32.mrf.mxu0
    %v2885 = vadd.f32 %v2811, %v2884
    %v2886 = vpop.f32.mrf.mxu0
    %2887 = vmatprep.mubr.f32.mxu0 0.0
    %2888 = vmatmul.mubr.f32.gmra.mxu0 %v2596
    %v2889 = vpop.f32.mrf.mxu0
    %v2890 = vadd.f32 %v2811, %v2889
    %v2891 = vpop.f32.mrf.mxu0
    %2892 = vmatprep.mubr.f32.mxu0 0.0
    %2893 = vmatmul.mubr.f32.gmra.mxu0 %v2597
    %v2894 = vpop.f32.mrf.mxu0
    %v2895 = vadd.f32 %v2811, %v2894
    %v2896 = vpop.f32.mrf.mxu0
    %2897 = vmatprep.mubr.f32.mxu0 0.0
    %2898 = vmatmul.mubr.f32.gmra.mxu0 %v2598
    %v2899 = vpop.f32.mrf.mxu0
    %v2900 = vadd.f32 %v2811, %v2899
    %v2901 = vpop.f32.mrf.mxu0
    %2902 = vmatprep.mubr.f32.mxu0 0.0
    %2903 = vmatmul.mubr.f32.gmra.mxu0 %v2599
    %v2904 = vpop.f32.mrf.mxu0
    %v2905 = vadd.f32 %v2811, %v2904
    %v2906 = vpop.f32.mrf.mxu0
    %2907 = vmatprep.mubr.f32.mxu0 0.0
    %2908 = vmatmul.mubr.f32.gmra.mxu0 %v2600
    %v2909 = vpop.f32.mrf.mxu0
    %v2910 = vadd.f32 %v2811, %v2909
    %v2911 = vpop.f32.mrf.mxu0
    %2912 = vmatprep.mubr.f32.mxu0 0.0
    %2913 = vmatmul.mubr.f32.gmra.mxu0 %v2601
    %v2914 = vpop.f32.mrf.mxu0
    %v2915 = vadd.f32 %v2811, %v2914
    %v2916 = vpop.f32.mrf.mxu0
    %2917 = vmatprep.mubr.f32.mxu0 0.0
    %2918 = vmatmul.mubr.f32.gmra.mxu0 %v2602
    %v2919 = vpop.f32.mrf.mxu0
    %v2920 = vadd.f32 %v2811, %v2919
    %v2921 = vpop.f32.mrf.mxu0
    %2922 = vmatprep.mubr.f32.mxu0 0.0
    %2923 = vmatmul.mubr.f32.gmra.mxu0 %v2603
    %v2924 = vpop.f32.mrf.mxu0
    %v2925 = vadd.f32 %v2811, %v2924
    %v2926 = vpop.f32.mrf.mxu0
    %2927 = vmatprep.mubr.f32.mxu0 0.0
    %2928 = vmatmul.mubr.f32.gmra.mxu0 %v2604
    %v2929 = vpop.f32.mrf.mxu0
    %v2930 = vadd.f32 %v2811, %v2929
    %v2931 = vpop.f32.mrf.mxu0
    %2932 = vmatprep.mubr.f32.mxu0 0.0
    %2933 = vmatmul.mubr.f32.gmra.mxu0 %v2605
    %v2934 = vpop.f32.mrf.mxu0
    %v2935 = vadd.f32 %v2811, %v2934
    %v2936 = vpop.f32.mrf.mxu0
    %2937 = vmatprep.mubr.f32.mxu0 0.0
    %2938 = vmatmul.mubr.f32.gmra.mxu0 %v2606
    %v2939 = vpop.f32.mrf.mxu0
    %v2940 = vadd.f32 %v2811, %v2939
    %v2941 = vpop.f32.mrf.mxu0
    %2942 = vmatprep.mubr.f32.mxu0 0.0
    %2943 = vmatmul.mubr.f32.gmra.mxu0 %v2607
    %v2944 = vpop.f32.mrf.mxu0
    %v2945 = vadd.f32 %v2811, %v2944
    %v2946 = vpop.f32.mrf.mxu0
    %2947 = vmatprep.mubr.f32.mxu0 0.0
    %2948 = vmatmul.mubr.f32.gmra.mxu0 %v2608
    %v2949 = vpop.f32.mrf.mxu0
    %v2950 = vadd.f32 %v2811, %v2949
    %v2951 = vpop.f32.mrf.mxu0
    %2952 = vmatprep.mubr.f32.mxu0 0.0
    %2953 = vmatmul.mubr.f32.gmra.mxu0 %v2609
    %v2954 = vpop.f32.mrf.mxu0
    %v2955 = vadd.f32 %v2811, %v2954
    %v2956 = vpop.f32.mrf.mxu0
    %2957 = vmatprep.mubr.f32.mxu0 0.0
    %2958 = vmatmul.mubr.f32.gmra.mxu0 %v2610
    %v2959 = vpop.f32.mrf.mxu0
    %v2960 = vadd.f32 %v2811, %v2959
    %v2961 = vpop.f32.mrf.mxu0
    %2962 = vmatprep.mubr.f32.mxu0 0.0
    %2963 = vmatmul.mubr.f32.gmra.mxu0 %v2611
    %v2964 = vpop.f32.mrf.mxu0
    %v2965 = vadd.f32 %v2811, %v2964
    %v2966 = vpop.f32.mrf.mxu0
    %2967 = vmatprep.mubr.f32.mxu0 0.0
    %2968 = vmatmul.mubr.f32.gmra.mxu0 %v2612
    %v2969 = vpop.f32.mrf.mxu0
    %v2970 = vadd.f32 %v2811, %v2969
    %v2971 = vpop.f32.mrf.mxu0
    %2972 = vmatprep.mubr.f32.mxu0 0.0
    %2973 = vmatmul.mubr.f32.gmra.mxu0 %v2613
    %v2974 = vpop.f32.mrf.mxu0
    %v2975 = vadd.f32 %v2811, %v2974
    %v2976 = vpop.f32.mrf.mxu0
    %2977 = vmatprep.mubr.f32.mxu0 0.0
    %2978 = vmatmul.mubr.f32.gmra.mxu0 %v2614
    %v2979 = vpop.f32.mrf.mxu0
    %v2980 = vadd.f32 %v2811, %v2979
    %v2981 = vpop.f32.mrf.mxu0
    %2982 = vmatprep.mubr.f32.mxu0 0.0
    %2983 = vmatmul.mubr.f32.gmra.mxu0 %v2615
    %v2984 = vpop.f32.mrf.mxu0
    %v2985 = vadd.f32 %v2811, %v2984
    %v2986 = vpop.f32.mrf.mxu0
    %2987 = vmatprep.mubr.f32.mxu0 0.0
    %2988 = vmatmul.mubr.f32.gmra.mxu0 %v2616
    %v2989 = vpop.f32.mrf.mxu0
    %v2990 = vadd.f32 %v2811, %v2989
    %v2991 = vpop.f32.mrf.mxu0
    %2992 = vmatprep.mubr.f32.mxu0 0.0
    %2993 = vmatmul.mubr.f32.gmra.mxu0 %v2617
    %v2994 = vpop.f32.mrf.mxu0
    %v2995 = vadd.f32 %v2811, %v2994
    %v2996 = vpop.f32.mrf.mxu0
    %2997 = vmatprep.mubr.f32.mxu0 0.0
    %2998 = vmatmul.mubr.f32.gmra.mxu0 %v2618
    %v2999 = vpop.f32.mrf.mxu0
    %v3000 = vadd.f32 %v2811, %v2999
    %v3001 = vpop.f32.mrf.mxu0
    %3002 = vmatprep.mubr.f32.mxu0 0.0
    %3003 = vmatmul.mubr.f32.gmra.mxu0 %v2619
    %v3004 = vpop.f32.mrf.mxu0
    %v3005 = vadd.f32 %v2811, %v3004
    %v3006 = vpop.f32.mrf.mxu0
    %3007 = vmatprep.mubr.f32.mxu0 0.0
    %3008 = vmatmul.mubr.f32.gmra.mxu0 %v2620
    %v3009 = vpop.f32.mrf.mxu0
    %v3010 = vadd.f32 %v2811, %v3009
    %v3011 = vpop.f32.mrf.mxu0
    %3012 = vmatprep.mubr.f32.mxu0 0.0
    %3013 = vmatmul.mubr.f32.gmra.mxu0 %v2621
    %v3014 = vpop.f32.mrf.mxu0
    %v3015 = vadd.f32 %v2811, %v3014
    %v3016 = vpop.f32.mrf.mxu0
    %3017 = vmatprep.mubr.f32.mxu0 0.0
    %3018 = vmatmul.mubr.f32.gmra.mxu0 %v2622
    %v3019 = vpop.f32.mrf.mxu0
    %v3020 = vadd.f32 %v2811, %v3019
    %v3021 = vpop.f32.mrf.mxu0
    %3022 = vmatprep.mubr.f32.mxu0 0.0
    %3023 = vmatmul.mubr.f32.gmra.mxu0 %v2623
    %v3024 = vpop.f32.mrf.mxu0
    %v3025 = vadd.f32 %v2811, %v3024
    %v3026 = vpop.f32.mrf.mxu0
    %3027 = vmatprep.mubr.f32.mxu0 0.0
    %3028 = vmatmul.mubr.f32.gmra.mxu0 %v2624
    %v3029 = vpop.f32.mrf.mxu0
    %v3030 = vadd.f32 %v2811, %v3029
    %v3031 = vpop.f32.mrf.mxu0
    %3032 = vmatprep.mubr.f32.mxu0 0.0
    %3033 = vmatmul.mubr.f32.gmra.mxu0 %v2625
    %v3034 = vpop.f32.mrf.mxu0
    %v3035 = vadd.f32 %v2811, %v3034
    %v3036 = vpop.f32.mrf.mxu0
    %3037 = vmatprep.mubr.f32.mxu0 0.0
    %3038 = vmatmul.mubr.f32.gmra.mxu0 %v2626
    %v3039 = vpop.f32.mrf.mxu0
    %v3040 = vadd.f32 %v2811, %v3039
    %v3041 = vpop.f32.mrf.mxu0
    %3042 = vmatprep.mubr.f32.mxu0 0.0
    %3043 = vmatmul.mubr.f32.gmra.mxu0 %v2627
    %v3044 = vpop.f32.mrf.mxu0
    %v3045 = vadd.f32 %v2811, %v3044
    %v3046 = vpop.f32.mrf.mxu0
    %3047 = vmatprep.mubr.f32.mxu0 0.0
    %3048 = vmatmul.mubr.f32.gmra.mxu0 %v2628
    %v3049 = vpop.f32.mrf.mxu0
    %v3050 = vadd.f32 %v2811, %v3049
    %v3051 = vpop.f32.mrf.mxu0
    %3052 = vmatprep.mubr.f32.mxu0 0.0
    %3053 = vmatmul.mubr.f32.gmra.mxu0 %v2629
    %v3054 = vpop.f32.mrf.mxu0
    %v3055 = vadd.f32 %v2811, %v3054
    %v3056 = vpop.f32.mrf.mxu0
    %3057 = vmatprep.mubr.f32.mxu0 0.0
    %3058 = vmatmul.mubr.f32.gmra.mxu0 %v2630
    %v3059 = vpop.f32.mrf.mxu0
    %v3060 = vadd.f32 %v2811, %v3059
    %v3061 = vpop.f32.mrf.mxu0
    %3062 = vmatprep.mubr.f32.mxu0 0.0
    %3063 = vmatmul.mubr.f32.gmra.mxu0 %v2631
    %v3064 = vpop.f32.mrf.mxu0
    %v3065 = vadd.f32 %v2811, %v3064
    %v3066 = vpop.f32.mrf.mxu0
    %3067 = vmatprep.mubr.f32.mxu0 0.0
    %3068 = vmatmul.mubr.f32.gmra.mxu0 %v2632
    %v3069 = vpop.f32.mrf.mxu0
    %v3070 = vadd.f32 %v2811, %v3069
    %v3071 = vpop.f32.mrf.mxu0
    %3072 = vmatprep.mubr.f32.mxu0 0.0
    %3073 = vmatmul.mubr.f32.gmra.mxu0 %v2633
    %v3074 = vpop.f32.mrf.mxu0
    %v3075 = vadd.f32 %v2811, %v3074
    %v3076 = vpop.f32.mrf.mxu0
    %3077 = vmatprep.mubr.f32.mxu0 0.0
    %3078 = vmatmul.mubr.f32.gmra.mxu0 %v2634
    %v3079 = vpop.f32.mrf.mxu0
    %v3080 = vadd.f32 %v2811, %v3079
    %v3081 = vpop.f32.mrf.mxu0
    %3082 = vmatprep.mubr.f32.mxu0 0.0
    %3083 = vmatmul.mubr.f32.gmra.mxu0 %v2635
    %v3084 = vpop.f32.mrf.mxu0
    %v3085 = vadd.f32 %v2811, %v3084
    %v3086 = vpop.f32.mrf.mxu0
    %3087 = vmatprep.mubr.f32.mxu0 0.0
    %3088 = vmatmul.mubr.f32.gmra.mxu0 %v2636
    %v3089 = vpop.f32.mrf.mxu0
    %v3090 = vadd.f32 %v2811, %v3089
    %v3091 = vpop.f32.mrf.mxu0
    %3092 = vmatprep.mubr.f32.mxu0 0.0
    %3093 = vmatmul.mubr.f32.gmra.mxu0 %v2637
    %v3094 = vpop.f32.mrf.mxu0
    %v3095 = vadd.f32 %v2811, %v3094
    %v3096 = vpop.f32.mrf.mxu0
    %3097 = vmatprep.mubr.f32.mxu0 0.0
    %3098 = vmatmul.mubr.f32.gmra.mxu0 %v2638
    %v3099 = vpop.f32.mrf.mxu0
    %v3100 = vadd.f32 %v2811, %v3099
    %v3101 = vpop.f32.mrf.mxu0
    %3102 = vmatprep.mubr.f32.mxu0 0.0
    %3103 = vmatmul.mubr.f32.gmra.mxu0 %v2639
    %v3104 = vpop.f32.mrf.mxu0
    %v3105 = vadd.f32 %v2811, %v3104
    %v3106 = vpop.f32.mrf.mxu0
    %3107 = vmatprep.mubr.f32.mxu0 0.0
    %3108 = vmatmul.mubr.f32.gmra.mxu0 %v2640
    %v3109 = vpop.f32.mrf.mxu0
    %v3110 = vadd.f32 %v2811, %v3109
    %v3111 = vpop.f32.mrf.mxu0
    %3112 = vmatprep.mubr.f32.mxu0 0.0
    %3113 = vmatmul.mubr.f32.gmra.mxu0 %v2641
    %v3114 = vpop.f32.mrf.mxu0
    %v3115 = vadd.f32 %v2811, %v3114
    %v3116 = vpop.f32.mrf.mxu0
    %3117 = vmatprep.mubr.f32.mxu0 0.0
    %3118 = vmatmul.mubr.f32.gmra.mxu0 %v2642
    %v3119 = vpop.f32.mrf.mxu0
    %v3120 = vadd.f32 %v2811, %v3119
    %v3121 = vpop.f32.mrf.mxu0
    %3122 = vmatprep.mubr.f32.mxu0 0.0
    %3123 = vmatmul.mubr.f32.gmra.mxu0 %v2643
    %v3124 = vpop.f32.mrf.mxu0
    %v3125 = vadd.f32 %v2811, %v3124
    %v3126 = vpop.f32.mrf.mxu0
    %3127 = vmatprep.mubr.f32.mxu0 0.0
    %3128 = vmatmul.mubr.f32.gmra.mxu0 %v2644
    %v3129 = vpop.f32.mrf.mxu0
    %v3130 = vadd.f32 %v2811, %v3129
    %v3131 = vpop.f32.mrf.mxu0
    %3132 = vmatprep.mubr.f32.mxu0 0.0
    %3133 = vmatmul.mubr.f32.gmra.mxu0 %v2645
    %v3134 = vpop.f32.mrf.mxu0
    %v3135 = vadd.f32 %v2811, %v3134
    %v3136 = vpop.f32.mrf.mxu0
    %3137 = vmatprep.mubr.f32.mxu0 0.0
    %3138 = vmatmul.mubr.f32.gmra.mxu0 %v2646
    %v3139 = vpop.f32.mrf.mxu0
    %v3140 = vadd.f32 %v2811, %v3139
    %v3141 = vpop.f32.mrf.mxu0
    %3142 = vmatprep.mubr.f32.mxu0 0.0
    %3143 = vmatmul.mubr.f32.gmra.mxu0 %v2647
    %v3144 = vpop.f32.mrf.mxu0
    %v3145 = vadd.f32 %v2811, %v3144
    %v3146 = vpop.f32.mrf.mxu0
    %3147 = vmatprep.mubr.f32.mxu0 0.0
    %3148 = vmatmul.mubr.f32.gmra.mxu0 %v2648
    %v3149 = vpop.f32.mrf.mxu0
    %v3150 = vadd.f32 %v2811, %v3149
    %v3151 = vpop.f32.mrf.mxu0
    %3152 = vmatprep.mubr.f32.mxu0 0.0
    %3153 = vmatmul.mubr.f32.gmra.mxu0 %v2649
    %v3154 = vpop.f32.mrf.mxu0
    %v3155 = vadd.f32 %v2811, %v3154
    %v3156 = vpop.f32.mrf.mxu0
    %3157 = vmatprep.mubr.f32.mxu0 0.0
    %3158 = vmatmul.mubr.f32.gmra.mxu0 %v2650
    %v3159 = vpop.f32.mrf.mxu0
    %v3160 = vadd.f32 %v2811, %v3159
    %v3161 = vpop.f32.mrf.mxu0
    %3162 = vmatprep.mubr.f32.mxu0 0.0
    %3163 = vmatmul.mubr.f32.gmra.mxu0 %v2651
    %v3164 = vpop.f32.mrf.mxu0
    %v3165 = vadd.f32 %v2811, %v3164
    %v3166 = vpop.f32.mrf.mxu0
    %3167 = vmatprep.mubr.f32.mxu0 0.0
    %3168 = vmatmul.mubr.f32.gmra.mxu0 %v2652
    %v3169 = vpop.f32.mrf.mxu0
    %v3170 = vadd.f32 %v2811, %v3169
    %v3171 = vpop.f32.mrf.mxu0
    %3172 = vmatprep.mubr.f32.mxu0 0.0
    %3173 = vmatmul.mubr.f32.gmra.mxu0 %v2653
    %v3174 = vpop.f32.mrf.mxu0
    %v3175 = vadd.f32 %v2811, %v3174
    %v3176 = vpop.f32.mrf.mxu0
    %3177 = vmatprep.mubr.f32.mxu0 0.0
    %3178 = vmatmul.mubr.f32.gmra.mxu0 %v2654
    %v3179 = vpop.f32.mrf.mxu0
    %v3180 = vadd.f32 %v2811, %v3179
    %v3181 = vpop.f32.mrf.mxu0
    %3182 = vmatprep.mubr.f32.mxu0 0.0
    %3183 = vmatmul.mubr.f32.gmra.mxu0 %v2655
    %v3184 = vpop.f32.mrf.mxu0
    %v3185 = vadd.f32 %v2811, %v3184
    %v3186 = vpop.f32.mrf.mxu0
    %3187 = vmatprep.mubr.f32.mxu0 0.0
    %3188 = vmatmul.mubr.f32.gmra.mxu0 %v2656
    %v3189 = vpop.f32.mrf.mxu0
    %v3190 = vadd.f32 %v2811, %v3189
    %v3191 = vpop.f32.mrf.mxu0
    %3192 = vmatprep.mubr.f32.mxu0 0.0
    %3193 = vmatmul.mubr.f32.gmra.mxu0 %v2657
    %v3194 = vpop.f32.mrf.mxu0
    %v3195 = vadd.f32 %v2811, %v3194
    %v3196 = vpop.f32.mrf.mxu0
    %3197 = vmatprep.mubr.f32.mxu0 0.0
    %3198 = vmatmul.mubr.f32.gmra.mxu0 %v2658
    %v3199 = vpop.f32.mrf.mxu0
    %v3200 = vadd.f32 %v2811, %v3199
    %v3201 = vpop.f32.mrf.mxu0
    %3202 = vmatprep.mubr.f32.mxu0 0.0
    %3203 = vmatmul.mubr.f32.gmra.mxu0 %v2659
    %v3204 = vpop.f32.mrf.mxu0
    %v3205 = vadd.f32 %v2811, %v3204
    %v3206 = vpop.f32.mrf.mxu0
    %3207 = vmatprep.mubr.f32.mxu0 0.0
    %3208 = vmatmul.mubr.f32.gmra.mxu0 %v2660
    %v3209 = vpop.f32.mrf.mxu0
    %v3210 = vadd.f32 %v2811, %v3209
    %v3211 = vpop.f32.mrf.mxu0
    %3212 = vmatprep.mubr.f32.mxu0 0.0
    %3213 = vmatmul.mubr.f32.gmra.mxu0 %v2661
    %v3214 = vpop.f32.mrf.mxu0
    %v3215 = vadd.f32 %v2811, %v3214
    %v3216 = vpop.f32.mrf.mxu0
    %3217 = vmatprep.mubr.f32.mxu0 0.0
    %3218 = vmatmul.mubr.f32.gmra.mxu0 %v2662
    %v3219 = vpop.f32.mrf.mxu0
    %v3220 = vadd.f32 %v2811, %v3219
    %v3221 = vpop.f32.mrf.mxu0
    %3222 = vmatprep.mubr.f32.mxu0 0.0
    %3223 = vmatmul.mubr.f32.gmra.mxu0 %v2663
    %v3224 = vpop.f32.mrf.mxu0
    %v3225 = vadd.f32 %v2811, %v3224
    %v3226 = vpop.f32.mrf.mxu0
    %3227 = vmatprep.mubr.f32.mxu0 0.0
    %3228 = vmatmul.mubr.f32.gmra.mxu0 %v2664
    %v3229 = vpop.f32.mrf.mxu0
    %v3230 = vadd.f32 %v2811, %v3229
    %v3231 = vpop.f32.mrf.mxu0
    %3232 = vmatprep.mubr.f32.mxu0 0.0
    %3233 = vmatmul.mubr.f32.gmra.mxu0 %v2665
    %v3234 = vpop.f32.mrf.mxu0
    %v3235 = vadd.f32 %v2811, %v3234
    %v3236 = vpop.f32.mrf.mxu0
    %3237 = vmatprep.mubr.f32.mxu0 0.0
    %3238 = vmatmul.mubr.f32.gmra.mxu0 %v2666
    %v3239 = vpop.f32.mrf.mxu0
    %v3240 = vadd.f32 %v2811, %v3239
    %v3241 = vpop.f32.mrf.mxu0
    %3242 = vmatprep.mubr.f32.mxu0 0.0
    %3243 = vmatmul.mubr.f32.gmra.mxu0 %v2667
    %v3244 = vpop.f32.mrf.mxu0
    %v3245 = vadd.f32 %v2811, %v3244
    %v3246 = vpop.f32.mrf.mxu0
    %3247 = vmatprep.mubr.f32.mxu0 0.0
    %3248 = vmatmul.mubr.f32.gmra.mxu0 %v2668
    %v3249 = vpop.f32.mrf.mxu0
    %v3250 = vadd.f32 %v2811, %v3249
    %v3251 = vpop.f32.mrf.mxu0
    %3252 = vmatprep.mubr.f32.mxu0 0.0
    %3253 = vmatmul.mubr.f32.gmra.mxu0 %v2669
    %v3254 = vpop.f32.mrf.mxu0
    %v3255 = vadd.f32 %v2811, %v3254
    %v3256 = vpop.f32.mrf.mxu0
    %3257 = vmatprep.mubr.f32.mxu0 0.0
    %3258 = vmatmul.mubr.f32.gmra.mxu0 %v2670
    %v3259 = vpop.f32.mrf.mxu0
    %v3260 = vadd.f32 %v2811, %v3259
    %v3261 = vpop.f32.mrf.mxu0
    %3262 = vmatprep.mubr.f32.mxu0 0.0
    %3263 = vmatmul.mubr.f32.gmra.mxu0 %v2671
    %v3264 = vpop.f32.mrf.mxu0
    %v3265 = vadd.f32 %v2811, %v3264
    %v3266 = vpop.f32.mrf.mxu0
    %3267 = vmatprep.mubr.f32.mxu0 0.0
    %3268 = vmatmul.mubr.f32.gmra.mxu0 %v2672
    %v3269 = vpop.f32.mrf.mxu0
    %v3270 = vadd.f32 %v2811, %v3269
    %v3271 = vpop.f32.mrf.mxu0
    %3272 = vmatprep.mubr.f32.mxu0 0.0
    %3273 = vmatmul.mubr.f32.gmra.mxu0 %v2673
    %v3274 = vpop.f32.mrf.mxu0
    %v3275 = vadd.f32 %v2811, %v3274
    %v3276 = vpop.f32.mrf.mxu0
    %3277 = vmatprep.mubr.f32.mxu0 0.0
    %3278 = vmatmul.mubr.f32.gmra.mxu0 %v2674
    %v3279 = vpop.f32.mrf.mxu0
    %v3280 = vadd.f32 %v2811, %v3279
    %v3281 = vpop.f32.mrf.mxu0
    %3282 = vmatprep.mubr.f32.mxu0 0.0
    %3283 = vmatmul.mubr.f32.gmra.mxu0 %v2675
    %v3284 = vpop.f32.mrf.mxu0
    %v3285 = vadd.f32 %v2811, %v3284
    %v3286 = vpop.f32.mrf.mxu0
    %3287 = vmatprep.mubr.f32.mxu0 0.0
    %3288 = vmatmul.mubr.f32.gmra.mxu0 %v2676
    %v3289 = vpop.f32.mrf.mxu0
    %v3290 = vadd.f32 %v2811, %v3289
    %v3291 = vpop.f32.mrf.mxu0
    %3292 = vmatprep.mubr.f32.mxu0 0.0
    %3293 = vmatmul.mubr.f32.gmra.mxu0 %v2677
    %v3294 = vpop.f32.mrf.mxu0
    %v3295 = vadd.f32 %v2811, %v3294
    %v3296 = vpop.f32.mrf.mxu0
    %3297 = vmatprep.mubr.f32.mxu0 0.0
    %3298 = vmatmul.mubr.f32.gmra.mxu0 %v2678
    %v3299 = vpop.f32.mrf.mxu0
    %v3300 = vadd.f32 %v2811, %v3299
    %v3301 = vpop.f32.mrf.mxu0
    %3302 = vmatprep.mubr.f32.mxu0 0.0
    %3303 = vmatmul.mubr.f32.gmra.mxu0 %v2679
    %v3304 = vpop.f32.mrf.mxu0
    %v3305 = vadd.f32 %v2811, %v3304
    %v3306 = vpop.f32.mrf.mxu0
    %3307 = vmatprep.mubr.f32.mxu0 0.0
    %3308 = vmatmul.mubr.f32.gmra.mxu0 %v2680
    %v3309 = vpop.f32.mrf.mxu0
    %v3310 = vadd.f32 %v2811, %v3309
    %v3311 = vpop.f32.mrf.mxu0
    %3312 = vmatprep.mubr.f32.mxu0 0.0
    %3313 = vmatmul.mubr.f32.gmra.mxu0 %v2681
    %v3314 = vpop.f32.mrf.mxu0
    %v3315 = vadd.f32 %v2811, %v3314
    %v3316 = vpop.f32.mrf.mxu0
    %3317 = vmatprep.mubr.f32.mxu0 0.0
    %3318 = vmatmul.mubr.f32.gmra.mxu0 %v2682
    %v3319 = vpop.f32.mrf.mxu0
    %v3320 = vadd.f32 %v2811, %v3319
    %v3321 = vpop.f32.mrf.mxu0
    %3322 = vmatprep.mubr.f32.mxu0 0.0
    %3323 = vmatmul.mubr.f32.gmra.mxu0 %v2683
    %v3324 = vpop.f32.mrf.mxu0
    %v3325 = vadd.f32 %v2811, %v3324
    %v3326 = vpop.f32.mrf.mxu0
    %3327 = vmatprep.mubr.f32.mxu0 0.0
    %3328 = vmatmul.mubr.f32.gmra.mxu0 %v2684
    %v3329 = vpop.f32.mrf.mxu0
    %v3330 = vadd.f32 %v2811, %v3329
    %v3331 = vpop.f32.mrf.mxu0
    %3332 = vmatprep.mubr.f32.mxu0 0.0
    %3333 = vmatmul.mubr.f32.gmra.mxu0 %v2685
    %v3334 = vpop.f32.mrf.mxu0
    %v3335 = vadd.f32 %v2811, %v3334
    %v3336 = vpop.f32.mrf.mxu0
    %3337 = vmatprep.mubr.f32.mxu0 0.0
    %3338 = vmatmul.mubr.f32.gmra.mxu0 %v2686
    %v3339 = vpop.f32.mrf.mxu0
    %v3340 = vadd.f32 %v2811, %v3339
    %v3341 = vpop.f32.mrf.mxu0
    %3342 = vmatprep.mubr.f32.mxu0 0.0
    %3343 = vmatmul.mubr.f32.gmra.mxu0 %v2687
    %v3344 = vpop.f32.mrf.mxu0
    %v3345 = vadd.f32 %v2811, %v3344
    %v3346 = vpop.f32.mrf.mxu0
    %3347 = vmatprep.mubr.f32.mxu0 0.0
    %3348 = vmatmul.mubr.f32.gmra.mxu0 %v2688
    %v3349 = vpop.f32.mrf.mxu0
    %v3350 = vadd.f32 %v2811, %v3349
    %v3351 = vpop.f32.mrf.mxu0
    %3352 = vmatprep.mubr.f32.mxu0 0.0
    %3353 = vmatmul.mubr.f32.gmra.mxu0 %v2689
    %v3354 = vpop.f32.mrf.mxu0
    %v3355 = vadd.f32 %v2811, %v3354
    %v3356 = vpop.f32.mrf.mxu0
    %3357 = vmatprep.mubr.f32.mxu0 0.0
    %3358 = vmatmul.mubr.f32.gmra.mxu0 %v2690
    %v3359 = vpop.f32.mrf.mxu0
    %v3360 = vadd.f32 %v2811, %v3359
    %v3361 = vpop.f32.mrf.mxu0
    %3362 = vmatprep.mubr.f32.mxu0 0.0
    %3363 = vmatmul.mubr.f32.gmra.mxu0 %v2691
    %v3364 = vpop.f32.mrf.mxu0
    %v3365 = vadd.f32 %v2811, %v3364
    %v3366 = vpop.f32.mrf.mxu0
    %3367 = vmatprep.mubr.f32.mxu0 0.0
    %3368 = vmatmul.mubr.f32.gmra.mxu0 %v2692
    %v3369 = vpop.f32.mrf.mxu0
    %v3370 = vadd.f32 %v2811, %v3369
    %v3371 = vpop.f32.mrf.mxu0
    %3372 = vmatprep.mubr.f32.mxu0 0.0
    %3373 = vmatmul.mubr.f32.gmra.mxu0 %v2693
    %v3374 = vpop.f32.mrf.mxu0
    %v3375 = vadd.f32 %v2811, %v3374
    %v3376 = vpop.f32.mrf.mxu0
    %3377 = vmatprep.mubr.f32.mxu0 0.0
    %3378 = vmatmul.mubr.f32.gmra.mxu0 %v2694
    %v3379 = vpop.f32.mrf.mxu0
    %v3380 = vadd.f32 %v2811, %v3379
    %v3381 = vpop.f32.mrf.mxu0
    %3382 = vmatprep.mubr.f32.mxu0 0.0
    %3383 = vmatmul.mubr.f32.gmra.mxu0 %v2695
    %v3384 = vpop.f32.mrf.mxu0
    %v3385 = vadd.f32 %v2811, %v3384
    %v3386 = vpop.f32.mrf.mxu0
    %3387 = vmatprep.mubr.f32.mxu0 0.0
    %3388 = vmatmul.mubr.f32.gmra.mxu0 %v2696
    %v3389 = vpop.f32.mrf.mxu0
    %v3390 = vadd.f32 %v2811, %v3389
    %v3391 = vpop.f32.mrf.mxu0
    %3392 = vmatprep.mubr.f32.mxu0 0.0
    %3393 = vmatmul.mubr.f32.gmra.mxu0 %v2697
    %v3394 = vpop.f32.mrf.mxu0
    %v3395 = vadd.f32 %v2811, %v3394
    %v3396 = vpop.f32.mrf.mxu0
    %3397 = vmatprep.mubr.f32.mxu0 0.0
    %3398 = vmatmul.mubr.f32.gmra.mxu0 %v2698
    %v3399 = vpop.f32.mrf.mxu0
    %v3400 = vadd.f32 %v2811, %v3399
    %v3401 = vpop.f32.mrf.mxu0
    %3402 = vmatprep.mubr.f32.mxu0 0.0
    %3403 = vmatmul.mubr.f32.gmra.mxu0 %v2699
    %v3404 = vpop.f32.mrf.mxu0
    %v3405 = vadd.f32 %v2811, %v3404
    %v3406 = vpop.f32.mrf.mxu0
    %3407 = vmatprep.mubr.f32.mxu0 0.0
    %3408 = vmatmul.mubr.f32.gmra.mxu0 %v2700
    %v3409 = vpop.f32.mrf.mxu0
    %v3410 = vadd.f32 %v2811, %v3409
    %v3411 = vpop.f32.mrf.mxu0
    %3412 = vmatprep.mubr.f32.mxu0 0.0
    %3413 = vmatmul.mubr.f32.gmra.mxu0 %v2701
    %v3414 = vpop.f32.mrf.mxu0
    %v3415 = vadd.f32 %v2811, %v3414
    %v3416 = vpop.f32.mrf.mxu0
    %3417 = vmatprep.mubr.f32.mxu0 0.0
    %3418 = vmatmul.mubr.f32.gmra.mxu0 %v2702
    %v3419 = vpop.f32.mrf.mxu0
    %v3420 = vadd.f32 %v2811, %v3419
    %v3421 = vpop.f32.mrf.mxu0
    %3422 = vmatprep.mubr.f32.mxu0 0.0
    %3423 = vmatmul.mubr.f32.gmra.mxu0 %v2703
    %v3424 = vpop.f32.mrf.mxu0
    %v3425 = vadd.f32 %v2811, %v3424
    %v3426 = vpop.f32.mrf.mxu0
    %3427 = vmatprep.mubr.f32.mxu0 0.0
    %3428 = vmatmul.mubr.f32.gmra.mxu0 %v2704
    %v3429 = vpop.f32.mrf.mxu0
    %v3430 = vadd.f32 %v2811, %v3429
    %v3431 = vpop.f32.mrf.mxu0
    %3432 = vmatprep.mubr.f32.mxu0 0.0
    %3433 = vmatmul.mubr.f32.gmra.mxu0 %v2705
    %v3434 = vpop.f32.mrf.mxu0
    %v3435 = vadd.f32 %v2811, %v3434
    %v3436 = vpop.f32.mrf.mxu0
    %3437 = vmatprep.mubr.f32.mxu0 0.0
    %3438 = vmatmul.mubr.f32.gmra.mxu0 %v2706
    %v3439 = vpop.f32.mrf.mxu0
    %v3440 = vadd.f32 %v2811, %v3439
    %v3441 = vpop.f32.mrf.mxu0
    %3442 = vmatprep.mubr.f32.mxu0 0.0
    %3443 = vmatmul.mubr.f32.gmra.mxu0 %v2707
    %v3444 = vpop.f32.mrf.mxu0
    %v3445 = vadd.f32 %v2811, %v3444
    %v3446 = vpop.f32.mrf.mxu0
    %3447 = vmatprep.mubr.f32.mxu0 0.0
    %3448 = vmatmul.mubr.f32.gmra.mxu0 %v2708
    %v3449 = vpop.f32.mrf.mxu0
    %v3450 = vadd.f32 %v2811, %v3449
    %v3451 = vpop.f32.mrf.mxu0
    %3452 = vmatprep.mubr.f32.mxu0 0.0
    %3453 = vmatmul.mubr.f32.gmra.mxu0 %v2709
    %v3454 = vpop.f32.mrf.mxu0
    %v3455 = vadd.f32 %v2811, %v3454
    %v3456 = vpop.f32.mrf.mxu0
    %3457 = vmatprep.mubr.f32.mxu0 0.0
    %3458 = vmatmul.mubr.f32.gmra.mxu0 %v2710
    %v3459 = vpop.f32.mrf.mxu0
    %v3460 = vadd.f32 %v2811, %v3459
    %v3461 = vpop.f32.mrf.mxu0
    %3462 = vmatprep.mubr.f32.mxu0 0.0
    %3463 = vmatmul.mubr.f32.gmra.mxu0 %v2711
    %v3464 = vpop.f32.mrf.mxu0
    %v3465 = vadd.f32 %v2811, %v3464
    %v3466 = vpop.f32.mrf.mxu0
    %3467 = vmatprep.mubr.f32.mxu0 0.0
    %3468 = vmatmul.mubr.f32.gmra.mxu0 %v2712
    %v3469 = vpop.f32.mrf.mxu0
    %v3470 = vadd.f32 %v2811, %v3469
    %v3471 = vpop.f32.mrf.mxu0
    %3472 = vmatprep.mubr.f32.mxu0 0.0
    %3473 = vmatmul.mubr.f32.gmra.mxu0 %v2713
    %v3474 = vpop.f32.mrf.mxu0
    %v3475 = vadd.f32 %v2811, %v3474
    %v3476 = vpop.f32.mrf.mxu0
    %3477 = vmatprep.mubr.f32.mxu0 0.0
    %3478 = vmatmul.mubr.f32.gmra.mxu0 %v2714
    %v3479 = vpop.f32.mrf.mxu0
    %v3480 = vadd.f32 %v2811, %v3479
    %v3481 = vpop.f32.mrf.mxu0
    %3482 = vmatprep.mubr.f32.mxu0 0.0
    %3483 = vmatmul.mubr.f32.gmra.mxu0 %v2715
    %v3484 = vpop.f32.mrf.mxu0
    %v3485 = vadd.f32 %v2811, %v3484
    %v3486 = vpop.f32.mrf.mxu0
    %3487 = vmatprep.mubr.f32.mxu0 0.0
    %3488 = vmatmul.mubr.f32.gmra.mxu0 %v2716
    %v3489 = vpop.f32.mrf.mxu0
    %v3490 = vadd.f32 %v2811, %v3489
    %v3491 = vpop.f32.mrf.mxu0
    %3492 = vmatprep.mubr.f32.mxu0 0.0
    %3493 = vmatmul.mubr.f32.gmra.mxu0 %v2717
    %v3494 = vpop.f32.mrf.mxu0
    %v3495 = vadd.f32 %v2811, %v3494
    %v3496 = vpop.f32.mrf.mxu0
    %3497 = vmatprep.mubr.f32.mxu0 0.0
    %3498 = vmatmul.mubr.f32.gmra.mxu0 %v2718
    %v3499 = vpop.f32.mrf.mxu0
    %v3500 = vadd.f32 %v2811, %v3499
    %v3501 = vpop.f32.mrf.mxu0
    %3502 = vmatprep.mubr.f32.mxu0 0.0
    %3503 = vmatmul.mubr.f32.gmra.mxu0 %v2719
    %v3504 = vpop.f32.mrf.mxu0
    %v3505 = vadd.f32 %v2811, %v3504
    %v3506 = vpop.f32.mrf.mxu0
    %3507 = vmatprep.mubr.f32.mxu0 0.0
    %3508 = vmatmul.mubr.f32.gmra.mxu0 %v2720
    %v3509 = vpop.f32.mrf.mxu0
    %v3510 = vadd.f32 %v2811, %v3509
    %v3511 = vpop.f32.mrf.mxu0
    %3512 = vmatprep.mubr.f32.mxu0 0.0
    %3513 = vmatmul.mubr.f32.gmra.mxu0 %v2721
    %v3514 = vpop.f32.mrf.mxu0
    %v3515 = vadd.f32 %v2811, %v3514
    %v3516 = vpop.f32.mrf.mxu0
    %3517 = vmatprep.mubr.f32.mxu0 0.0
    %3518 = vmatmul.mubr.f32.gmra.mxu0 %v2722
    %v3519 = vpop.f32.mrf.mxu0
    %v3520 = vadd.f32 %v2811, %v3519
    %v3521 = vpop.f32.mrf.mxu0
    %3522 = vmatprep.mubr.f32.mxu0 0.0
    %3523 = vmatmul.mubr.f32.gmra.mxu0 %v2723
    %v3524 = vpop.f32.mrf.mxu0
    %v3525 = vadd.f32 %v2811, %v3524
    %v3526 = vpop.f32.mrf.mxu0
    %3527 = vmatprep.mubr.f32.mxu0 0.0
    %3528 = vmatmul.mubr.f32.gmra.mxu0 %v2724
    %v3529 = vpop.f32.mrf.mxu0
    %v3530 = vadd.f32 %v2811, %v3529
    %v3531 = vpop.f32.mrf.mxu0
    %3532 = vmatprep.mubr.f32.mxu0 0.0
    %3533 = vmatmul.mubr.f32.gmra.mxu0 %v2725
    %v3534 = vpop.f32.mrf.mxu0
    %v3535 = vadd.f32 %v2811, %v3534
    %v3536 = vpop.f32.mrf.mxu0
    %3537 = vmatprep.mubr.f32.mxu0 0.0
    %3538 = vmatmul.mubr.f32.gmra.mxu0 %v2726
    %v3539 = vpop.f32.mrf.mxu0
    %v3540 = vadd.f32 %v2811, %v3539
    %v3541 = vpop.f32.mrf.mxu0
    %3542 = vmatprep.mubr.f32.mxu0 0.0
    %3543 = vmatmul.mubr.f32.gmra.mxu0 %v2727
    %v3544 = vpop.f32.mrf.mxu0
    %v3545 = vadd.f32 %v2811, %v3544
    %v3546 = vpop.f32.mrf.mxu0
    %3547 = vmatprep.mubr.f32.mxu0 0.0
    %3548 = vmatmul.mubr.f32.gmra.mxu0 %v2728
    %v3549 = vpop.f32.mrf.mxu0
    %v3550 = vadd.f32 %v2811, %v3549
    %v3551 = vpop.f32.mrf.mxu0
    %3552 = vmatprep.mubr.f32.mxu0 0.0
    %3553 = vmatmul.mubr.f32.gmra.mxu0 %v2729
    %v3554 = vpop.f32.mrf.mxu0
    %v3555 = vadd.f32 %v2811, %v3554
    %v3556 = vpop.f32.mrf.mxu0
    %3557 = vmatprep.mubr.f32.mxu0 0.0
    %3558 = vmatmul.mubr.f32.gmra.mxu0 %v2730
    %v3559 = vpop.f32.mrf.mxu0
    %v3560 = vadd.f32 %v2811, %v3559
    %v3561 = vpop.f32.mrf.mxu0
    %3562 = vmatprep.mubr.f32.mxu0 0.0
    %3563 = vmatmul.mubr.f32.gmra.mxu0 %v2731
    %v3564 = vpop.f32.mrf.mxu0
    %v3565 = vadd.f32 %v2811, %v3564
    %v3566 = vpop.f32.mrf.mxu0
    %3567 = vmatprep.mubr.f32.mxu0 0.0
    %3568 = vmatmul.mubr.f32.gmra.mxu0 %v2732
    %v3569 = vpop.f32.mrf.mxu0
    %v3570 = vadd.f32 %v2811, %v3569
    %v3571 = vpop.f32.mrf.mxu0
    %3572 = vmatprep.mubr.f32.mxu0 0.0
    %3573 = vmatmul.mubr.f32.gmra.mxu0 %v2733
    %v3574 = vpop.f32.mrf.mxu0
    %v3575 = vadd.f32 %v2811, %v3574
    %v3576 = vpop.f32.mrf.mxu0
    %3577 = vmatprep.mubr.f32.mxu0 0.0
    %3578 = vmatmul.mubr.f32.gmra.mxu0 %v2734
    %v3579 = vpop.f32.mrf.mxu0
    %v3580 = vadd.f32 %v2811, %v3579
    %v3581 = vpop.f32.mrf.mxu0
    %3582 = vmatprep.mubr.f32.mxu0 0.0
    %3583 = vmatmul.mubr.f32.gmra.mxu0 %v2735
    %v3584 = vpop.f32.mrf.mxu0
    %v3585 = vadd.f32 %v2811, %v3584
    %v3586 = vpop.f32.mrf.mxu0
    %3587 = vmatprep.mubr.f32.mxu0 0.0
    %3588 = vmatmul.mubr.f32.gmra.mxu0 %v2736
    %v3589 = vpop.f32.mrf.mxu0
    %v3590 = vadd.f32 %v2811, %v3589
    %v3591 = vpop.f32.mrf.mxu0
    %3592 = vmatprep.mubr.f32.mxu0 0.0
    %3593 = vmatmul.mubr.f32.gmra.mxu0 %v2737
    %v3594 = vpop.f32.mrf.mxu0
    %v3595 = vadd.f32 %v2811, %v3594
    %v3596 = vpop.f32.mrf.mxu0
    %3597 = vmatprep.mubr.f32.mxu0 0.0
    %3598 = vmatmul.mubr.f32.gmra.mxu0 %v2738
    %v3599 = vpop.f32.mrf.mxu0
    %v3600 = vadd.f32 %v2811, %v3599
    %v3601 = vpop.f32.mrf.mxu0
    %3602 = vmatprep.mubr.f32.mxu0 0.0
    %3603 = vmatmul.mubr.f32.gmra.mxu0 %v2739
    %v3604 = vpop.f32.mrf.mxu0
    %v3605 = vadd.f32 %v2811, %v3604
    %v3606 = vpop.f32.mrf.mxu0
    %3607 = vmatprep.mubr.f32.mxu0 0.0
    %3608 = vmatmul.mubr.f32.gmra.mxu0 %v2740
    %v3609 = vpop.f32.mrf.mxu0
    %v3610 = vadd.f32 %v2811, %v3609
    %v3611 = vpop.f32.mrf.mxu0
    %3612 = vmatprep.mubr.f32.mxu0 0.0
    %3613 = vmatmul.mubr.f32.gmra.mxu0 %v2741
    %v3614 = vpop.f32.mrf.mxu0
    %v3615 = vadd.f32 %v2811, %v3614
    %v3616 = vpop.f32.mrf.mxu0
    %3617 = vmatprep.mubr.f32.mxu0 0.0
    %3618 = vmatmul.mubr.f32.gmra.mxu0 %v2742
    %v3619 = vpop.f32.mrf.mxu0
    %v3620 = vadd.f32 %v2811, %v3619
    %v3621 = vpop.f32.mrf.mxu0
    %3622 = vmatprep.mubr.f32.mxu0 0.0
    %3623 = vmatmul.mubr.f32.gmra.mxu0 %v2743
    %v3624 = vpop.f32.mrf.mxu0
    %v3625 = vadd.f32 %v2811, %v3624
    %v3626 = vpop.f32.mrf.mxu0
    %3627 = vmatprep.mubr.f32.mxu0 0.0
    %3628 = vmatmul.mubr.f32.gmra.mxu0 %v2744
    %v3629 = vpop.f32.mrf.mxu0
    %v3630 = vadd.f32 %v2811, %v3629
    %v3631 = vpop.f32.mrf.mxu0
    %3632 = vmatprep.mubr.f32.mxu0 0.0
    %3633 = vmatmul.mubr.f32.gmra.mxu0 %v2745
    %v3634 = vpop.f32.mrf.mxu0
    %v3635 = vadd.f32 %v2811, %v3634
    %v3636 = vpop.f32.mrf.mxu0
    %3637 = vmatprep.mubr.f32.mxu0 0.0
    %3638 = vmatmul.mubr.f32.gmra.mxu0 %v2746
    %v3639 = vpop.f32.mrf.mxu0
    %v3640 = vadd.f32 %v2811, %v3639
    %v3641 = vpop.f32.mrf.mxu0
    %3642 = vmatprep.mubr.f32.mxu0 0.0
    %3643 = vmatmul.mubr.f32.gmra.mxu0 %v2747
    %v3644 = vpop.f32.mrf.mxu0
    %v3645 = vadd.f32 %v2811, %v3644
    %v3646 = vpop.f32.mrf.mxu0
    %3647 = vmatprep.mubr.f32.mxu0 0.0
    %3648 = vmatmul.mubr.f32.gmra.mxu0 %v2748
    %v3649 = vpop.f32.mrf.mxu0
    %v3650 = vadd.f32 %v2811, %v3649
    %v3651 = vpop.f32.mrf.mxu0
    %3652 = vmatprep.mubr.f32.mxu0 0.0
    %3653 = vmatmul.mubr.f32.gmra.mxu0 %v2749
    %v3654 = vpop.f32.mrf.mxu0
    %v3655 = vadd.f32 %v2811, %v3654
    %v3656 = vpop.f32.mrf.mxu0
    %3657 = vmatprep.mubr.f32.mxu0 0.0
    %3658 = vmatmul.mubr.f32.gmra.mxu0 %v2750
    %v3659 = vpop.f32.mrf.mxu0
    %v3660 = vadd.f32 %v2811, %v3659
    %v3661 = vpop.f32.mrf.mxu0
    %3662 = vmatprep.mubr.f32.mxu0 0.0
    %3663 = vmatmul.mubr.f32.gmra.mxu0 %v2751
    %v3664 = vpop.f32.mrf.mxu0
    %v3665 = vadd.f32 %v2811, %v3664
    %v3666 = vpop.f32.mrf.mxu0
    %3667 = vmatprep.mubr.f32.mxu0 0.0
    %3668 = vmatmul.mubr.f32.gmra.mxu0 %v2752
    %v3669 = vpop.f32.mrf.mxu0
    %v3670 = vadd.f32 %v2811, %v3669
    %v3671 = vpop.f32.mrf.mxu0
    %3672 = vmatprep.mubr.f32.mxu0 0.0
    %3673 = vmatmul.mubr.f32.gmra.mxu0 %v2753
    %v3674 = vpop.f32.mrf.mxu0
    %v3675 = vadd.f32 %v2811, %v3674
    %v3676 = vpop.f32.mrf.mxu0
    %3677 = vmatprep.mubr.f32.mxu0 0.0
    %3678 = vmatmul.mubr.f32.gmra.mxu0 %v2754
    %v3679 = vpop.f32.mrf.mxu0
    %v3680 = vadd.f32 %v2811, %v3679
    %v3681 = vpop.f32.mrf.mxu0
    %3682 = vmatprep.mubr.f32.mxu0 0.0
    %3683 = vmatmul.mubr.f32.gmra.mxu0 %v2755
    %v3684 = vpop.f32.mrf.mxu0
    %v3685 = vadd.f32 %v2811, %v3684
    %v3686 = vpop.f32.mrf.mxu0
    %3687 = vmatprep.mubr.f32.mxu0 0.0
    %3688 = vmatmul.mubr.f32.gmra.mxu0 %v2756
    %v3689 = vpop.f32.mrf.mxu0
    %v3690 = vadd.f32 %v2811, %v3689
    %v3691 = vpop.f32.mrf.mxu0
    %3692 = vmatprep.mubr.f32.mxu0 0.0
    %3693 = vmatmul.mubr.f32.gmra.mxu0 %v2757
    %v3694 = vpop.f32.mrf.mxu0
    %v3695 = vadd.f32 %v2811, %v3694
    %v3696 = vpop.f32.mrf.mxu0
    %3697 = vmatprep.mubr.f32.mxu0 0.0
    %3698 = vmatmul.mubr.f32.gmra.mxu0 %v2758
    %v3699 = vpop.f32.mrf.mxu0
    %v3700 = vadd.f32 %v2811, %v3699
    %v3701 = vpop.f32.mrf.mxu0
    %3702 = vmatprep.mubr.f32.mxu0 0.0
    %3703 = vmatmul.mubr.f32.gmra.mxu0 %v2759
    %v3704 = vpop.f32.mrf.mxu0
    %v3705 = vadd.f32 %v2811, %v3704
    %v3706 = vpop.f32.mrf.mxu0
    %3707 = vmatprep.mubr.f32.mxu0 0.0
    %3708 = vmatmul.mubr.f32.gmra.mxu0 %v2760
    %v3709 = vpop.f32.mrf.mxu0
    %v3710 = vadd.f32 %v2811, %v3709
    %v3711 = vpop.f32.mrf.mxu0
    %3712 = vmatprep.mubr.f32.mxu0 0.0
    %3713 = vmatmul.mubr.f32.gmra.mxu0 %v2761
    %v3714 = vpop.f32.mrf.mxu0
    %v3715 = vadd.f32 %v2811, %v3714
    %v3716 = vpop.f32.mrf.mxu0
    %3717 = vmatprep.mubr.f32.mxu0 0.0
    %3718 = vmatmul.mubr.f32.gmra.mxu0 %v2762
    %v3719 = vpop.f32.mrf.mxu0
    %v3720 = vadd.f32 %v2811, %v3719
    %v3721 = vpop.f32.mrf.mxu0
    %3722 = vmatprep.mubr.f32.mxu0 0.0
    %3723 = vmatmul.mubr.f32.gmra.mxu0 %v2763
    %v3724 = vpop.f32.mrf.mxu0
    %v3725 = vadd.f32 %v2811, %v3724
    %v3726 = vpop.f32.mrf.mxu0
    %3727 = vmatprep.mubr.f32.mxu0 0.0
    %3728 = vmatmul.mubr.f32.gmra.mxu0 %v2764
    %v3729 = vpop.f32.mrf.mxu0
    %v3730 = vadd.f32 %v2811, %v3729
    %v3731 = vpop.f32.mrf.mxu0
    %3732 = vmatprep.mubr.f32.mxu0 0.0
    %3733 = vmatmul.mubr.f32.gmra.mxu0 %v2765
    %v3734 = vpop.f32.mrf.mxu0
    %v3735 = vadd.f32 %v2811, %v3734
    %v3736 = vpop.f32.mrf.mxu0
    %3737 = vmatprep.mubr.f32.mxu0 0.0
    %3738 = vmatmul.mubr.f32.gmra.mxu0 %v2766
    %v3739 = vpop.f32.mrf.mxu0
    %v3740 = vadd.f32 %v2811, %v3739
    %v3741 = vpop.f32.mrf.mxu0
    %3742 = vmatprep.mubr.f32.mxu0 0.0
    %3743 = vmatmul.mubr.f32.gmra.mxu0 %v2767
    %v3744 = vpop.f32.mrf.mxu0
    %v3745 = vadd.f32 %v2811, %v3744
    %v3746 = vpop.f32.mrf.mxu0
    %3747 = vmatprep.mubr.f32.mxu0 0.0
    %3748 = vmatmul.mubr.f32.gmra.mxu0 %v2768
    %v3749 = vpop.f32.mrf.mxu0
    %v3750 = vadd.f32 %v2811, %v3749
    %v3751 = vpop.f32.mrf.mxu0
    %3752 = vmatprep.mubr.f32.mxu0 0.0
    %3753 = vmatmul.mubr.f32.gmra.mxu0 %v2769
    %v3754 = vpop.f32.mrf.mxu0
    %v3755 = vadd.f32 %v2811, %v3754
    %v3756 = vpop.f32.mrf.mxu0
    %3757 = vmatprep.mubr.f32.mxu0 0.0
    %3758 = vmatmul.mubr.f32.gmra.mxu0 %v2770
    %v3759 = vpop.f32.mrf.mxu0
    %v3760 = vadd.f32 %v2811, %v3759
    %v3761 = vpop.f32.mrf.mxu0
    %3762 = vmatprep.mubr.f32.mxu0 0.0
    %3763 = vmatmul.mubr.f32.gmra.mxu0 %v2771
    %v3764 = vpop.f32.mrf.mxu0
    %v3765 = vadd.f32 %v2811, %v3764
    %v3766 = vpop.f32.mrf.mxu0
    %3767 = vmatprep.mubr.f32.mxu0 0.0
    %3768 = vmatmul.mubr.f32.gmra.mxu0 %v2772
    %v3769 = vpop.f32.mrf.mxu0
    %v3770 = vadd.f32 %v2811, %v3769
    %v3771 = vpop.f32.mrf.mxu0
    %3772 = vmatprep.mubr.f32.mxu0 0.0
    %3773 = vmatmul.mubr.f32.gmra.mxu0 %v2773
    %v3774 = vpop.f32.mrf.mxu0
    %v3775 = vadd.f32 %v2811, %v3774
    %v3776 = vpop.f32.mrf.mxu0
    %3777 = vmatprep.mubr.f32.mxu0 0.0
    %3778 = vmatmul.mubr.f32.gmra.mxu0 %v2774
    %v3779 = vpop.f32.mrf.mxu0
    %v3780 = vadd.f32 %v2811, %v3779
    %v3781 = vpop.f32.mrf.mxu0
    %3782 = vmatprep.mubr.f32.mxu0 0.0
    %3783 = vmatmul.mubr.f32.gmra.mxu0 %v2775
    %v3784 = vpop.f32.mrf.mxu0
    %v3785 = vadd.f32 %v2811, %v3784
    %v3786 = vpop.f32.mrf.mxu0
    %3787 = vmatprep.mubr.f32.mxu0 0.0
    %3788 = vmatmul.mubr.f32.gmra.mxu0 %v2776
    %v3789 = vpop.f32.mrf.mxu0
    %v3790 = vadd.f32 %v2811, %v3789
    %v3791 = vpop.f32.mrf.mxu0
    %3792 = vmatprep.mubr.f32.mxu0 0.0
    %3793 = vmatmul.mubr.f32.gmra.mxu0 %v2777
    %v3794 = vpop.f32.mrf.mxu0
    %v3795 = vadd.f32 %v2811, %v3794
    %v3796 = vpop.f32.mrf.mxu0
    %3797 = vmatprep.mubr.f32.mxu0 0.0
    %3798 = vmatmul.mubr.f32.gmra.mxu0 %v2778
    %v3799 = vpop.f32.mrf.mxu0
    %v3800 = vadd.f32 %v2811, %v3799
    %v3801 = vpop.f32.mrf.mxu0
    %3802 = vmatprep.mubr.f32.mxu0 0.0
    %3803 = vmatmul.mubr.f32.gmra.mxu0 %v2779
    %v3804 = vpop.f32.mrf.mxu0
    %v3805 = vadd.f32 %v2811, %v3804
    %v3806 = vpop.f32.mrf.mxu0
    %3807 = vmatprep.mubr.f32.mxu0 0.0
    %3808 = vmatmul.mubr.f32.gmra.mxu0 %v2780
    %v3809 = vpop.f32.mrf.mxu0
    %v3810 = vadd.f32 %v2811, %v3809
    %v3811 = vpop.f32.mrf.mxu0
    %3812 = vmatprep.mubr.f32.mxu0 0.0
    %3813 = vmatmul.mubr.f32.gmra.mxu0 %v2781
    %v3814 = vpop.f32.mrf.mxu0
    %v3815 = vadd.f32 %v2811, %v3814
    %v3816 = vpop.f32.mrf.mxu0
    %3817 = vmatprep.mubr.f32.mxu0 0.0
    %3818 = vmatmul.mubr.f32.gmra.mxu0 %v2782
    %v3819 = vpop.f32.mrf.mxu0
    %v3820 = vadd.f32 %v2811, %v3819
    %v3821 = vpop.f32.mrf.mxu0
    %3822 = vmatprep.mubr.f32.mxu0 0.0
    %3823 = vmatmul.mubr.f32.gmra.mxu0 %v2783
    %v3824 = vpop.f32.mrf.mxu0
    %v3825 = vadd.f32 %v2811, %v3824
    %v3826 = vpop.f32.mrf.mxu0
    %3827 = vmatprep.mubr.f32.mxu0 0.0
    %3828 = vmatmul.mubr.f32.gmra.mxu0 %v2784
    %v3829 = vpop.f32.mrf.mxu0
    %v3830 = vadd.f32 %v2811, %v3829
    %v3831 = vpop.f32.mrf.mxu0
    %3832 = vmatprep.mubr.f32.mxu0 0.0
    %3833 = vmatmul.mubr.f32.gmra.mxu0 %v2785
    %v3834 = vpop.f32.mrf.mxu0
    %v3835 = vadd.f32 %v2811, %v3834
    %v3836 = vpop.f32.mrf.mxu0
    %3837 = vmatprep.mubr.f32.mxu0 0.0
    %3838 = vmatmul.mubr.f32.gmra.mxu0 %v2786
    %v3839 = vpop.f32.mrf.mxu0
    %v3840 = vadd.f32 %v2811, %v3839
    %v3841 = vpop.f32.mrf.mxu0
    %3842 = vmatprep.mubr.f32.mxu0 0.0
    %3843 = vmatmul.mubr.f32.gmra.mxu0 %v2787
    %v3844 = vpop.f32.mrf.mxu0
    %v3845 = vadd.f32 %v2811, %v3844
    %v3846 = vpop.f32.mrf.mxu0
    %3847 = vmatprep.mubr.f32.mxu0 0.0
    %3848 = vmatmul.mubr.f32.gmra.mxu0 %v2788
    %v3849 = vpop.f32.mrf.mxu0
    %v3850 = vadd.f32 %v2811, %v3849
    %v3851 = vpop.f32.mrf.mxu0
    %3852 = vmatprep.mubr.f32.mxu0 0.0
    %3853 = vmatmul.mubr.f32.gmra.mxu0 %v2789
    %v3854 = vpop.f32.mrf.mxu0
    %v3855 = vadd.f32 %v2811, %v3854
    %v3856 = vpop.f32.mrf.mxu0
    %3857 = vdwg.mxu0
    %s3858 = sld [smem:[#allocation2 + $0x2]]
    %vm3859 = vcmp.gt.f32.partialorder %v2880, 0.0
    %vm3860 = vcmp.gt.f32.partialorder %v2885, 0.0
    %vm3861 = vcmp.gt.f32.partialorder %v2890, 0.0
    %vm3862 = vcmp.gt.f32.partialorder %v2895, 0.0
    %vm3863 = vcmp.gt.f32.partialorder %v2900, 0.0
    %vm3864 = vcmp.gt.f32.partialorder %v2905, 0.0
    %vm3865 = vcmp.gt.f32.partialorder %v2910, 0.0
    %vm3866 = vcmp.gt.f32.partialorder %v2915, 0.0
    %vm3867 = vcmp.gt.f32.partialorder %v2920, 0.0
    %vm3868 = vcmp.gt.f32.partialorder %v2925, 0.0
    %vm3869 = vcmp.gt.f32.partialorder %v2930, 0.0
    %vm3870 = vcmp.gt.f32.partialorder %v2935, 0.0
    %vm3871 = vcmp.gt.f32.partialorder %v2940, 0.0
    %vm3872 = vcmp.gt.f32.partialorder %v2945, 0.0
    %vm3873 = vcmp.gt.f32.partialorder %v2950, 0.0
    %vm3874 = vcmp.gt.f32.partialorder %v2955, 0.0
    %vm3875 = vcmp.gt.f32.partialorder %v2960, 0.0
    %vm3876 = vcmp.gt.f32.partialorder %v2965, 0.0
    %vm3877 = vcmp.gt.f32.partialorder %v2970, 0.0
    %vm3878 = vcmp.gt.f32.partialorder %v2975, 0.0
    %vm3879 = vcmp.gt.f32.partialorder %v2980, 0.0
    %vm3880 = vcmp.gt.f32.partialorder %v2985, 0.0
    %vm3881 = vcmp.gt.f32.partialorder %v2990, 0.0
    %vm3882 = vcmp.gt.f32.partialorder %v2995, 0.0
    %vm3883 = vcmp.gt.f32.partialorder %v3000, 0.0
    %vm3884 = vcmp.gt.f32.partialorder %v3005, 0.0
    %vm3885 = vcmp.gt.f32.partialorder %v3010, 0.0
    %vm3886 = vcmp.gt.f32.partialorder %v3015, 0.0
    %vm3887 = vcmp.gt.f32.partialorder %v3020, 0.0
    %vm3888 = vcmp.gt.f32.partialorder %v3025, 0.0
    %vm3889 = vcmp.gt.f32.partialorder %v3030, 0.0
    %vm3890 = vcmp.gt.f32.partialorder %v3035, 0.0
    %vm3891 = vcmp.gt.f32.partialorder %v3040, 0.0
    %vm3892 = vcmp.gt.f32.partialorder %v3045, 0.0
    %vm3893 = vcmp.gt.f32.partialorder %v3050, 0.0
    %vm3894 = vcmp.gt.f32.partialorder %v3055, 0.0
    %vm3895 = vcmp.gt.f32.partialorder %v3060, 0.0
    %vm3896 = vcmp.gt.f32.partialorder %v3065, 0.0
    %vm3897 = vcmp.gt.f32.partialorder %v3070, 0.0
    %vm3898 = vcmp.gt.f32.partialorder %v3075, 0.0
    %vm3899 = vcmp.gt.f32.partialorder %v3080, 0.0
    %vm3900 = vcmp.gt.f32.partialorder %v3085, 0.0
    %vm3901 = vcmp.gt.f32.partialorder %v3090, 0.0
    %vm3902 = vcmp.gt.f32.partialorder %v3095, 0.0
    %vm3903 = vcmp.gt.f32.partialorder %v3100, 0.0
    %vm3904 = vcmp.gt.f32.partialorder %v3105, 0.0
    %vm3905 = vcmp.gt.f32.partialorder %v3110, 0.0
    %vm3906 = vcmp.gt.f32.partialorder %v3115, 0.0
    %vm3907 = vcmp.gt.f32.partialorder %v3120, 0.0
    %vm3908 = vcmp.gt.f32.partialorder %v3125, 0.0
    %vm3909 = vcmp.gt.f32.partialorder %v3130, 0.0
    %vm3910 = vcmp.gt.f32.partialorder %v3135, 0.0
    %vm3911 = vcmp.gt.f32.partialorder %v3140, 0.0
    %vm3912 = vcmp.gt.f32.partialorder %v3145, 0.0
    %vm3913 = vcmp.gt.f32.partialorder %v3150, 0.0
    %vm3914 = vcmp.gt.f32.partialorder %v3155, 0.0
    %vm3915 = vcmp.gt.f32.partialorder %v3160, 0.0
    %vm3916 = vcmp.gt.f32.partialorder %v3165, 0.0
    %vm3917 = vcmp.gt.f32.partialorder %v3170, 0.0
    %vm3918 = vcmp.gt.f32.partialorder %v3175, 0.0
    %vm3919 = vcmp.gt.f32.partialorder %v3180, 0.0
    %vm3920 = vcmp.gt.f32.partialorder %v3185, 0.0
    %vm3921 = vcmp.gt.f32.partialorder %v3190, 0.0
    %vm3922 = vcmp.gt.f32.partialorder %v3195, 0.0
    %vm3923 = vcmp.gt.f32.partialorder %v3200, 0.0
    %vm3924 = vcmp.gt.f32.partialorder %v3205, 0.0
    %vm3925 = vcmp.gt.f32.partialorder %v3210, 0.0
    %vm3926 = vcmp.gt.f32.partialorder %v3215, 0.0
    %vm3927 = vcmp.gt.f32.partialorder %v3220, 0.0
    %vm3928 = vcmp.gt.f32.partialorder %v3225, 0.0
    %vm3929 = vcmp.gt.f32.partialorder %v3230, 0.0
    %vm3930 = vcmp.gt.f32.partialorder %v3235, 0.0
    %vm3931 = vcmp.gt.f32.partialorder %v3240, 0.0
    %vm3932 = vcmp.gt.f32.partialorder %v3245, 0.0
    %vm3933 = vcmp.gt.f32.partialorder %v3250, 0.0
    %vm3934 = vcmp.gt.f32.partialorder %v3255, 0.0
    %vm3935 = vcmp.gt.f32.partialorder %v3260, 0.0
    %vm3936 = vcmp.gt.f32.partialorder %v3265, 0.0
    %vm3937 = vcmp.gt.f32.partialorder %v3270, 0.0
    %vm3938 = vcmp.gt.f32.partialorder %v3275, 0.0
    %vm3939 = vcmp.gt.f32.partialorder %v3280, 0.0
    %vm3940 = vcmp.gt.f32.partialorder %v3285, 0.0
    %vm3941 = vcmp.gt.f32.partialorder %v3290, 0.0
    %vm3942 = vcmp.gt.f32.partialorder %v3295, 0.0
    %vm3943 = vcmp.gt.f32.partialorder %v3300, 0.0
    %vm3944 = vcmp.gt.f32.partialorder %v3305, 0.0
    %vm3945 = vcmp.gt.f32.partialorder %v3310, 0.0
    %vm3946 = vcmp.gt.f32.partialorder %v3315, 0.0
    %vm3947 = vcmp.gt.f32.partialorder %v3320, 0.0
    %vm3948 = vcmp.gt.f32.partialorder %v3325, 0.0
    %vm3949 = vcmp.gt.f32.partialorder %v3330, 0.0
    %vm3950 = vcmp.gt.f32.partialorder %v3335, 0.0
    %vm3951 = vcmp.gt.f32.partialorder %v3340, 0.0
    %vm3952 = vcmp.gt.f32.partialorder %v3345, 0.0
    %vm3953 = vcmp.gt.f32.partialorder %v3350, 0.0
    %vm3954 = vcmp.gt.f32.partialorder %v3355, 0.0
    %vm3955 = vcmp.gt.f32.partialorder %v3360, 0.0
    %vm3956 = vcmp.gt.f32.partialorder %v3365, 0.0
    %vm3957 = vcmp.gt.f32.partialorder %v3370, 0.0
    %vm3958 = vcmp.gt.f32.partialorder %v3375, 0.0
    %vm3959 = vcmp.gt.f32.partialorder %v3380, 0.0
    %vm3960 = vcmp.gt.f32.partialorder %v3385, 0.0
    %vm3961 = vcmp.gt.f32.partialorder %v3390, 0.0
    %vm3962 = vcmp.gt.f32.partialorder %v3395, 0.0
    %vm3963 = vcmp.gt.f32.partialorder %v3400, 0.0
    %vm3964 = vcmp.gt.f32.partialorder %v3405, 0.0
    %vm3965 = vcmp.gt.f32.partialorder %v3410, 0.0
    %vm3966 = vcmp.gt.f32.partialorder %v3415, 0.0
    %vm3967 = vcmp.gt.f32.partialorder %v3420, 0.0
    %vm3968 = vcmp.gt.f32.partialorder %v3425, 0.0
    %vm3969 = vcmp.gt.f32.partialorder %v3430, 0.0
    %vm3970 = vcmp.gt.f32.partialorder %v3435, 0.0
    %vm3971 = vcmp.gt.f32.partialorder %v3440, 0.0
    %vm3972 = vcmp.gt.f32.partialorder %v3445, 0.0
    %vm3973 = vcmp.gt.f32.partialorder %v3450, 0.0
    %vm3974 = vcmp.gt.f32.partialorder %v3455, 0.0
    %vm3975 = vcmp.gt.f32.partialorder %v3460, 0.0
    %vm3976 = vcmp.gt.f32.partialorder %v3465, 0.0
    %vm3977 = vcmp.gt.f32.partialorder %v3470, 0.0
    %vm3978 = vcmp.gt.f32.partialorder %v3475, 0.0
    %vm3979 = vcmp.gt.f32.partialorder %v3480, 0.0
    %vm3980 = vcmp.gt.f32.partialorder %v3485, 0.0
    %vm3981 = vcmp.gt.f32.partialorder %v3490, 0.0
    %vm3982 = vcmp.gt.f32.partialorder %v3495, 0.0
    %vm3983 = vcmp.gt.f32.partialorder %v3500, 0.0
    %vm3984 = vcmp.gt.f32.partialorder %v3505, 0.0
    %vm3985 = vcmp.gt.f32.partialorder %v3510, 0.0
    %vm3986 = vcmp.gt.f32.partialorder %v3515, 0.0
    %vm3987 = vcmp.gt.f32.partialorder %v3520, 0.0
    %vm3988 = vcmp.gt.f32.partialorder %v3525, 0.0
    %vm3989 = vcmp.gt.f32.partialorder %v3530, 0.0
    %vm3990 = vcmp.gt.f32.partialorder %v3535, 0.0
    %vm3991 = vcmp.gt.f32.partialorder %v3540, 0.0
    %vm3992 = vcmp.gt.f32.partialorder %v3545, 0.0
    %vm3993 = vcmp.gt.f32.partialorder %v3550, 0.0
    %vm3994 = vcmp.gt.f32.partialorder %v3555, 0.0
    %vm3995 = vcmp.gt.f32.partialorder %v3560, 0.0
    %vm3996 = vcmp.gt.f32.partialorder %v3565, 0.0
    %vm3997 = vcmp.gt.f32.partialorder %v3570, 0.0
    %vm3998 = vcmp.gt.f32.partialorder %v3575, 0.0
    %vm3999 = vcmp.gt.f32.partialorder %v3580, 0.0
    %vm4000 = vcmp.gt.f32.partialorder %v3585, 0.0
    %vm4001 = vcmp.gt.f32.partialorder %v3590, 0.0
    %vm4002 = vcmp.gt.f32.partialorder %v3595, 0.0
    %vm4003 = vcmp.gt.f32.partialorder %v3600, 0.0
    %vm4004 = vcmp.gt.f32.partialorder %v3605, 0.0
    %vm4005 = vcmp.gt.f32.partialorder %v3610, 0.0
    %vm4006 = vcmp.gt.f32.partialorder %v3615, 0.0
    %vm4007 = vcmp.gt.f32.partialorder %v3620, 0.0
    %vm4008 = vcmp.gt.f32.partialorder %v3625, 0.0
    %vm4009 = vcmp.gt.f32.partialorder %v3630, 0.0
    %vm4010 = vcmp.gt.f32.partialorder %v3635, 0.0
    %vm4011 = vcmp.gt.f32.partialorder %v3640, 0.0
    %vm4012 = vcmp.gt.f32.partialorder %v3645, 0.0
    %vm4013 = vcmp.gt.f32.partialorder %v3650, 0.0
    %vm4014 = vcmp.gt.f32.partialorder %v3655, 0.0
    %vm4015 = vcmp.gt.f32.partialorder %v3660, 0.0
    %vm4016 = vcmp.gt.f32.partialorder %v3665, 0.0
    %vm4017 = vcmp.gt.f32.partialorder %v3670, 0.0
    %vm4018 = vcmp.gt.f32.partialorder %v3675, 0.0
    %vm4019 = vcmp.gt.f32.partialorder %v3680, 0.0
    %vm4020 = vcmp.gt.f32.partialorder %v3685, 0.0
    %vm4021 = vcmp.gt.f32.partialorder %v3690, 0.0
    %vm4022 = vcmp.gt.f32.partialorder %v3695, 0.0
    %vm4023 = vcmp.gt.f32.partialorder %v3700, 0.0
    %vm4024 = vcmp.gt.f32.partialorder %v3705, 0.0
    %vm4025 = vcmp.gt.f32.partialorder %v3710, 0.0
    %vm4026 = vcmp.gt.f32.partialorder %v3715, 0.0
    %vm4027 = vcmp.gt.f32.partialorder %v3720, 0.0
    %vm4028 = vcmp.gt.f32.partialorder %v3725, 0.0
    %vm4029 = vcmp.gt.f32.partialorder %v3730, 0.0
    %vm4030 = vcmp.gt.f32.partialorder %v3735, 0.0
    %vm4031 = vcmp.gt.f32.partialorder %v3740, 0.0
    %vm4032 = vcmp.gt.f32.partialorder %v3745, 0.0
    %vm4033 = vcmp.gt.f32.partialorder %v3750, 0.0
    %vm4034 = vcmp.gt.f32.partialorder %v3755, 0.0
    %vm4035 = vcmp.gt.f32.partialorder %v3760, 0.0
    %vm4036 = vcmp.gt.f32.partialorder %v3765, 0.0
    %vm4037 = vcmp.gt.f32.partialorder %v3770, 0.0
    %vm4038 = vcmp.gt.f32.partialorder %v3775, 0.0
    %vm4039 = vcmp.gt.f32.partialorder %v3780, 0.0
    %vm4040 = vcmp.gt.f32.partialorder %v3785, 0.0
    %vm4041 = vcmp.gt.f32.partialorder %v3790, 0.0
    %vm4042 = vcmp.gt.f32.partialorder %v3795, 0.0
    %vm4043 = vcmp.gt.f32.partialorder %v3800, 0.0
    %vm4044 = vcmp.gt.f32.partialorder %v3805, 0.0
    %vm4045 = vcmp.gt.f32.partialorder %v3810, 0.0
    %vm4046 = vcmp.gt.f32.partialorder %v3815, 0.0
    %vm4047 = vcmp.gt.f32.partialorder %v3820, 0.0
    %vm4048 = vcmp.gt.f32.partialorder %v3825, 0.0
    %vm4049 = vcmp.gt.f32.partialorder %v3830, 0.0
    %vm4050 = vcmp.gt.f32.partialorder %v3835, 0.0
    %vm4051 = vcmp.gt.f32.partialorder %v3840, 0.0
    %vm4052 = vcmp.gt.f32.partialorder %v3845, 0.0
    %vm4053 = vcmp.gt.f32.partialorder %v3850, 0.0
    %vm4054 = vcmp.gt.f32.partialorder %v3855, 0.0
    %v4055 = vstv %s3858
    %v4056 = vmul.f32 %v4055, %v2880
    %v4057 = vmul.f32 %v4055, %v2885
    %v4058 = vmul.f32 %v4055, %v2890
    %v4059 = vmul.f32 %v4055, %v2895
    %v4060 = vmul.f32 %v4055, %v2900
    %v4061 = vmul.f32 %v4055, %v2905
    %v4062 = vmul.f32 %v4055, %v2910
    %v4063 = vmul.f32 %v4055, %v2915
    %v4064 = vmul.f32 %v4055, %v2920
    %v4065 = vmul.f32 %v4055, %v2925
    %v4066 = vmul.f32 %v4055, %v2930
    %v4067 = vmul.f32 %v4055, %v2935
    %v4068 = vmul.f32 %v4055, %v2940
    %v4069 = vmul.f32 %v4055, %v2945
    %v4070 = vmul.f32 %v4055, %v2950
    %v4071 = vmul.f32 %v4055, %v2955
    %v4072 = vmul.f32 %v4055, %v2960
    %v4073 = vmul.f32 %v4055, %v2965
    %v4074 = vmul.f32 %v4055, %v2970
    %v4075 = vmul.f32 %v4055, %v2975
    %v4076 = vmul.f32 %v4055, %v2980
    %v4077 = vmul.f32 %v4055, %v2985
    %v4078 = vmul.f32 %v4055, %v2990
    %v4079 = vmul.f32 %v4055, %v2995
    %v4080 = vmul.f32 %v4055, %v3000
    %v4081 = vmul.f32 %v4055, %v3005
    %v4082 = vmul.f32 %v4055, %v3010
    %v4083 = vmul.f32 %v4055, %v3015
    %v4084 = vmul.f32 %v4055, %v3020
    %v4085 = vmul.f32 %v4055, %v3025
    %v4086 = vmul.f32 %v4055, %v3030
    %v4087 = vmul.f32 %v4055, %v3035
    %v4088 = vmul.f32 %v4055, %v3040
    %v4089 = vmul.f32 %v4055, %v3045
    %v4090 = vmul.f32 %v4055, %v3050
    %v4091 = vmul.f32 %v4055, %v3055
    %v4092 = vmul.f32 %v4055, %v3060
    %v4093 = vmul.f32 %v4055, %v3065
    %v4094 = vmul.f32 %v4055, %v3070
    %v4095 = vmul.f32 %v4055, %v3075
    %v4096 = vmul.f32 %v4055, %v3080
    %v4097 = vmul.f32 %v4055, %v3085
    %v4098 = vmul.f32 %v4055, %v3090
    %v4099 = vmul.f32 %v4055, %v3095
    %v4100 = vmul.f32 %v4055, %v3100
    %v4101 = vmul.f32 %v4055, %v3105
    %v4102 = vmul.f32 %v4055, %v3110
    %v4103 = vmul.f32 %v4055, %v3115
    %v4104 = vmul.f32 %v4055, %v3120
    %v4105 = vmul.f32 %v4055, %v3125
    %v4106 = vmul.f32 %v4055, %v3130
    %v4107 = vmul.f32 %v4055, %v3135
    %v4108 = vmul.f32 %v4055, %v3140
    %v4109 = vmul.f32 %v4055, %v3145
    %v4110 = vmul.f32 %v4055, %v3150
    %v4111 = vmul.f32 %v4055, %v3155
    %v4112 = vmul.f32 %v4055, %v3160
    %v4113 = vmul.f32 %v4055, %v3165
    %v4114 = vmul.f32 %v4055, %v3170
    %v4115 = vmul.f32 %v4055, %v3175
    %v4116 = vmul.f32 %v4055, %v3180
    %v4117 = vmul.f32 %v4055, %v3185
    %v4118 = vmul.f32 %v4055, %v3190
    %v4119 = vmul.f32 %v4055, %v3195
    %v4120 = vmul.f32 %v4055, %v3200
    %v4121 = vmul.f32 %v4055, %v3205
    %v4122 = vmul.f32 %v4055, %v3210
    %v4123 = vmul.f32 %v4055, %v3215
    %v4124 = vmul.f32 %v4055, %v3220
    %v4125 = vmul.f32 %v4055, %v3225
    %v4126 = vmul.f32 %v4055, %v3230
    %v4127 = vmul.f32 %v4055, %v3235
    %v4128 = vmul.f32 %v4055, %v3240
    %v4129 = vmul.f32 %v4055, %v3245
    %v4130 = vmul.f32 %v4055, %v3250
    %v4131 = vmul.f32 %v4055, %v3255
    %v4132 = vmul.f32 %v4055, %v3260
    %v4133 = vmul.f32 %v4055, %v3265
    %v4134 = vmul.f32 %v4055, %v3270
    %v4135 = vmul.f32 %v4055, %v3275
    %v4136 = vmul.f32 %v4055, %v3280
    %v4137 = vmul.f32 %v4055, %v3285
    %v4138 = vmul.f32 %v4055, %v3290
    %v4139 = vmul.f32 %v4055, %v3295
    %v4140 = vmul.f32 %v4055, %v3300
    %v4141 = vmul.f32 %v4055, %v3305
    %v4142 = vmul.f32 %v4055, %v3310
    %v4143 = vmul.f32 %v4055, %v3315
    %v4144 = vmul.f32 %v4055, %v3320
    %v4145 = vmul.f32 %v4055, %v3325
    %v4146 = vmul.f32 %v4055, %v3330
    %v4147 = vmul.f32 %v4055, %v3335
    %v4148 = vmul.f32 %v4055, %v3340
    %v4149 = vmul.f32 %v4055, %v3345
    %v4150 = vmul.f32 %v4055, %v3350
    %v4151 = vmul.f32 %v4055, %v3355
    %v4152 = vmul.f32 %v4055, %v3360
    %v4153 = vmul.f32 %v4055, %v3365
    %v4154 = vmul.f32 %v4055, %v3370
    %v4155 = vmul.f32 %v4055, %v3375
    %v4156 = vmul.f32 %v4055, %v3380
    %v4157 = vmul.f32 %v4055, %v3385
    %v4158 = vmul.f32 %v4055, %v3390
    %v4159 = vmul.f32 %v4055, %v3395
    %v4160 = vmul.f32 %v4055, %v3400
    %v4161 = vmul.f32 %v4055, %v3405
    %v4162 = vmul.f32 %v4055, %v3410
    %v4163 = vmul.f32 %v4055, %v3415
    %v4164 = vmul.f32 %v4055, %v3420
    %v4165 = vmul.f32 %v4055, %v3425
    %v4166 = vmul.f32 %v4055, %v3430
    %v4167 = vmul.f32 %v4055, %v3435
    %v4168 = vmul.f32 %v4055, %v3440
    %v4169 = vmul.f32 %v4055, %v3445
    %v4170 = vmul.f32 %v4055, %v3450
    %v4171 = vmul.f32 %v4055, %v3455
    %v4172 = vmul.f32 %v4055, %v3460
    %v4173 = vmul.f32 %v4055, %v3465
    %v4174 = vmul.f32 %v4055, %v3470
    %v4175 = vmul.f32 %v4055, %v3475
    %v4176 = vmul.f32 %v4055, %v3480
    %v4177 = vmul.f32 %v4055, %v3485
    %v4178 = vmul.f32 %v4055, %v3490
    %v4179 = vmul.f32 %v4055, %v3495
    %v4180 = vmul.f32 %v4055, %v3500
    %v4181 = vmul.f32 %v4055, %v3505
    %v4182 = vmul.f32 %v4055, %v3510
    %v4183 = vmul.f32 %v4055, %v3515
    %v4184 = vmul.f32 %v4055, %v3520
    %v4185 = vmul.f32 %v4055, %v3525
    %v4186 = vmul.f32 %v4055, %v3530
    %v4187 = vmul.f32 %v4055, %v3535
    %v4188 = vmul.f32 %v4055, %v3540
    %v4189 = vmul.f32 %v4055, %v3545
    %v4190 = vmul.f32 %v4055, %v3550
    %v4191 = vmul.f32 %v4055, %v3555
    %v4192 = vmul.f32 %v4055, %v3560
    %v4193 = vmul.f32 %v4055, %v3565
    %v4194 = vmul.f32 %v4055, %v3570
    %v4195 = vmul.f32 %v4055, %v3575
    %v4196 = vmul.f32 %v4055, %v3580
    %v4197 = vmul.f32 %v4055, %v3585
    %v4198 = vmul.f32 %v4055, %v3590
    %v4199 = vmul.f32 %v4055, %v3595
    %v4200 = vmul.f32 %v4055, %v3600
    %v4201 = vmul.f32 %v4055, %v3605
    %v4202 = vmul.f32 %v4055, %v3610
    %v4203 = vmul.f32 %v4055, %v3615
    %v4204 = vmul.f32 %v4055, %v3620
    %v4205 = vmul.f32 %v4055, %v3625
    %v4206 = vmul.f32 %v4055, %v3630
    %v4207 = vmul.f32 %v4055, %v3635
    %v4208 = vmul.f32 %v4055, %v3640
    %v4209 = vmul.f32 %v4055, %v3645
    %v4210 = vmul.f32 %v4055, %v3650
    %v4211 = vmul.f32 %v4055, %v3655
    %v4212 = vmul.f32 %v4055, %v3660
    %v4213 = vmul.f32 %v4055, %v3665
    %v4214 = vmul.f32 %v4055, %v3670
    %v4215 = vmul.f32 %v4055, %v3675
    %v4216 = vmul.f32 %v4055, %v3680
    %v4217 = vmul.f32 %v4055, %v3685
    %v4218 = vmul.f32 %v4055, %v3690
    %v4219 = vmul.f32 %v4055, %v3695
    %v4220 = vmul.f32 %v4055, %v3700
    %v4221 = vmul.f32 %v4055, %v3705
    %v4222 = vmul.f32 %v4055, %v3710
    %v4223 = vmul.f32 %v4055, %v3715
    %v4224 = vmul.f32 %v4055, %v3720
    %v4225 = vmul.f32 %v4055, %v3725
    %v4226 = vmul.f32 %v4055, %v3730
    %v4227 = vmul.f32 %v4055, %v3735
    %v4228 = vmul.f32 %v4055, %v3740
    %v4229 = vmul.f32 %v4055, %v3745
    %v4230 = vmul.f32 %v4055, %v3750
    %v4231 = vmul.f32 %v4055, %v3755
    %v4232 = vmul.f32 %v4055, %v3760
    %v4233 = vmul.f32 %v4055, %v3765
    %v4234 = vmul.f32 %v4055, %v3770
    %v4235 = vmul.f32 %v4055, %v3775
    %v4236 = vmul.f32 %v4055, %v3780
    %v4237 = vmul.f32 %v4055, %v3785
    %v4238 = vmul.f32 %v4055, %v3790
    %v4239 = vmul.f32 %v4055, %v3795
    %v4240 = vmul.f32 %v4055, %v3800
    %v4241 = vmul.f32 %v4055, %v3805
    %v4242 = vmul.f32 %v4055, %v3810
    %v4243 = vmul.f32 %v4055, %v3815
    %v4244 = vmul.f32 %v4055, %v3820
    %v4245 = vmul.f32 %v4055, %v3825
    %v4246 = vmul.f32 %v4055, %v3830
    %v4247 = vmul.f32 %v4055, %v3835
    %v4248 = vmul.f32 %v4055, %v3840
    %v4249 = vmul.f32 %v4055, %v3845
    %v4250 = vmul.f32 %v4055, %v3850
    %v4251 = vmul.f32 %v4055, %v3855
    %v4252 = vsel %vm3859, %v2880, %v4056
    %v4253 = vsel %vm3860, %v2885, %v4057
    %v4254 = vsel %vm3861, %v2890, %v4058
    %v4255 = vsel %vm3862, %v2895, %v4059
    %v4256 = vsel %vm3863, %v2900, %v4060
    %v4257 = vsel %vm3864, %v2905, %v4061
    %v4258 = vsel %vm3865, %v2910, %v4062
    %v4259 = vsel %vm3866, %v2915, %v4063
    %v4260 = vsel %vm3867, %v2920, %v4064
    %v4261 = vsel %vm3868, %v2925, %v4065
    %v4262 = vsel %vm3869, %v2930, %v4066
    %v4263 = vsel %vm3870, %v2935, %v4067
    %v4264 = vsel %vm3871, %v2940, %v4068
    %v4265 = vsel %vm3872, %v2945, %v4069
    %v4266 = vsel %vm3873, %v2950, %v4070
    %v4267 = vsel %vm3874, %v2955, %v4071
    %v4268 = vsel %vm3875, %v2960, %v4072
    %v4269 = vsel %vm3876, %v2965, %v4073
    %v4270 = vsel %vm3877, %v2970, %v4074
    %v4271 = vsel %vm3878, %v2975, %v4075
    %v4272 = vsel %vm3879, %v2980, %v4076
    %v4273 = vsel %vm3880, %v2985, %v4077
    %v4274 = vsel %vm3881, %v2990, %v4078
    %v4275 = vsel %vm3882, %v2995, %v4079
    %v4276 = vsel %vm3883, %v3000, %v4080
    %v4277 = vsel %vm3884, %v3005, %v4081
    %v4278 = vsel %vm3885, %v3010, %v4082
    %v4279 = vsel %vm3886, %v3015, %v4083
    %v4280 = vsel %vm3887, %v3020, %v4084
    %v4281 = vsel %vm3888, %v3025, %v4085
    %v4282 = vsel %vm3889, %v3030, %v4086
    %v4283 = vsel %vm3890, %v3035, %v4087
    %v4284 = vsel %vm3891, %v3040, %v4088
    %v4285 = vsel %vm3892, %v3045, %v4089
    %v4286 = vsel %vm3893, %v3050, %v4090
    %v4287 = vsel %vm3894, %v3055, %v4091
    %v4288 = vsel %vm3895, %v3060, %v4092
    %v4289 = vsel %vm3896, %v3065, %v4093
    %v4290 = vsel %vm3897, %v3070, %v4094
    %v4291 = vsel %vm3898, %v3075, %v4095
    %v4292 = vsel %vm3899, %v3080, %v4096
    %v4293 = vsel %vm3900, %v3085, %v4097
    %v4294 = vsel %vm3901, %v3090, %v4098
    %v4295 = vsel %vm3902, %v3095, %v4099
    %v4296 = vsel %vm3903, %v3100, %v4100
    %v4297 = vsel %vm3904, %v3105, %v4101
    %v4298 = vsel %vm3905, %v3110, %v4102
    %v4299 = vsel %vm3906, %v3115, %v4103
    %v4300 = vsel %vm3907, %v3120, %v4104
    %v4301 = vsel %vm3908, %v3125, %v4105
    %v4302 = vsel %vm3909, %v3130, %v4106
    %v4303 = vsel %vm3910, %v3135, %v4107
    %v4304 = vsel %vm3911, %v3140, %v4108
    %v4305 = vsel %vm3912, %v3145, %v4109
    %v4306 = vsel %vm3913, %v3150, %v4110
    %v4307 = vsel %vm3914, %v3155, %v4111
    %v4308 = vsel %vm3915, %v3160, %v4112
    %v4309 = vsel %vm3916, %v3165, %v4113
    %v4310 = vsel %vm3917, %v3170, %v4114
    %v4311 = vsel %vm3918, %v3175, %v4115
    %v4312 = vsel %vm3919, %v3180, %v4116
    %v4313 = vsel %vm3920, %v3185, %v4117
    %v4314 = vsel %vm3921, %v3190, %v4118
    %v4315 = vsel %vm3922, %v3195, %v4119
    %v4316 = vsel %vm3923, %v3200, %v4120
    %v4317 = vsel %vm3924, %v3205, %v4121
    %v4318 = vsel %vm3925, %v3210, %v4122
    %v4319 = vsel %vm3926, %v3215, %v4123
    %v4320 = vsel %vm3927, %v3220, %v4124
    %v4321 = vsel %vm3928, %v3225, %v4125
    %v4322 = vsel %vm3929, %v3230, %v4126
    %v4323 = vsel %vm3930, %v3235, %v4127
    %v4324 = vsel %vm3931, %v3240, %v4128
    %v4325 = vsel %vm3932, %v3245, %v4129
    %v4326 = vsel %vm3933, %v3250, %v4130
    %v4327 = vsel %vm3934, %v3255, %v4131
    %v4328 = vsel %vm3935, %v3260, %v4132
    %v4329 = vsel %vm3936, %v3265, %v4133
    %v4330 = vsel %vm3937, %v3270, %v4134
    %v4331 = vsel %vm3938, %v3275, %v4135
    %v4332 = vsel %vm3939, %v3280, %v4136
    %v4333 = vsel %vm3940, %v3285, %v4137
    %v4334 = vsel %vm3941, %v3290, %v4138
    %v4335 = vsel %vm3942, %v3295, %v4139
    %v4336 = vsel %vm3943, %v3300, %v4140
    %v4337 = vsel %vm3944, %v3305, %v4141
    %v4338 = vsel %vm3945, %v3310, %v4142
    %v4339 = vsel %vm3946, %v3315, %v4143
    %v4340 = vsel %vm3947, %v3320, %v4144
    %v4341 = vsel %vm3948, %v3325, %v4145
    %v4342 = vsel %vm3949, %v3330, %v4146
    %v4343 = vsel %vm3950, %v3335, %v4147
    %v4344 = vsel %vm3951, %v3340, %v4148
    %v4345 = vsel %vm3952, %v3345, %v4149
    %v4346 = vsel %vm3953, %v3350, %v4150
    %v4347 = vsel %vm3954, %v3355, %v4151
    %v4348 = vsel %vm3955, %v3360, %v4152
    %v4349 = vsel %vm3956, %v3365, %v4153
    %v4350 = vsel %vm3957, %v3370, %v4154
    %v4351 = vsel %vm3958, %v3375, %v4155
    %v4352 = vsel %vm3959, %v3380, %v4156
    %v4353 = vsel %vm3960, %v3385, %v4157
    %v4354 = vsel %vm3961, %v3390, %v4158
    %v4355 = vsel %vm3962, %v3395, %v4159
    %v4356 = vsel %vm3963, %v3400, %v4160
    %v4357 = vsel %vm3964, %v3405, %v4161
    %v4358 = vsel %vm3965, %v3410, %v4162
    %v4359 = vsel %vm3966, %v3415, %v4163
    %v4360 = vsel %vm3967, %v3420, %v4164
    %v4361 = vsel %vm3968, %v3425, %v4165
    %v4362 = vsel %vm3969, %v3430, %v4166
    %v4363 = vsel %vm3970, %v3435, %v4167
    %v4364 = vsel %vm3971, %v3440, %v4168
    %v4365 = vsel %vm3972, %v3445, %v4169
    %v4366 = vsel %vm3973, %v3450, %v4170
    %v4367 = vsel %vm3974, %v3455, %v4171
    %v4368 = vsel %vm3975, %v3460, %v4172
    %v4369 = vsel %vm3976, %v3465, %v4173
    %v4370 = vsel %vm3977, %v3470, %v4174
    %v4371 = vsel %vm3978, %v3475, %v4175
    %v4372 = vsel %vm3979, %v3480, %v4176
    %v4373 = vsel %vm3980, %v3485, %v4177
    %v4374 = vsel %vm3981, %v3490, %v4178
    %v4375 = vsel %vm3982, %v3495, %v4179
    %v4376 = vsel %vm3983, %v3500, %v4180
    %v4377 = vsel %vm3984, %v3505, %v4181
    %v4378 = vsel %vm3985, %v3510, %v4182
    %v4379 = vsel %vm3986, %v3515, %v4183
    %v4380 = vsel %vm3987, %v3520, %v4184
    %v4381 = vsel %vm3988, %v3525, %v4185
    %v4382 = vsel %vm3989, %v3530, %v4186
    %v4383 = vsel %vm3990, %v3535, %v4187
    %v4384 = vsel %vm3991, %v3540, %v4188
    %v4385 = vsel %vm3992, %v3545, %v4189
    %v4386 = vsel %vm3993, %v3550, %v4190
    %v4387 = vsel %vm3994, %v3555, %v4191
    %v4388 = vsel %vm3995, %v3560, %v4192
    %v4389 = vsel %vm3996, %v3565, %v4193
    %v4390 = vsel %vm3997, %v3570, %v4194
    %v4391 = vsel %vm3998, %v3575, %v4195
    %v4392 = vsel %vm3999, %v3580, %v4196
    %v4393 = vsel %vm4000, %v3585, %v4197
    %v4394 = vsel %vm4001, %v3590, %v4198
    %v4395 = vsel %vm4002, %v3595, %v4199
    %v4396 = vsel %vm4003, %v3600, %v4200
    %v4397 = vsel %vm4004, %v3605, %v4201
    %v4398 = vsel %vm4005, %v3610, %v4202
    %v4399 = vsel %vm4006, %v3615, %v4203
    %v4400 = vsel %vm4007, %v3620, %v4204
    %v4401 = vsel %vm4008, %v3625, %v4205
    %v4402 = vsel %vm4009, %v3630, %v4206
    %v4403 = vsel %vm4010, %v3635, %v4207
    %v4404 = vsel %vm4011, %v3640, %v4208
    %v4405 = vsel %vm4012, %v3645, %v4209
    %v4406 = vsel %vm4013, %v3650, %v4210
    %v4407 = vsel %vm4014, %v3655, %v4211
    %v4408 = vsel %vm4015, %v3660, %v4212
    %v4409 = vsel %vm4016, %v3665, %v4213
    %v4410 = vsel %vm4017, %v3670, %v4214
    %v4411 = vsel %vm4018, %v3675, %v4215
    %v4412 = vsel %vm4019, %v3680, %v4216
    %v4413 = vsel %vm4020, %v3685, %v4217
    %v4414 = vsel %vm4021, %v3690, %v4218
    %v4415 = vsel %vm4022, %v3695, %v4219
    %v4416 = vsel %vm4023, %v3700, %v4220
    %v4417 = vsel %vm4024, %v3705, %v4221
    %v4418 = vsel %vm4025, %v3710, %v4222
    %v4419 = vsel %vm4026, %v3715, %v4223
    %v4420 = vsel %vm4027, %v3720, %v4224
    %v4421 = vsel %vm4028, %v3725, %v4225
    %v4422 = vsel %vm4029, %v3730, %v4226
    %v4423 = vsel %vm4030, %v3735, %v4227
    %v4424 = vsel %vm4031, %v3740, %v4228
    %v4425 = vsel %vm4032, %v3745, %v4229
    %v4426 = vsel %vm4033, %v3750, %v4230
    %v4427 = vsel %vm4034, %v3755, %v4231
    %v4428 = vsel %vm4035, %v3760, %v4232
    %v4429 = vsel %vm4036, %v3765, %v4233
    %v4430 = vsel %vm4037, %v3770, %v4234
    %v4431 = vsel %vm4038, %v3775, %v4235
    %v4432 = vsel %vm4039, %v3780, %v4236
    %v4433 = vsel %vm4040, %v3785, %v4237
    %v4434 = vsel %vm4041, %v3790, %v4238
    %v4435 = vsel %vm4042, %v3795, %v4239
    %v4436 = vsel %vm4043, %v3800, %v4240
    %v4437 = vsel %vm4044, %v3805, %v4241
    %v4438 = vsel %vm4045, %v3810, %v4242
    %v4439 = vsel %vm4046, %v3815, %v4243
    %v4440 = vsel %vm4047, %v3820, %v4244
    %v4441 = vsel %vm4048, %v3825, %v4245
    %v4442 = vsel %vm4049, %v3830, %v4246
    %v4443 = vsel %vm4050, %v3835, %v4247
    %v4444 = vsel %vm4051, %v3840, %v4248
    %v4445 = vsel %vm4052, %v3845, %v4249
    %v4446 = vsel %vm4053, %v3850, %v4250
    %v4447 = vsel %vm4054, %v3855, %v4251
    %v4448 = vld [vmem:[%s9] sm:$0x1]
    %s4449 = sld [smem:[#allocation2 + $0x3]]
    %v4450 = vstv %s4449
    %4451 = vmatprep.subr.mxu0 0.0
    %4452 = vmatpush1.xpose.msra.mxu0 %v4267
    %4453 = vmatprep.subr.mxu0 0.0
    %4454 = vmatpush1.xpose.msra.mxu0 %v4266
    %4455 = vmatprep.subr.mxu0 0.0
    %4456 = vmatpush1.xpose.msra.mxu0 %v4265
    %4457 = vmatprep.subr.mxu0 0.0
    %4458 = vmatpush1.xpose.msra.mxu0 %v4264
    %4459 = vmatprep.subr.mxu0 0.0
    %4460 = vmatpush1.xpose.msra.mxu0 %v4263
    %4461 = vmatprep.subr.mxu0 0.0
    %4462 = vmatpush1.xpose.msra.mxu0 %v4262
    %4463 = vmatprep.subr.mxu0 0.0
    %4464 = vmatpush1.xpose.msra.mxu0 %v4261
    %4465 = vmatprep.subr.mxu0 0.0
    %4466 = vmatpush1.xpose.msra.mxu0 %v4260
    %4467 = vmatprep.subr.mxu0 0.0
    %4468 = vmatpush1.xpose.msra.mxu0 %v4259
    %4469 = vmatprep.subr.mxu0 0.0
    %4470 = vmatpush1.xpose.msra.mxu0 %v4258
    %4471 = vmatprep.subr.mxu0 0.0
    %4472 = vmatpush1.xpose.msra.mxu0 %v4257
    %4473 = vmatprep.subr.mxu0 0.0
    %4474 = vmatpush1.xpose.msra.mxu0 %v4256
    %4475 = vmatprep.subr.mxu0 0.0
    %4476 = vmatpush1.xpose.msra.mxu0 %v4255
    %4477 = vmatprep.subr.mxu0 0.0
    %4478 = vmatpush1.xpose.msra.mxu0 %v4254
    %4479 = vmatprep.subr.mxu0 0.0
    %4480 = vmatpush1.xpose.msra.mxu0 %v4253
    %4481 = vmatprep.subr.mxu0 0.0
    %4482 = vmatpush1.xpose.msra.mxu0 %v4252
    %4483 = vmatprep.subr.mxu0 0.0
    %4484 = vmatpush2.xpose.msra.mxu0 %v4283
    %4485 = vmatprep.subr.mxu0 0.0
    %4486 = vmatpush2.xpose.msra.mxu0 %v4282
    %4487 = vmatprep.subr.mxu0 0.0
    %4488 = vmatpush2.xpose.msra.mxu0 %v4281
    %4489 = vmatprep.subr.mxu0 0.0
    %4490 = vmatpush2.xpose.msra.mxu0 %v4280
    %4491 = vmatprep.subr.mxu0 0.0
    %4492 = vmatpush2.xpose.msra.mxu0 %v4279
    %4493 = vmatprep.subr.mxu0 0.0
    %4494 = vmatpush2.xpose.msra.mxu0 %v4278
    %4495 = vmatprep.subr.mxu0 0.0
    %4496 = vmatpush2.xpose.msra.mxu0 %v4277
    %4497 = vmatprep.subr.mxu0 0.0
    %4498 = vmatpush2.xpose.msra.mxu0 %v4276
    %4499 = vmatprep.subr.mxu0 0.0
    %4500 = vmatpush2.xpose.msra.mxu0 %v4275
    %4501 = vmatprep.subr.mxu0 0.0
    %4502 = vmatpush2.xpose.msra.mxu0 %v4274
    %4503 = vmatprep.subr.mxu0 0.0
    %4504 = vmatpush2.xpose.msra.mxu0 %v4273
    %4505 = vmatprep.subr.mxu0 0.0
    %4506 = vmatpush2.xpose.msra.mxu0 %v4272
    %4507 = vmatprep.subr.mxu0 0.0
    %4508 = vmatpush2.xpose.msra.mxu0 %v4271
    %4509 = vmatprep.subr.mxu0 0.0
    %4510 = vmatpush2.xpose.msra.mxu0 %v4270
    %4511 = vmatprep.subr.mxu0 0.0
    %4512 = vmatpush2.xpose.msra.mxu0 %v4269
    %4513 = vmatprep.subr.mxu0 0.0
    %4514 = vmatpush2.xpose.msra.mxu0 %v4268
    %4515 = vmatprep.mubr.f32.mxu0 0.0
    %4516 = vmatmul.mubr.f32.gmra.mxu0 %v4448
    %v4517 = vpop.f32.mrf.mxu0
    %v4518 = vadd.f32 %v4450, %v4517
    %v4519 = vpop.f32.mrf.mxu0
    %v4520 = vadd.f32 %v4450, %v4519
    %4521 = vdwg.mxu0
    %4522 = vmatprep.subr.mxu0 0.0
    %4523 = vmatpush1.xpose.msra.mxu0 %v4299
    %4524 = vmatprep.subr.mxu0 0.0
    %4525 = vmatpush1.xpose.msra.mxu0 %v4298
    %4526 = vmatprep.subr.mxu0 0.0
    %4527 = vmatpush1.xpose.msra.mxu0 %v4297
    %4528 = vmatprep.subr.mxu0 0.0
    %4529 = vmatpush1.xpose.msra.mxu0 %v4296
    %4530 = vmatprep.subr.mxu0 0.0
    %4531 = vmatpush1.xpose.msra.mxu0 %v4295
    %4532 = vmatprep.subr.mxu0 0.0
    %4533 = vmatpush1.xpose.msra.mxu0 %v4294
    %4534 = vmatprep.subr.mxu0 0.0
    %4535 = vmatpush1.xpose.msra.mxu0 %v4293
    %4536 = vmatprep.subr.mxu0 0.0
    %4537 = vmatpush1.xpose.msra.mxu0 %v4292
    %4538 = vmatprep.subr.mxu0 0.0
    %4539 = vmatpush1.xpose.msra.mxu0 %v4291
    %4540 = vmatprep.subr.mxu0 0.0
    %4541 = vmatpush1.xpose.msra.mxu0 %v4290
    %4542 = vmatprep.subr.mxu0 0.0
    %4543 = vmatpush1.xpose.msra.mxu0 %v4289
    %4544 = vmatprep.subr.mxu0 0.0
    %4545 = vmatpush1.xpose.msra.mxu0 %v4288
    %4546 = vmatprep.subr.mxu0 0.0
    %4547 = vmatpush1.xpose.msra.mxu0 %v4287
    %4548 = vmatprep.subr.mxu0 0.0
    %4549 = vmatpush1.xpose.msra.mxu0 %v4286
    %4550 = vmatprep.subr.mxu0 0.0
    %4551 = vmatpush1.xpose.msra.mxu0 %v4285
    %4552 = vmatprep.subr.mxu0 0.0
    %4553 = vmatpush1.xpose.msra.mxu0 %v4284
    %4554 = vmatprep.subr.mxu0 0.0
    %4555 = vmatpush2.xpose.msra.mxu0 %v4315
    %4556 = vmatprep.subr.mxu0 0.0
    %4557 = vmatpush2.xpose.msra.mxu0 %v4314
    %4558 = vmatprep.subr.mxu0 0.0
    %4559 = vmatpush2.xpose.msra.mxu0 %v4313
    %4560 = vmatprep.subr.mxu0 0.0
    %4561 = vmatpush2.xpose.msra.mxu0 %v4312
    %4562 = vmatprep.subr.mxu0 0.0
    %4563 = vmatpush2.xpose.msra.mxu0 %v4311
    %4564 = vmatprep.subr.mxu0 0.0
    %4565 = vmatpush2.xpose.msra.mxu0 %v4310
    %4566 = vmatprep.subr.mxu0 0.0
    %4567 = vmatpush2.xpose.msra.mxu0 %v4309
    %4568 = vmatprep.subr.mxu0 0.0
    %4569 = vmatpush2.xpose.msra.mxu0 %v4308
    %4570 = vmatprep.subr.mxu0 0.0
    %4571 = vmatpush2.xpose.msra.mxu0 %v4307
    %4572 = vmatprep.subr.mxu0 0.0
    %4573 = vmatpush2.xpose.msra.mxu0 %v4306
    %4574 = vmatprep.subr.mxu0 0.0
    %4575 = vmatpush2.xpose.msra.mxu0 %v4305
    %4576 = vmatprep.subr.mxu0 0.0
    %4577 = vmatpush2.xpose.msra.mxu0 %v4304
    %4578 = vmatprep.subr.mxu0 0.0
    %4579 = vmatpush2.xpose.msra.mxu0 %v4303
    %4580 = vmatprep.subr.mxu0 0.0
    %4581 = vmatpush2.xpose.msra.mxu0 %v4302
    %4582 = vmatprep.subr.mxu0 0.0
    %4583 = vmatpush2.xpose.msra.mxu0 %v4301
    %4584 = vmatprep.subr.mxu0 0.0
    %4585 = vmatpush2.xpose.msra.mxu0 %v4300
    %4586 = vmatprep.mubr.f32.mxu0 0.0
    %4587 = vmatmul.mubr.f32.gmra.mxu0 %v4448
    %v4588 = vpop.f32.mrf.mxu0
    %v4589 = vadd.f32 %v4450, %v4588
    %v4590 = vpop.f32.mrf.mxu0
    %v4591 = vadd.f32 %v4450, %v4590
    %4592 = vdwg.mxu0
    %4593 = vmatprep.subr.mxu0 0.0
    %4594 = vmatpush1.xpose.msra.mxu0 %v4331
    %4595 = vmatprep.subr.mxu0 0.0
    %4596 = vmatpush1.xpose.msra.mxu0 %v4330
    %4597 = vmatprep.subr.mxu0 0.0
    %4598 = vmatpush1.xpose.msra.mxu0 %v4329
    %4599 = vmatprep.subr.mxu0 0.0
    %4600 = vmatpush1.xpose.msra.mxu0 %v4328
    %4601 = vmatprep.subr.mxu0 0.0
    %4602 = vmatpush1.xpose.msra.mxu0 %v4327
    %4603 = vmatprep.subr.mxu0 0.0
    %4604 = vmatpush1.xpose.msra.mxu0 %v4326
    %4605 = vmatprep.subr.mxu0 0.0
    %4606 = vmatpush1.xpose.msra.mxu0 %v4325
    %4607 = vmatprep.subr.mxu0 0.0
    %4608 = vmatpush1.xpose.msra.mxu0 %v4324
    %4609 = vmatprep.subr.mxu0 0.0
    %4610 = vmatpush1.xpose.msra.mxu0 %v4323
    %4611 = vmatprep.subr.mxu0 0.0
    %4612 = vmatpush1.xpose.msra.mxu0 %v4322
    %4613 = vmatprep.subr.mxu0 0.0
    %4614 = vmatpush1.xpose.msra.mxu0 %v4321
    %4615 = vmatprep.subr.mxu0 0.0
    %4616 = vmatpush1.xpose.msra.mxu0 %v4320
    %4617 = vmatprep.subr.mxu0 0.0
    %4618 = vmatpush1.xpose.msra.mxu0 %v4319
    %4619 = vmatprep.subr.mxu0 0.0
    %4620 = vmatpush1.xpose.msra.mxu0 %v4318
    %4621 = vmatprep.subr.mxu0 0.0
    %4622 = vmatpush1.xpose.msra.mxu0 %v4317
    %4623 = vmatprep.subr.mxu0 0.0
    %4624 = vmatpush1.xpose.msra.mxu0 %v4316
    %4625 = vmatprep.subr.mxu0 0.0
    %4626 = vmatpush2.xpose.msra.mxu0 %v4347
    %4627 = vmatprep.subr.mxu0 0.0
    %4628 = vmatpush2.xpose.msra.mxu0 %v4346
    %4629 = vmatprep.subr.mxu0 0.0
    %4630 = vmatpush2.xpose.msra.mxu0 %v4345
    %4631 = vmatprep.subr.mxu0 0.0
    %4632 = vmatpush2.xpose.msra.mxu0 %v4344
    %4633 = vmatprep.subr.mxu0 0.0
    %4634 = vmatpush2.xpose.msra.mxu0 %v4343
    %4635 = vmatprep.subr.mxu0 0.0
    %4636 = vmatpush2.xpose.msra.mxu0 %v4342
    %4637 = vmatprep.subr.mxu0 0.0
    %4638 = vmatpush2.xpose.msra.mxu0 %v4341
    %4639 = vmatprep.subr.mxu0 0.0
    %4640 = vmatpush2.xpose.msra.mxu0 %v4340
    %4641 = vmatprep.subr.mxu0 0.0
    %4642 = vmatpush2.xpose.msra.mxu0 %v4339
    %4643 = vmatprep.subr.mxu0 0.0
    %4644 = vmatpush2.xpose.msra.mxu0 %v4338
    %4645 = vmatprep.subr.mxu0 0.0
    %4646 = vmatpush2.xpose.msra.mxu0 %v4337
    %4647 = vmatprep.subr.mxu0 0.0
    %4648 = vmatpush2.xpose.msra.mxu0 %v4336
    %4649 = vmatprep.subr.mxu0 0.0
    %4650 = vmatpush2.xpose.msra.mxu0 %v4335
    %4651 = vmatprep.subr.mxu0 0.0
    %4652 = vmatpush2.xpose.msra.mxu0 %v4334
    %4653 = vmatprep.subr.mxu0 0.0
    %4654 = vmatpush2.xpose.msra.mxu0 %v4333
    %4655 = vmatprep.subr.mxu0 0.0
    %4656 = vmatpush2.xpose.msra.mxu0 %v4332
    %4657 = vmatprep.mubr.f32.mxu0 0.0
    %4658 = vmatmul.mubr.f32.gmra.mxu0 %v4448
    %v4659 = vpop.f32.mrf.mxu0
    %v4660 = vadd.f32 %v4450, %v4659
    %v4661 = vpop.f32.mrf.mxu0
    %v4662 = vadd.f32 %v4450, %v4661
    %4663 = vdwg.mxu0
    %4664 = vmatprep.subr.mxu0 0.0
    %4665 = vmatpush1.xpose.msra.mxu0 %v4363
    %4666 = vmatprep.subr.mxu0 0.0
    %4667 = vmatpush1.xpose.msra.mxu0 %v4362
    %4668 = vmatprep.subr.mxu0 0.0
    %4669 = vmatpush1.xpose.msra.mxu0 %v4361
    %4670 = vmatprep.subr.mxu0 0.0
    %4671 = vmatpush1.xpose.msra.mxu0 %v4360
    %4672 = vmatprep.subr.mxu0 0.0
    %4673 = vmatpush1.xpose.msra.mxu0 %v4359
    %4674 = vmatprep.subr.mxu0 0.0
    %4675 = vmatpush1.xpose.msra.mxu0 %v4358
    %4676 = vmatprep.subr.mxu0 0.0
    %4677 = vmatpush1.xpose.msra.mxu0 %v4357
    %4678 = vmatprep.subr.mxu0 0.0
    %4679 = vmatpush1.xpose.msra.mxu0 %v4356
    %4680 = vmatprep.subr.mxu0 0.0
    %4681 = vmatpush1.xpose.msra.mxu0 %v4355
    %4682 = vmatprep.subr.mxu0 0.0
    %4683 = vmatpush1.xpose.msra.mxu0 %v4354
    %4684 = vmatprep.subr.mxu0 0.0
    %4685 = vmatpush1.xpose.msra.mxu0 %v4353
    %4686 = vmatprep.subr.mxu0 0.0
    %4687 = vmatpush1.xpose.msra.mxu0 %v4352
    %4688 = vmatprep.subr.mxu0 0.0
    %4689 = vmatpush1.xpose.msra.mxu0 %v4351
    %4690 = vmatprep.subr.mxu0 0.0
    %4691 = vmatpush1.xpose.msra.mxu0 %v4350
    %4692 = vmatprep.subr.mxu0 0.0
    %4693 = vmatpush1.xpose.msra.mxu0 %v4349
    %4694 = vmatprep.subr.mxu0 0.0
    %4695 = vmatpush1.xpose.msra.mxu0 %v4348
    %4696 = vmatprep.subr.mxu0 0.0
    %4697 = vmatpush2.xpose.msra.mxu0 %v4379
    %4698 = vmatprep.subr.mxu0 0.0
    %4699 = vmatpush2.xpose.msra.mxu0 %v4378
    %4700 = vmatprep.subr.mxu0 0.0
    %4701 = vmatpush2.xpose.msra.mxu0 %v4377
    %4702 = vmatprep.subr.mxu0 0.0
    %4703 = vmatpush2.xpose.msra.mxu0 %v4376
    %4704 = vmatprep.subr.mxu0 0.0
    %4705 = vmatpush2.xpose.msra.mxu0 %v4375
    %4706 = vmatprep.subr.mxu0 0.0
    %4707 = vmatpush2.xpose.msra.mxu0 %v4374
    %4708 = vmatprep.subr.mxu0 0.0
    %4709 = vmatpush2.xpose.msra.mxu0 %v4373
    %4710 = vmatprep.subr.mxu0 0.0
    %4711 = vmatpush2.xpose.msra.mxu0 %v4372
    %4712 = vmatprep.subr.mxu0 0.0
    %4713 = vmatpush2.xpose.msra.mxu0 %v4371
    %4714 = vmatprep.subr.mxu0 0.0
    %4715 = vmatpush2.xpose.msra.mxu0 %v4370
    %4716 = vmatprep.subr.mxu0 0.0
    %4717 = vmatpush2.xpose.msra.mxu0 %v4369
    %4718 = vmatprep.subr.mxu0 0.0
    %4719 = vmatpush2.xpose.msra.mxu0 %v4368
    %4720 = vmatprep.subr.mxu0 0.0
    %4721 = vmatpush2.xpose.msra.mxu0 %v4367
    %4722 = vmatprep.subr.mxu0 0.0
    %4723 = vmatpush2.xpose.msra.mxu0 %v4366
    %4724 = vmatprep.subr.mxu0 0.0
    %4725 = vmatpush2.xpose.msra.mxu0 %v4365
    %4726 = vmatprep.subr.mxu0 0.0
    %4727 = vmatpush2.xpose.msra.mxu0 %v4364
    %4728 = vmatprep.mubr.f32.mxu0 0.0
    %4729 = vmatmul.mubr.f32.gmra.mxu0 %v4448
    %v4730 = vpop.f32.mrf.mxu0
    %v4731 = vadd.f32 %v4450, %v4730
    %v4732 = vpop.f32.mrf.mxu0
    %v4733 = vadd.f32 %v4450, %v4732
    %4734 = vdwg.mxu0
    %4735 = vmatprep.subr.mxu0 0.0
    %4736 = vmatpush1.xpose.msra.mxu0 %v4395
    %4737 = vmatprep.subr.mxu0 0.0
    %4738 = vmatpush1.xpose.msra.mxu0 %v4394
    %4739 = vmatprep.subr.mxu0 0.0
    %4740 = vmatpush1.xpose.msra.mxu0 %v4393
    %4741 = vmatprep.subr.mxu0 0.0
    %4742 = vmatpush1.xpose.msra.mxu0 %v4392
    %4743 = vmatprep.subr.mxu0 0.0
    %4744 = vmatpush1.xpose.msra.mxu0 %v4391
    %4745 = vmatprep.subr.mxu0 0.0
    %4746 = vmatpush1.xpose.msra.mxu0 %v4390
    %4747 = vmatprep.subr.mxu0 0.0
    %4748 = vmatpush1.xpose.msra.mxu0 %v4389
    %4749 = vmatprep.subr.mxu0 0.0
    %4750 = vmatpush1.xpose.msra.mxu0 %v4388
    %4751 = vmatprep.subr.mxu0 0.0
    %4752 = vmatpush1.xpose.msra.mxu0 %v4387
    %4753 = vmatprep.subr.mxu0 0.0
    %4754 = vmatpush1.xpose.msra.mxu0 %v4386
    %4755 = vmatprep.subr.mxu0 0.0
    %4756 = vmatpush1.xpose.msra.mxu0 %v4385
    %4757 = vmatprep.subr.mxu0 0.0
    %4758 = vmatpush1.xpose.msra.mxu0 %v4384
    %4759 = vmatprep.subr.mxu0 0.0
    %4760 = vmatpush1.xpose.msra.mxu0 %v4383
    %4761 = vmatprep.subr.mxu0 0.0
    %4762 = vmatpush1.xpose.msra.mxu0 %v4382
    %4763 = vmatprep.subr.mxu0 0.0
    %4764 = vmatpush1.xpose.msra.mxu0 %v4381
    %4765 = vmatprep.subr.mxu0 0.0
    %4766 = vmatpush1.xpose.msra.mxu0 %v4380
    %4767 = vmatprep.subr.mxu0 0.0
    %4768 = vmatpush2.xpose.msra.mxu0 %v4411
    %4769 = vmatprep.subr.mxu0 0.0
    %4770 = vmatpush2.xpose.msra.mxu0 %v4410
    %4771 = vmatprep.subr.mxu0 0.0
    %4772 = vmatpush2.xpose.msra.mxu0 %v4409
    %4773 = vmatprep.subr.mxu0 0.0
    %4774 = vmatpush2.xpose.msra.mxu0 %v4408
    %4775 = vmatprep.subr.mxu0 0.0
    %4776 = vmatpush2.xpose.msra.mxu0 %v4407
    %4777 = vmatprep.subr.mxu0 0.0
    %4778 = vmatpush2.xpose.msra.mxu0 %v4406
    %4779 = vmatprep.subr.mxu0 0.0
    %4780 = vmatpush2.xpose.msra.mxu0 %v4405
    %4781 = vmatprep.subr.mxu0 0.0
    %4782 = vmatpush2.xpose.msra.mxu0 %v4404
    %4783 = vmatprep.subr.mxu0 0.0
    %4784 = vmatpush2.xpose.msra.mxu0 %v4403
    %4785 = vmatprep.subr.mxu0 0.0
    %4786 = vmatpush2.xpose.msra.mxu0 %v4402
    %4787 = vmatprep.subr.mxu0 0.0
    %4788 = vmatpush2.xpose.msra.mxu0 %v4401
    %4789 = vmatprep.subr.mxu0 0.0
    %4790 = vmatpush2.xpose.msra.mxu0 %v4400
    %4791 = vmatprep.subr.mxu0 0.0
    %4792 = vmatpush2.xpose.msra.mxu0 %v4399
    %4793 = vmatprep.subr.mxu0 0.0
    %4794 = vmatpush2.xpose.msra.mxu0 %v4398
    %4795 = vmatprep.subr.mxu0 0.0
    %4796 = vmatpush2.xpose.msra.mxu0 %v4397
    %4797 = vmatprep.subr.mxu0 0.0
    %4798 = vmatpush2.xpose.msra.mxu0 %v4396
    %4799 = vmatprep.mubr.f32.mxu0 0.0
    %4800 = vmatmul.mubr.f32.gmra.mxu0 %v4448
    %v4801 = vpop.f32.mrf.mxu0
    %v4802 = vadd.f32 %v4450, %v4801
    %v4803 = vpop.f32.mrf.mxu0
    %v4804 = vadd.f32 %v4450, %v4803
    %4805 = vdwg.mxu0
    %4806 = vmatprep.subr.mxu0 0.0
    %4807 = vmatpush1.xpose.msra.mxu0 %v4427
    %4808 = vmatprep.subr.mxu0 0.0
    %4809 = vmatpush1.xpose.msra.mxu0 %v4426
    %4810 = vmatprep.subr.mxu0 0.0
    %4811 = vmatpush1.xpose.msra.mxu0 %v4425
    %4812 = vmatprep.subr.mxu0 0.0
    %4813 = vmatpush1.xpose.msra.mxu0 %v4424
    %4814 = vmatprep.subr.mxu0 0.0
    %4815 = vmatpush1.xpose.msra.mxu0 %v4423
    %4816 = vmatprep.subr.mxu0 0.0
    %4817 = vmatpush1.xpose.msra.mxu0 %v4422
    %4818 = vmatprep.subr.mxu0 0.0
    %4819 = vmatpush1.xpose.msra.mxu0 %v4421
    %4820 = vmatprep.subr.mxu0 0.0
    %4821 = vmatpush1.xpose.msra.mxu0 %v4420
    %4822 = vmatprep.subr.mxu0 0.0
    %4823 = vmatpush1.xpose.msra.mxu0 %v4419
    %4824 = vmatprep.subr.mxu0 0.0
    %4825 = vmatpush1.xpose.msra.mxu0 %v4418
    %4826 = vmatprep.subr.mxu0 0.0
    %4827 = vmatpush1.xpose.msra.mxu0 %v4417
    %4828 = vmatprep.subr.mxu0 0.0
    %4829 = vmatpush1.xpose.msra.mxu0 %v4416
    %4830 = vmatprep.subr.mxu0 0.0
    %4831 = vmatpush1.xpose.msra.mxu0 %v4415
    %4832 = vmatprep.subr.mxu0 0.0
    %4833 = vmatpush1.xpose.msra.mxu0 %v4414
    %4834 = vmatprep.subr.mxu0 0.0
    %4835 = vmatpush1.xpose.msra.mxu0 %v4413
    %4836 = vmatprep.subr.mxu0 0.0
    %4837 = vmatpush1.xpose.msra.mxu0 %v4412
    %4838 = vmatprep.subr.mxu0 0.0
    %4839 = vmatpush2.xpose.msra.mxu0 %v4443
    %4840 = vmatprep.subr.mxu0 0.0
    %4841 = vmatpush2.xpose.msra.mxu0 %v4442
    %4842 = vmatprep.subr.mxu0 0.0
    %4843 = vmatpush2.xpose.msra.mxu0 %v4441
    %4844 = vmatprep.subr.mxu0 0.0
    %4845 = vmatpush2.xpose.msra.mxu0 %v4440
    %4846 = vmatprep.subr.mxu0 0.0
    %4847 = vmatpush2.xpose.msra.mxu0 %v4439
    %4848 = vmatprep.subr.mxu0 0.0
    %4849 = vmatpush2.xpose.msra.mxu0 %v4438
    %4850 = vmatprep.subr.mxu0 0.0
    %4851 = vmatpush2.xpose.msra.mxu0 %v4437
    %4852 = vmatprep.subr.mxu0 0.0
    %4853 = vmatpush2.xpose.msra.mxu0 %v4436
    %4854 = vmatprep.subr.mxu0 0.0
    %4855 = vmatpush2.xpose.msra.mxu0 %v4435
    %4856 = vmatprep.subr.mxu0 0.0
    %4857 = vmatpush2.xpose.msra.mxu0 %v4434
    %4858 = vmatprep.subr.mxu0 0.0
    %4859 = vmatpush2.xpose.msra.mxu0 %v4433
    %4860 = vmatprep.subr.mxu0 0.0
    %4861 = vmatpush2.xpose.msra.mxu0 %v4432
    %4862 = vmatprep.subr.mxu0 0.0
    %4863 = vmatpush2.xpose.msra.mxu0 %v4431
    %4864 = vmatprep.subr.mxu0 0.0
    %4865 = vmatpush2.xpose.msra.mxu0 %v4430
    %4866 = vmatprep.subr.mxu0 0.0
    %4867 = vmatpush2.xpose.msra.mxu0 %v4429
    %4868 = vmatprep.subr.mxu0 0.0
    %4869 = vmatpush2.xpose.msra.mxu0 %v4428
    %4870 = vmatprep.mubr.f32.mxu0 0.0
    %4871 = vmatmul.mubr.f32.gmra.mxu0 %v4448
    %v4872 = vpop.f32.mrf.mxu0
    %v4873 = vadd.f32 %v4450, %v4872
    %v4874 = vpop.f32.mrf.mxu0
    %v4875 = vadd.f32 %v4450, %v4874
    %4876 = vdwg.mxu0
    %4877 = vmatprep.subr.mxu0 0.0
    %4878 = vmatpush1.xpose.msra.mxu0 0.0
    %4879 = vmatprep.subr.mxu0 0.0
    %4880 = vmatpush1.xpose.msra.mxu0 0.0
    %4881 = vmatprep.subr.mxu0 0.0
    %4882 = vmatpush1.xpose.msra.mxu0 0.0
    %4883 = vmatprep.subr.mxu0 0.0
    %4884 = vmatpush1.xpose.msra.mxu0 0.0
    %4885 = vmatprep.subr.mxu0 0.0
    %4886 = vmatpush1.xpose.msra.mxu0 0.0
    %4887 = vmatprep.subr.mxu0 0.0
    %4888 = vmatpush1.xpose.msra.mxu0 0.0
    %4889 = vmatprep.subr.mxu0 0.0
    %4890 = vmatpush1.xpose.msra.mxu0 0.0
    %4891 = vmatprep.subr.mxu0 0.0
    %4892 = vmatpush1.xpose.msra.mxu0 0.0
    %4893 = vmatprep.subr.mxu0 0.0
    %4894 = vmatpush1.xpose.msra.mxu0 0.0
    %4895 = vmatprep.subr.mxu0 0.0
    %4896 = vmatpush1.xpose.msra.mxu0 0.0
    %4897 = vmatprep.subr.mxu0 0.0
    %4898 = vmatpush1.xpose.msra.mxu0 0.0
    %4899 = vmatprep.subr.mxu0 0.0
    %4900 = vmatpush1.xpose.msra.mxu0 0.0
    %4901 = vmatprep.subr.mxu0 0.0
    %4902 = vmatpush1.xpose.msra.mxu0 %v4447
    %4903 = vmatprep.subr.mxu0 0.0
    %4904 = vmatpush1.xpose.msra.mxu0 %v4446
    %4905 = vmatprep.subr.mxu0 0.0
    %4906 = vmatpush1.xpose.msra.mxu0 %v4445
    %4907 = vmatprep.subr.mxu0 0.0
    %4908 = vmatpush1.xpose.msra.mxu0 %v4444
    %4909 = vmatprep.subr.mxu0 0.0
    %4910 = vmatpush2.xpose.msra.mxu0 0.0
    %4911 = vmatprep.subr.mxu0 0.0
    %4912 = vmatpush2.xpose.msra.mxu0 0.0
    %4913 = vmatprep.subr.mxu0 0.0
    %4914 = vmatpush2.xpose.msra.mxu0 0.0
    %4915 = vmatprep.subr.mxu0 0.0
    %4916 = vmatpush2.xpose.msra.mxu0 0.0
    %4917 = vmatprep.subr.mxu0 0.0
    %4918 = vmatpush2.xpose.msra.mxu0 0.0
    %4919 = vmatprep.subr.mxu0 0.0
    %4920 = vmatpush2.xpose.msra.mxu0 0.0
    %4921 = vmatprep.subr.mxu0 0.0
    %4922 = vmatpush2.xpose.msra.mxu0 0.0
    %4923 = vmatprep.subr.mxu0 0.0
    %4924 = vmatpush2.xpose.msra.mxu0 0.0
    %4925 = vmatprep.subr.mxu0 0.0
    %4926 = vmatpush2.xpose.msra.mxu0 0.0
    %4927 = vmatprep.subr.mxu0 0.0
    %4928 = vmatpush2.xpose.msra.mxu0 0.0
    %4929 = vmatprep.subr.mxu0 0.0
    %4930 = vmatpush2.xpose.msra.mxu0 0.0
    %4931 = vmatprep.subr.mxu0 0.0
    %4932 = vmatpush2.xpose.msra.mxu0 0.0
    %4933 = vmatprep.subr.mxu0 0.0
    %4934 = vmatpush2.xpose.msra.mxu0 0.0
    %4935 = vmatprep.subr.mxu0 0.0
    %4936 = vmatpush2.xpose.msra.mxu0 0.0
    %4937 = vmatprep.subr.mxu0 0.0
    %4938 = vmatpush2.xpose.msra.mxu0 0.0
    %4939 = vmatprep.subr.mxu0 0.0
    %4940 = vmatpush2.xpose.msra.mxu0 0.0
    %4941 = vmatprep.mubr.f32.mxu0 0.0
    %4942 = vmatmul.mubr.f32.gmra.mxu0 %v4448
    %v4943 = vpop.f32.mrf.mxu0
    %v4944 = vadd.f32 %v4450, %v4943
    %v4945 = vpop.f32.mrf.mxu0
    %4946 = vdwg.mxu0
    %v4960 = vcombine.low %v4518, %v4520
    %v4961 = vcombine.low %v4589, %v4591
    %v4962 = vcombine.low %v4660, %v4662
    %v4963 = vcombine.low %v4731, %v4733
    %v4965 = vunpack.c.l.s4 1966171168
    %v4966 = vunpack.c.0.s8 %v4965
    %v4967 = vlaneseq
    %v4968 = vshrl.u32 %v4967, 7
    %v4969 = vsub.s32 %v4966, %v4968
    %v4970 = vrot.slane %v4960, %v4969
    %v4972 = vunpack.c.l.s4 1966171168
    %v4973 = vunpack.c.0.s8 %v4972
    %v4974 = vlaneseq
    %v4975 = vshrl.u32 %v4974, 7
    %v4976 = vsub.s32 %v4973, %v4975
    %v4977 = vrot.slane %v4961, %v4976
    %v4979 = vunpack.c.l.s4 1966171168
    %v4980 = vunpack.c.0.s8 %v4979
    %v4981 = vlaneseq
    %v4982 = vshrl.u32 %v4981, 7
    %v4983 = vsub.s32 %v4980, %v4982
    %v4984 = vrot.slane %v4962, %v4983
    %v4986 = vunpack.c.l.s4 1966171168
    %v4987 = vunpack.c.0.s8 %v4986
    %v4988 = vlaneseq
    %v4989 = vshrl.u32 %v4988, 7
    %v4990 = vsub.s32 %v4987, %v4989
    %v4991 = vrot.slane %v4963, %v4990
    %v4992 = vcombine.low %v4970, %v4977
    %v4993 = vcombine.low %v4984, %v4991
    %v4995 = vunpack.c.l.s4 1966171168
    %v4996 = vunpack.c.0.s8 %v4995
    %v4997 = vlaneseq
    %v4998 = vshrl.u32 %v4997, 7
    %v4999 = vsub.s32 %v4996, %v4998
    %v5000 = vrot.slane %v4992, %v4999
    %v5002 = vunpack.c.l.s4 1966171168
    %v5003 = vunpack.c.0.s8 %v5002
    %v5004 = vlaneseq
    %v5005 = vshrl.u32 %v5004, 7
    %v5006 = vsub.s32 %v5003, %v5005
    %v5007 = vrot.slane %v4993, %v5006
    %v5008 = vcombine.low %v5000, %v5007
    %v5009 = vcombine.low %v4802, %v4804
    %v5010 = vcombine.low %v4873, %v4875
    %v5012 = vunpack.c.l.s4 1966171168
    %v5013 = vunpack.c.0.s8 %v5012
    %v5014 = vlaneseq
    %v5015 = vshrl.u32 %v5014, 7
    %v5016 = vsub.s32 %v5013, %v5015
    %v5017 = vrot.slane %v5009, %v5016
    %v5019 = vunpack.c.l.s4 1966171168
    %v5020 = vunpack.c.0.s8 %v5019
    %v5021 = vlaneseq
    %v5022 = vshrl.u32 %v5021, 7
    %v5023 = vsub.s32 %v5020, %v5022
    %v5024 = vrot.slane %v5010, %v5023
    %v5026 = vunpack.c.l.s4 1966171168
    %v5027 = vunpack.c.0.s8 %v5026
    %v5028 = vlaneseq
    %v5029 = vshrl.u32 %v5028, 7
    %v5030 = vsub.s32 %v5027, %v5029
    %v5031 = vrot.slane %v4944, %v5030
    %v5032 = vcombine.low %v5017, %v5024
    %v5034 = vunpack.c.l.s4 1966171168
    %v5035 = vunpack.c.0.s8 %v5034
    %v5036 = vlaneseq
    %v5037 = vshrl.u32 %v5036, 7
    %v5038 = vsub.s32 %v5035, %v5037
    %v5039 = vrot.slane %v5032, %v5038
    %v5041 = vunpack.c.l.s4 1966171168
    %v5042 = vunpack.c.0.s8 %v5041
    %v5043 = vlaneseq
    %v5044 = vshrl.u32 %v5043, 7
    %v5045 = vsub.s32 %v5042, %v5044
    %v5046 = vrot.slane %v5031, %v5045
    %v5047 = vcombine.low %v5039, %v5046
    %5050 = vst [vmem:[%s10] sm:$0xff] %v5008
    %v5051 = vlaneseq
    %vm5052 = vcmp.ge.s32.totalorder %v5051, 0
    %vm5053 = vcmp.lt.s32.totalorder %v5051, 544
    %vm5054 = vmand %vm5052, %vm5053
    %5055 = vst.msk [vmem:[%s10 + $0x8] sm:$0x1f] %vm5054, %v5047
    // Predicated region
    $region70: #{bump_transformer_pallas.1} parent=1 // pred_check
      _
    $region71: #{bump_transformer_pallas.1} parent=1 // pred_check_branch
      %5057 = sbr.rel (0) target = $region73
    $region72: #{bump_transformer_pallas.1} parent=1 // pred_region
      _
    $region73: #{bump_transformer_pallas.1} parent=1 // pred_fallthru
      _
    // Predicated region
    $region74: #{bump_transformer_pallas.1} parent=1 // pred_check
      _
    $region75: #{bump_transformer_pallas.1} parent=1 // pred_check_branch
      %5059 = sbr.rel (0) target = $region77
    $region76: #{bump_transformer_pallas.1} parent=1 // pred_region
      _
    $region77: #{bump_transformer_pallas.1} parent=1 // pred_fallthru
      _
    %5060 = vsyncpa [#allocation3], 1
    %5061 = vsyncpa [#allocation7], 1
    %5062 = vsyncpa [#allocation10], 1
    %5063 = vsyncpa [#allocation13], 1
    %5064 = vsyncpa [#allocation4], 1

</llo_original>
